<compile_context>
chip_gen: v7x
topology: tpu7x:2x2x1
jax: 0.10.0
libtpu: 0.0.40
codegen_flags: <defaults>
</compile_context>

<pallas_src>
import functools

import jax
import jax.numpy as jnp
from jax import lax
from jax.experimental import pallas as pl
from jax.experimental.pallas import tpu as pltpu

_MM_DTYPE = jnp.bfloat16     # MXU operand dtype (f32 accumulation): ~2x MXU, half HBM
_Y_DTYPE = jnp.bfloat16      # dtype of conv outputs / out1 intermediates in HBM
_LANE = 128
_SUBLANE = 8
_EW_TARGET_ROWS = 1024       # row tile (after lane folding) for elementwise kernels
_VMEM_LIMIT = 40 * 1024 * 1024   # safe on v7x (64 MiB phys); ~96 MiB OK on v5e/v6e


def _round_up(v, m):
    return ((v + m - 1) // m) * m


# ----------------------------- Pallas kernels -----------------------------

def _conv_stats_kernel(ph_ref, w_ref, y_ref, st_ref, *, taps, ho, wo):
    """One batch image: 9-tap conv-as-matmul + packed per-image BN partials.

    ph_ref : (n_phase, Hq, Wq, Cin)  phase planes of the padded input (bf16)
    w_ref  : (n_taps, Cin, Cout)     per-tap weight matrices (bf16, resident)
    y_ref  : (1, Ho*Wo, Cout)        conv output for this image
    st_ref : (1, 2, Cout)            row 0 = sum(y), row 1 = sum((y-mean)^2)
    """
    cin = ph_ref.shape[-1]
    cout = w_ref.shape[-1]
    m_img = ho * wo

    acc = jnp.zeros((m_img, cout), jnp.float32)
    for t, (p, oh, ow) in enumerate(taps):
        # Static window of one phase plane -> (Ho, Wo, Cin) -> (Ho*Wo, Cin).
        xt = ph_ref[p, oh:oh + ho, ow:ow + wo, :].reshape(m_img, cin)
        acc = acc + jnp.dot(xt, w_ref[t, :, :],
                            preferred_element_type=jnp.float32)

    y_ref[0, :, :] = acc.astype(y_ref.dtype)

    # Per-image centered partial statistics (merged Welford-style in JAX).
    s = jnp.sum(acc, axis=0, keepdims=True)          # (1, Cout)
    mu = s * (1.0 / m_img)
    d = acc - mu
    q = jnp.sum(d * d, axis=0, keepdims=True)        # (1, Cout)
    st_ref[0, 0:1, :] = s
    st_ref[0, 1:2, :] = q


def _bn_relu_kernel(y_ref, s_ref, b_ref, o_ref):
    # relu(y * scale + bias), lane-dense folded layout (scale/bias pre-tiled).
    y = y_ref[...].astype(jnp.float32)
    o_ref[...] = jnp.maximum(y * s_ref[...] + b_ref[...], 0.0).astype(o_ref.dtype)


def _bn_add_relu_kernel(y_ref, ys_ref, yb_ref, z_ref, zs_ref, zb_ref, o_ref):
    # relu( bn2(conv2) + bn_shortcut(shortcut) ), lane-dense folded layout.
    y = y_ref[...].astype(jnp.float32)
    z = z_ref[...].astype(jnp.float32)
    o_ref[...] = jnp.maximum(
        y * ys_ref[...] + yb_ref[...] + z * zs_ref[...] + zb_ref[...],
        0.0).astype(o_ref.dtype)


# ----------------------------- kernel wrappers -----------------------------

def _make_phases(x_nhwc, ksize, stride):
    """Decompose a zero-padded NHWC image into stride-phase planes so that
    every conv tap becomes a CONTIGUOUS static (Ho, Wo) window of one plane.
    Returns phases (N*n_phase, Hq, Wq, C), n_phase, taps, (Ho, Wo) with
    taps[t] = (phase_index, row_offset, col_offset), dh-major order."""
    n, h, w, c = x_nhwc.shape
    pad = (ksize - 1) // 2
    s = stride
    ho = (h + 2 * pad - ksize) // s + 1
    wo = (w + 2 * pad - ksize) // s + 1
    hq = ho + (ksize - 1) // s
    wq = wo + (ksize - 1) // s
    xp = jnp.pad(x_nhwc, ((0, 0), (pad, pad), (pad, pad), (0, 0)))

    used, taps = [], []
    for dh in range(ksize):
        for dw in range(ksize):
            key = (dh % s, dw % s)
            if key not in used:
                used.append(key)
            taps.append((used.index(key), dh // s, dw // s))

    planes = []
    for (py, px) in used:
        sub = xp[:, py::s, px::s, :][:, :hq, :wq, :]
        if sub.shape[1] != hq or sub.shape[2] != wq:
            sub = jnp.pad(sub, ((0, 0), (0, hq - sub.shape[1]),
                                (0, wq - sub.shape[2]), (0, 0)))
        planes.append(sub)
    phases = jnp.stack(planes, axis=1)                # (N, n_phase, Hq, Wq, C)
    n_phase = len(used)
    return phases.reshape(n * n_phase, hq, wq, c), n_phase, taps, (ho, wo)


def _w_to_taps(w_oihw):
    # (O, I, kh, kw) -> (kh*kw, I, O) matching the dh-major tap order.
    o, i, kh, kw = w_oihw.shape
    return jnp.transpose(w_oihw, (2, 3, 1, 0)).reshape(kh * kw, i, o)


def pallas_conv_stats(phases, n_phase, w_taps, taps, ho, wo, out_dtype=_Y_DTYPE):
    """Fused conv (in-kernel tap accumulation) + per-image BN partial stats."""
    nnp, hq, wq, cin = phases.shape
    n = nnp // n_phase
    n_taps, _, cout = w_taps.shape
    m_img = ho * wo

    kernel = functools.partial(_conv_stats_kernel, taps=taps, ho=ho, wo=wo)

    mm_b = jnp.finfo(_MM_DTYPE).bits // 8
    y_b = jnp.finfo(out_dtype).bits // 8
    cost = pl.CostEstimate(
        flops=2 * n * m_img * cin * cout * n_taps,
        transcendentals=0,
        bytes_accessed=int(phases.size) * mm_b + n_taps * cin * cout * mm_b
        + n * m_img * cout * y_b + n * 2 * cout * 4)

    y, st = pl.pallas_call(
        kernel,
        out_shape=(jax.ShapeDtypeStruct((n, m_img, cout), out_dtype),
                   jax.ShapeDtypeStruct((n, 2, cout), jnp.float32)),
        grid=(n,),
        in_specs=[pl.BlockSpec((n_phase, hq, wq, cin), lambda b: (b, 0, 0, 0)),
                  pl.BlockSpec((n_taps, cin, cout), lambda b: (0, 0, 0))],
        out_specs=(pl.BlockSpec((1, m_img, cout), lambda b: (b, 0, 0)),
                   pl.BlockSpec((1, 2, cout), lambda b: (b, 0, 0))),
        compiler_params=pltpu.CompilerParams(
            dimension_semantics=("parallel",),
            vmem_limit_bytes=_VMEM_LIMIT),
        cost_estimate=cost,
    )(phases.astype(_MM_DTYPE), w_taps.astype(_MM_DTYPE))
    return y, st


def _finalize_stats(st, m_img):
    """Merge per-image (sum, centered SS) partials into batch mean / biased var."""
    n = st.shape[0]
    s = st[:, 0, :]
    q = st[:, 1, :]
    mean_i = s / m_img                                        # (N, C)
    mean = jnp.mean(mean_i, axis=0)                           # (C,)
    var = (jnp.sum(q, axis=0)
           + m_img * jnp.sum((mean_i - mean[None, :]) ** 2, axis=0)) / (n * m_img)
    return mean.reshape(1, -1), jnp.maximum(var, 0.0).reshape(1, -1)


def _bn_scale_bias(gamma, beta, mean, var, eps=1e-5):
    scale = gamma.reshape(1, -1) * lax.rsqrt(var + eps)       # (1, C)
    bias = beta.reshape(1, -1) - mean * scale                 # (1, C)
    return scale, bias


def _lane_fold(c):
    if c < _LANE and _LANE % c == 0:
        return _LANE // c
    return 1


def _fold_rows(arrs, m, c):
    """Pad rows and fold them into lanes so the last dim is >= 128 (dense
    vst, no masked partial stores) and the row tile is a multiple of 8."""
    fold = _lane_fold(c)
    cw = fold * c
    mf = -(-m // fold)
    tm = min(_EW_TARGET_ROWS, _round_up(mf, _SUBLANE))
    mf_p = _round_up(mf, tm)
    mp = mf_p * fold
    folded = [jnp.pad(a, ((0, mp - m), (0, 0))).reshape(mf_p, cw) for a in arrs]
    return folded, tm, mf_p // tm, cw, mp


def pallas_bn_relu(y, scale, bias, out_dtype=jnp.float32):
    m, c = y.shape
    (y_f,), tm, grid, cw, mp = _fold_rows([y], m, c)
    fold = cw // c
    s_t = jnp.tile(scale.reshape(1, c).astype(jnp.float32), (1, fold))
    b_t = jnp.tile(bias.reshape(1, c).astype(jnp.float32), (1, fold))
    out = pl.pallas_call(
        _bn_relu_kernel,
        out_shape=jax.ShapeDtypeStruct(y_f.shape, out_dtype),
        grid=(grid,),
        in_specs=[pl.BlockSpec((tm, cw), lambda i: (i, 0)),
                  pl.BlockSpec((1, cw), lambda i: (0, 0)),
                  pl.BlockSpec((1, cw), lambda i: (0, 0))],
        out_specs=pl.BlockSpec((tm, cw), lambda i: (i, 0)),
        compiler_params=pltpu.CompilerParams(
            dimension_semantics=("parallel",),
            vmem_limit_bytes=_VMEM_LIMIT),
    )(y_f, s_t, b_t)
    return out.reshape(mp, c)[:m]


def pallas_bn_add_relu(y, ys, yb, z, zs, zb, out_dtype=jnp.float32):
    m, c = y.shape
    (y_f, z_f), tm, grid, cw, mp = _fold_rows([y, z], m, c)
    fold = cw // c
    tile = lambda v: jnp.tile(v.reshape(1, c).astype(jnp.float32), (1, fold))
    out = pl.pallas_call(
        _bn_add_relu_kernel,
        out_shape=jax.ShapeDtypeStruct(y_f.shape, out_dtype),
        grid=(grid,),
        in_specs=[pl.BlockSpec((tm, cw), lambda i: (i, 0)),
                  pl.BlockSpec((1, cw), lambda i: (0, 0)),
                  pl.BlockSpec((1, cw), lambda i: (0, 0)),
                  pl.BlockSpec((tm, cw), lambda i: (i, 0)),
                  pl.BlockSpec((1, cw), lambda i: (0, 0)),
                  pl.BlockSpec((1, cw), lambda i: (0, 0))],
        out_specs=pl.BlockSpec((tm, cw), lambda i: (i, 0)),
        compiler_params=pltpu.CompilerParams(
            dimension_semantics=("parallel",),
            vmem_limit_bytes=_VMEM_LIMIT),
    )(y_f, tile(ys), tile(yb), z_f, tile(zs), tile(zb))
    return out.reshape(mp, c)[:m]


# ----------------------------- forward (glue in plain JAX) -----------------------------

def basic_block_forward(x_nchw, params, stride):
    x = jnp.transpose(x_nchw, (0, 2, 3, 1)).astype(jnp.float32)   # NHWC
    n, h, w, cin = x.shape
    planes = params["w1"].shape[0]

    # --- conv1 (3x3, stride, pad 1) fused with BN batch-stat partials ---
    ph1, np1, taps1, (ho1, wo1) = _make_phases(x, 3, stride)
    y1, st1 = pallas_conv_stats(ph1, np1, _w_to_taps(params["w1"]), taps1, ho1, wo1)
    m1, v1 = _finalize_stats(st1, ho1 * wo1)
    s1, b1 = _bn_scale_bias(params["g1"], params["b1"], m1, v1)

    # --- bn1 + relu (lane-dense folded epilogue), bf16 so conv2 streams less HBM ---
    # TODO(synk): fuse this scale/bias + relu into conv2's input-load path
    # (needs a per-channel pad value so the zero halo stays zero post-affine).
    out1 = pallas_bn_relu(y1.reshape(n * ho1 * wo1, planes), s1, b1,
                          out_dtype=_Y_DTYPE).reshape(n, ho1, wo1, planes)

    # --- conv2 (3x3, stride 1, pad 1) fused with BN batch-stat partials ---
    ph2, np2, taps2, (ho2, wo2) = _make_phases(out1, 3, 1)
    y2, st2 = pallas_conv_stats(ph2, np2, _w_to_taps(params["w2"]), taps2, ho2, wo2)
    m2, v2 = _finalize_stats(st2, ho2 * wo2)
    s2, b2 = _bn_scale_bias(params["g2"], params["b2"], m2, v2)

    # --- shortcut: 1x1 stride-s conv + BN, or identity ---
    if stride != 1 or cin != planes:
        phs, nps, tapss, (hos, wos) = _make_phases(x, 1, stride)
        ysc, sts = pallas_conv_stats(phs, nps, _w_to_taps(params["ws"]), tapss, hos, wos)
        ms, vs = _finalize_stats(sts, hos * wos)
        ss, bs = _bn_scale_bias(params["gs"], params["bs"], ms, vs)
        ysc = ysc.reshape(n * hos * wos, planes)
    else:
        ysc = x.reshape(n * h * w, cin)
        ss = jnp.ones((1, planes), jnp.float32)
        bs = jnp.zeros((1, planes), jnp.float32)

    # --- bn2(conv2) + bn_sc(shortcut) + add + relu in one fused epilogue ---
    out = pallas_bn_add_relu(y2.reshape(n * ho2 * wo2, planes), s2, b2, ysc, ss, bs)
    return jnp.transpose(out.reshape(n, ho2, wo2, planes), (0, 3, 1, 2))  # NCHW


# ----------------------------- pure-JAX reference -----------------------------

def ref_forward(x, p, stride, eps=1e-5):
    def conv(x, w, s, pad):
        return lax.conv_general_dilated(
            x, w, (s, s), pad, dimension_numbers=("NCHW", "OIHW", "NCHW"))

    def bn(y, g, b):
        mean = jnp.mean(y, axis=(0, 2, 3), keepdims=True)
        var = jnp.var(y, axis=(0, 2, 3), keepdims=True)
        return ((y - mean) * lax.rsqrt(var + eps) * g[None, :, None, None]
                + b[None, :, None, None])

    out = jax.nn.relu(bn(conv(x, p["w1"], stride, ((1, 1), (1, 1))),
                         p["g1"], p["b1"]))
    out = bn(conv(out, p["w2"], 1, ((1, 1), (1, 1))), p["g2"], p["b2"])
    if stride != 1 or x.shape[1] != p["w1"].shape[0]:
        sc = bn(conv(x, p["ws"], stride, ((0, 0), (0, 0))), p["gs"], p["bs"])
    else:
        sc = x
    return jax.nn.relu(out + sc)


# ----------------------------- main -----------------------------

if __name__ == "__main__":
    in_planes, planes, stride = 4, 8, 2
    N, H, W = 2, 16, 16

    ks = jax.random.split(jax.random.PRNGKey(0), 10)
    params = {
        "w1": 0.2 * jax.random.normal(ks[0], (planes, in_planes, 3, 3), jnp.float32),
        "g1": 1.0 + 0.1 * jax.random.normal(ks[1], (planes,), jnp.float32),
        "b1": 0.1 * jax.random.normal(ks[2], (planes,), jnp.float32),
        "w2": 0.2 * jax.random.normal(ks[3], (planes, planes, 3, 3), jnp.float32),
        "g2": 1.0 + 0.1 * jax.random.normal(ks[4], (planes,), jnp.float32),
        "b2": 0.1 * jax.random.normal(ks[5], (planes,), jnp.float32),
        "ws": 0.2 * jax.random.normal(ks[6], (planes, in_planes, 1, 1), jnp.float32),
        "gs": 1.0 + 0.1 * jax.random.normal(ks[7], (planes,), jnp.float32),
        "bs": 0.1 * jax.random.normal(ks[8], (planes,), jnp.float32),
    }
    x = jax.random.normal(ks[9], (N, in_planes, H, W), jnp.float32)

    fwd = jax.jit(functools.partial(basic_block_forward, stride=stride))
    out = jax.block_until_ready(fwd(x, params))

    ref = jax.block_until_ready(ref_forward(x, params, stride))
    assert out.shape == ref.shape == (N, planes, H // stride, W // stride)
    # Tolerance accounts for bf16 MXU operands / bf16 intermediates
    # (f32 accumulation and f32 BN statistics are kept inside the kernels).
    err = jnp.max(jnp.abs(out - ref))
    assert jnp.allclose(out, ref, atol=6e-2, rtol=6e-2), f"max err {err}"

    print("KERNEL_OK")
</pallas_src>

<mosaic_0001>
module attributes {stable_mosaic.version = 11 : i64} {
  func.func @_conv_stats_kernel(%arg0: i32, %arg1: memref<1x8x8x4xbf16, #tpu.memory_space<vmem>>, %arg2: memref<1x4x8xbf16, #tpu.memory_space<vmem>>, %arg3: memref<1x64x8xbf16, #tpu.memory_space<vmem>>, %arg4: memref<1x2x8xf32, #tpu.memory_space<vmem>>) attributes {dimension_semantics = [#tpu.dimension_semantics<parallel>], iteration_bounds = array<i64: 2>, scalar_prefetch = 0 : i64, scratch_operands = 0 : i64, tpu.core_type = #tpu.core_type<tc>, window_params = [{transform_indices = @transform_0, window_bounds = array<i64: 1, 8, 8, 4>}, {pipeline_mode = #tpu.pipeline_mode<synchronous>, transform_indices = @transform_1, window_bounds = array<i64: 1, 4, 8>}, {transform_indices = @transform_2, window_bounds = array<i64: 1, 64, 8>}, {transform_indices = @transform_3, window_bounds = array<i64: 1, 2, 8>}]} {
    %cst = arith.constant 0.000000e+00 : f32
    %0 = vector.broadcast %cst : f32 to vector<64x8xf32>
    %c0 = arith.constant 0 : index
    %c0_0 = arith.constant 0 : index
    %c0_1 = arith.constant 0 : index
    %c0_2 = arith.constant 0 : index
    %1 = vector.load %arg1[%c0, %c0_0, %c0_1, %c0_2] : memref<1x8x8x4xbf16, #tpu.memory_space<vmem>>, vector<1x8x8x4xbf16>
    %2 = vector.shape_cast %1 : vector<1x8x8x4xbf16> to vector<8x8x4xbf16>
    %3 = vector.shape_cast %2 : vector<8x8x4xbf16> to vector<64x4xbf16>
    %c0_3 = arith.constant 0 : index
    %c0_4 = arith.constant 0 : index
    %c0_5 = arith.constant 0 : index
    %4 = vector.load %arg2[%c0_3, %c0_4, %c0_5] : memref<1x4x8xbf16, #tpu.memory_space<vmem>>, vector<1x4x8xbf16>
    %5 = vector.shape_cast %4 : vector<1x4x8xbf16> to vector<4x8xbf16>
    %cst_6 = arith.constant dense<0.000000e+00> : vector<64x8xf32>
    %6 = tpu.matmul %3, %5, %cst_6 {dimension_numbers = #tpu.dot_dimension_numbers<[1], [0], [0], [1], [0, 0, 1, 1], [], []>} : vector<64x4xbf16>, vector<4x8xbf16>, vector<64x8xf32> -> vector<64x8xf32>
    %7 = arith.addf %0, %6 : vector<64x8xf32>
    %8 = arith.truncf %7 : vector<64x8xf32> to vector<64x8xbf16>
    %c0_7 = arith.constant 0 : index
    %c0_8 = arith.constant 0 : index
    %c0_9 = arith.constant 0 : index
    %9 = vector.load %arg3[%c0_7, %c0_8, %c0_9] : memref<1x64x8xbf16, #tpu.memory_space<vmem>>, vector<1x64x8xbf16>
    %10 = vector.shape_cast %9 : vector<1x64x8xbf16> to vector<64x8xbf16>
    %11 = vector.shape_cast %8 : vector<64x8xbf16> to vector<1x64x8xbf16>
    tpu.vector_store %arg3[%c0_7, %c0_8, %c0_9], %11 {strides = array<i32>} : memref<1x64x8xbf16, #tpu.memory_space<vmem>>, vector<1x64x8xbf16>,
    %cst_10 = arith.constant dense<0.000000e+00> : vector<8xf32>
    %12 = vector.multi_reduction <add>, %7, %cst_10 [0] : vector<64x8xf32> to vector<8xf32>
    %13 = vector.shape_cast %12 : vector<8xf32> to vector<1x8xf32>
    %cst_11 = arith.constant 1.562500e-02 : f32
    %14 = vector.broadcast %cst_11 : f32 to vector<1x8xf32>
    %15 = arith.mulf %13, %14 : vector<1x8xf32>
    %16 = vector.broadcast %15 : vector<1x8xf32> to vector<64x8xf32>
    %17 = arith.subf %7, %16 : vector<64x8xf32>
    %18 = arith.mulf %17, %17 : vector<64x8xf32>
    %cst_12 = arith.constant dense<0.000000e+00> : vector<8xf32>
    %19 = vector.multi_reduction <add>, %18, %cst_12 [0] : vector<64x8xf32> to vector<8xf32>
    %20 = vector.shape_cast %19 : vector<8xf32> to vector<1x8xf32>
    %c0_13 = arith.constant 0 : index
    %c0_14 = arith.constant 0 : index
    %c0_15 = arith.constant 0 : index
    %21 = vector.load %arg4[%c0_13, %c0_14, %c0_15] : memref<1x2x8xf32, #tpu.memory_space<vmem>>, vector<1x1x8xf32>
    %22 = vector.shape_cast %21 : vector<1x1x8xf32> to vector<1x8xf32>
    %23 = vector.shape_cast %13 : vector<1x8xf32> to vector<1x1x8xf32>
    tpu.vector_store %arg4[%c0_13, %c0_14, %c0_15], %23 {strides = array<i32>} : memref<1x2x8xf32, #tpu.memory_space<vmem>>, vector<1x1x8xf32>,
    %c0_16 = arith.constant 0 : index
    %c1 = arith.constant 1 : index
    %c0_17 = arith.constant 0 : index
    %24 = vector.load %arg4[%c0_16, %c1, %c0_17] : memref<1x2x8xf32, #tpu.memory_space<vmem>>, vector<1x1x8xf32>
    %25 = vector.shape_cast %24 : vector<1x1x8xf32> to vector<1x8xf32>
    %26 = vector.shape_cast %20 : vector<1x8xf32> to vector<1x1x8xf32>
    tpu.vector_store %arg4[%c0_16, %c1, %c0_17], %26 {strides = array<i32>} : memref<1x2x8xf32, #tpu.memory_space<vmem>>, vector<1x1x8xf32>,
    return
  }
  func.func @transform_0(%arg0: i32) -> (i32, i32, i32, i32) {
    %c0_i32 = arith.constant 0 : i32
    %c0_i32_0 = arith.constant 0 : i32
    %c0_i32_1 = arith.constant 0 : i32
    %c0_i32_2 = arith.constant 0 : i32
    return %arg0, %c0_i32, %c0_i32_0, %c0_i32_1 : i32, i32, i32, i32
  }
  func.func @transform_1(%arg0: i32) -> (i32, i32, i32) {
    %c0_i32 = arith.constant 0 : i32
    %c0_i32_0 = arith.constant 0 : i32
    %c0_i32_1 = arith.constant 0 : i32
    %c0_i32_2 = arith.constant 0 : i32
    return %c0_i32, %c0_i32_0, %c0_i32_1 : i32, i32, i32
  }
  func.func @transform_2(%arg0: i32) -> (i32, i32, i32) {
    %c0_i32 = arith.constant 0 : i32
    %c0_i32_0 = arith.constant 0 : i32
    %c0_i32_1 = arith.constant 0 : i32
    return %arg0, %c0_i32, %c0_i32_0 : i32, i32, i32
  }
  func.func @transform_3(%arg0: i32) -> (i32, i32, i32) {
    %c0_i32 = arith.constant 0 : i32
    %c0_i32_0 = arith.constant 0 : i32
    %c0_i32_1 = arith.constant 0 : i32
    return %arg0, %c0_i32, %c0_i32_0 : i32, i32, i32
  }
}

module attributes {stable_mosaic.version = 11 : i64} {
  func.func @_conv_stats_kernel(%arg0: i32, %arg1: memref<4x9x9x4xbf16, #tpu.memory_space<vmem>>, %arg2: memref<9x4x8xbf16, #tpu.memory_space<vmem>>, %arg3: memref<1x64x8xbf16, #tpu.memory_space<vmem>>, %arg4: memref<1x2x8xf32, #tpu.memory_space<vmem>>) attributes {dimension_semantics = [#tpu.dimension_semantics<parallel>], iteration_bounds = array<i64: 2>, scalar_prefetch = 0 : i64, scratch_operands = 0 : i64, tpu.core_type = #tpu.core_type<tc>, window_params = [{transform_indices = @transform_0, window_bounds = array<i64: 4, 9, 9, 4>}, {pipeline_mode = #tpu.pipeline_mode<synchronous>, transform_indices = @transform_1, window_bounds = array<i64: 9, 4, 8>}, {transform_indices = @transform_2, window_bounds = array<i64: 1, 64, 8>}, {transform_indices = @transform_3, window_bounds = array<i64: 1, 2, 8>}]} {
    %cst = arith.constant 0.000000e+00 : f32
    %0 = vector.broadcast %cst : f32 to vector<64x8xf32>
    %c0 = arith.constant 0 : index
    %c0_0 = arith.constant 0 : index
    %c0_1 = arith.constant 0 : index
    %c0_2 = arith.constant 0 : index
    %1 = vector.load %arg1[%c0, %c0_0, %c0_1, %c0_2] : memref<4x9x9x4xbf16, #tpu.memory_space<vmem>>, vector<1x8x8x4xbf16>
    %2 = vector.shape_cast %1 : vector<1x8x8x4xbf16> to vector<8x8x4xbf16>
    %3 = vector.shape_cast %2 : vector<8x8x4xbf16> to vector<64x4xbf16>
    %c0_3 = arith.constant 0 : index
    %c0_4 = arith.constant 0 : index
    %c0_5 = arith.constant 0 : index
    %4 = vector.load %arg2[%c0_3, %c0_4, %c0_5] : memref<9x4x8xbf16, #tpu.memory_space<vmem>>, vector<1x4x8xbf16>
    %5 = vector.shape_cast %4 : vector<1x4x8xbf16> to vector<4x8xbf16>
    %cst_6 = arith.constant dense<0.000000e+00> : vector<64x8xf32>
    %6 = tpu.matmul %3, %5, %cst_6 {dimension_numbers = #tpu.dot_dimension_numbers<[1], [0], [0], [1], [0, 0, 1, 1], [], []>} : vector<64x4xbf16>, vector<4x8xbf16>, vector<64x8xf32> -> vector<64x8xf32>
    %7 = arith.addf %0, %6 : vector<64x8xf32>
    %c1 = arith.constant 1 : index
    %c0_7 = arith.constant 0 : index
    %c0_8 = arith.constant 0 : index
    %c0_9 = arith.constant 0 : index
    %8 = vector.load %arg1[%c1, %c0_7, %c0_8, %c0_9] : memref<4x9x9x4xbf16, #tpu.memory_space<vmem>>, vector<1x8x8x4xbf16>
    %9 = vector.shape_cast %8 : vector<1x8x8x4xbf16> to vector<8x8x4xbf16>
    %10 = vector.shape_cast %9 : vector<8x8x4xbf16> to vector<64x4xbf16>
    %c1_10 = arith.constant 1 : index
    %c0_11 = arith.constant 0 : index
    %c0_12 = arith.constant 0 : index
    %11 = vector.load %arg2[%c1_10, %c0_11, %c0_12] : memref<9x4x8xbf16, #tpu.memory_space<vmem>>, vector<1x4x8xbf16>
    %12 = vector.shape_cast %11 : vector<1x4x8xbf16> to vector<4x8xbf16>
    %cst_13 = arith.constant dense<0.000000e+00> : vector<64x8xf32>
    %13 = tpu.matmul %10, %12, %cst_13 {dimension_numbers = #tpu.dot_dimension_numbers<[1], [0], [0], [1], [0, 0, 1, 1], [], []>} : vector<64x4xbf16>, vector<4x8xbf16>, vector<64x8xf32> -> vector<64x8xf32>
    %14 = arith.addf %7, %13 : vector<64x8xf32>
    %c0_14 = arith.constant 0 : index
    %c0_15 = arith.constant 0 : index
    %c1_16 = arith.constant 1 : index
    %c0_17 = arith.constant 0 : index
    %15 = vector.load %arg1[%c0_14, %c0_15, %c1_16, %c0_17] : memref<4x9x9x4xbf16, #tpu.memory_space<vmem>>, vector<1x8x8x4xbf16>
    %16 = vector.shape_cast %15 : vector<1x8x8x4xbf16> to vector<8x8x4xbf16>
    %17 = vector.shape_cast %16 : vector<8x8x4xbf16> to vector<64x4xbf16>
    %c2 = arith.constant 2 : index
    %c0_18 = arith.constant 0 : index
    %c0_19 = arith.constant 0 : index
    %18 = vector.load %arg2[%c2, %c0_18, %c0_19] : memref<9x4x8xbf16, #tpu.memory_space<vmem>>, vector<1x4x8xbf16>
    %19 = vector.shape_cast %18 : vector<1x4x8xbf16> to vector<4x8xbf16>
    %cst_20 = arith.constant dense<0.000000e+00> : vector<64x8xf32>
    %20 = tpu.matmul %17, %19, %cst_20 {dimension_numbers = #tpu.dot_dimension_numbers<[1], [0], [0], [1], [0, 0, 1, 1], [], []>} : vector<64x4xbf16>, vector<4x8xbf16>, vector<64x8xf32> -> vector<64x8xf32>
    %21 = arith.addf %14, %20 : vector<64x8xf32>
    %c2_21 = arith.constant 2 : index
    %c0_22 = arith.constant 0 : index
    %c0_23 = arith.constant 0 : index
    %c0_24 = arith.constant 0 : index
    %22 = vector.load %arg1[%c2_21, %c0_22, %c0_23, %c0_24] : memref<4x9x9x4xbf16, #tpu.memory_space<vmem>>, vector<1x8x8x4xbf16>
    %23 = vector.shape_cast %22 : vector<1x8x8x4xbf16> to vector<8x8x4xbf16>
    %24 = vector.shape_cast %23 : vector<8x8x4xbf16> to vector<64x4xbf16>
    %c3 = arith.constant 3 : index
    %c0_25 = arith.constant 0 : index
    %c0_26 = arith.constant 0 : index
    %25 = vector.load %arg2[%c3, %c0_25, %c0_26] : memref<9x4x8xbf16, #tpu.memory_space<vmem>>, vector<1x4x8xbf16>
    %26 = vector.shape_cast %25 : vector<1x4x8xbf16> to vector<4x8xbf16>
    %cst_27 = arith.constant dense<0.000000e+00> : vector<64x8xf32>
    %27 = tpu.matmul %24, %26, %cst_27 {dimension_numbers = #tpu.dot_dimension_numbers<[1], [0], [0], [1], [0, 0, 1, 1], [], []>} : vector<64x4xbf16>, vector<4x8xbf16>, vector<64x8xf32> -> vector<64x8xf32>
    %28 = arith.addf %21, %27 : vector<64x8xf32>
    %c3_28 = arith.constant 3 : index
    %c0_29 = arith.constant 0 : index
    %c0_30 = arith.constant 0 : index
    %c0_31 = arith.constant 0 : index
    %29 = vector.load %arg1[%c3_28, %c0_29, %c0_30, %c0_31] : memref<4x9x9x4xbf16, #tpu.memory_space<vmem>>, vector<1x8x8x4xbf16>
    %30 = vector.shape_cast %29 : vector<1x8x8x4xbf16> to vector<8x8x4xbf16>
    %31 = vector.shape_cast %30 : vector<8x8x4xbf16> to vector<64x4xbf16>
    %c4 = arith.constant 4 : index
    %c0_32 = arith.constant 0 : index
    %c0_33 = arith.constant 0 : index
    %32 = vector.load %arg2[%c4, %c0_32, %c0_33] : memref<9x4x8xbf16, #tpu.memory_space<vmem>>, vector<1x4x8xbf16>
    %33 = vector.shape_cast %32 : vector<1x4x8xbf16> to vector<4x8xbf16>
    %cst_34 = arith.constant dense<0.000000e+00> : vector<64x8xf32>
    %34 = tpu.matmul %31, %33, %cst_34 {dimension_numbers = #tpu.dot_dimension_numbers<[1], [0], [0], [1], [0, 0, 1, 1], [], []>} : vector<64x4xbf16>, vector<4x8xbf16>, vector<64x8xf32> -> vector<64x8xf32>
    %35 = arith.addf %28, %34 : vector<64x8xf32>
    %c2_35 = arith.constant 2 : index
    %c0_36 = arith.constant 0 : index
    %c1_37 = arith.constant 1 : index
    %c0_38 = arith.constant 0 : index
    %36 = vector.load %arg1[%c2_35, %c0_36, %c1_37, %c0_38] : memref<4x9x9x4xbf16, #tpu.memory_space<vmem>>, vector<1x8x8x4xbf16>
    %37 = vector.shape_cast %36 : vector<1x8x8x4xbf16> to vector<8x8x4xbf16>
    %38 = vector.shape_cast %37 : vector<8x8x4xbf16> to vector<64x4xbf16>
    %c5 = arith.constant 5 : index
    %c0_39 = arith.constant 0 : index
    %c0_40 = arith.constant 0 : index
    %39 = vector.load %arg2[%c5, %c0_39, %c0_40] : memref<9x4x8xbf16, #tpu.memory_space<vmem>>, vector<1x4x8xbf16>
    %40 = vector.shape_cast %39 : vector<1x4x8xbf16> to vector<4x8xbf16>
    %cst_41 = arith.constant dense<0.000000e+00> : vector<64x8xf32>
    %41 = tpu.matmul %38, %40, %cst_41 {dimension_numbers = #tpu.dot_dimension_numbers<[1], [0], [0], [1], [0, 0, 1, 1], [], []>} : vector<64x4xbf16>, vector<4x8xbf16>, vector<64x8xf32> -> vector<64x8xf32>
    %42 = arith.addf %35, %41 : vector<64x8xf32>
    %c0_42 = arith.constant 0 : index
    %c1_43 = arith.constant 1 : index
    %c0_44 = arith.constant 0 : index
    %c0_45 = arith.constant 0 : index
    %43 = vector.load %arg1[%c0_42, %c1_43, %c0_44, %c0_45] : memref<4x9x9x4xbf16, #tpu.memory_space<vmem>>, vector<1x8x8x4xbf16>
    %44 = vector.shape_cast %43 : vector<1x8x8x4xbf16> to vector<8x8x4xbf16>
    %45 = vector.shape_cast %44 : vector<8x8x4xbf16> to vector<64x4xbf16>
    %c6 = arith.constant 6 : index
    %c0_46 = arith.constant 0 : index
    %c0_47 = arith.constant 0 : index
    %46 = vector.load %arg2[%c6, %c0_46, %c0_47] : memref<9x4x8xbf16, #tpu.memory_space<vmem>>, vector<1x4x8xbf16>
    %47 = vector.shape_cast %46 : vector<1x4x8xbf16> to vector<4x8xbf16>
    %cst_48 = arith.constant dense<0.000000e+00> : vector<64x8xf32>
    %48 = tpu.matmul %45, %47, %cst_48 {dimension_numbers = #tpu.dot_dimension_numbers<[1], [0], [0], [1], [0, 0, 1, 1], [], []>} : vector<64x4xbf16>, vector<4x8xbf16>, vector<64x8xf32> -> vector<64x8xf32>
    %49 = arith.addf %42, %48 : vector<64x8xf32>
    %c1_49 = arith.constant 1 : index
    %c1_50 = arith.constant 1 : index
    %c0_51 = arith.constant 0 : index
    %c0_52 = arith.constant 0 : index
    %50 = vector.load %arg1[%c1_49, %c1_50, %c0_51, %c0_52] : memref<4x9x9x4xbf16, #tpu.memory_space<vmem>>, vector<1x8x8x4xbf16>
    %51 = vector.shape_cast %50 : vector<1x8x8x4xbf16> to vector<8x8x4xbf16>
    %52 = vector.shape_cast %51 : vector<8x8x4xbf16> to vector<64x4xbf16>
    %c7 = arith.constant 7 : index
    %c0_53 = arith.constant 0 : index
    %c0_54 = arith.constant 0 : index
    %53 = vector.load %arg2[%c7, %c0_53, %c0_54] : memref<9x4x8xbf16, #tpu.memory_space<vmem>>, vector<1x4x8xbf16>
    %54 = vector.shape_cast %53 : vector<1x4x8xbf16> to vector<4x8xbf16>
    %cst_55 = arith.constant dense<0.000000e+00> : vector<64x8xf32>
    %55 = tpu.matmul %52, %54, %cst_55 {dimension_numbers = #tpu.dot_dimension_numbers<[1], [0], [0], [1], [0, 0, 1, 1], [], []>} : vector<64x4xbf16>, vector<4x8xbf16>, vector<64x8xf32> -> vector<64x8xf32>
    %56 = arith.addf %49, %55 : vector<64x8xf32>
    %c0_56 = arith.constant 0 : index
    %c1_57 = arith.constant 1 : index
    %c1_58 = arith.constant 1 : index
    %c0_59 = arith.constant 0 : index
    %57 = vector.load %arg1[%c0_56, %c1_57, %c1_58, %c0_59] : memref<4x9x9x4xbf16, #tpu.memory_space<vmem>>, vector<1x8x8x4xbf16>
    %58 = vector.shape_cast %57 : vector<1x8x8x4xbf16> to vector<8x8x4xbf16>
    %59 = vector.shape_cast %58 : vector<8x8x4xbf16> to vector<64x4xbf16>
    %c8 = arith.constant 8 : index
    %c0_60 = arith.constant 0 : index
    %c0_61 = arith.constant 0 : index
    %60 = vector.load %arg2[%c8, %c0_60, %c0_61] : memref<9x4x8xbf16, #tpu.memory_space<vmem>>, vector<1x4x8xbf16>
    %61 = vector.shape_cast %60 : vector<1x4x8xbf16> to vector<4x8xbf16>
    %cst_62 = arith.constant dense<0.000000e+00> : vector<64x8xf32>
    %62 = tpu.matmul %59, %61, %cst_62 {dimension_numbers = #tpu.dot_dimension_numbers<[1], [0], [0], [1], [0, 0, 1, 1], [], []>} : vector<64x4xbf16>, vector<4x8xbf16>, vector<64x8xf32> -> vector<64x8xf32>
    %63 = arith.addf %56, %62 : vector<64x8xf32>
    %64 = arith.truncf %63 : vector<64x8xf32> to vector<64x8xbf16>
    %c0_63 = arith.constant 0 : index
    %c0_64 = arith.constant 0 : index
    %c0_65 = arith.constant 0 : index
    %65 = vector.load %arg3[%c0_63, %c0_64, %c0_65] : memref<1x64x8xbf16, #tpu.memory_space<vmem>>, vector<1x64x8xbf16>
    %66 = vector.shape_cast %65 : vector<1x64x8xbf16> to vector<64x8xbf16>
    %67 = vector.shape_cast %64 : vector<64x8xbf16> to vector<1x64x8xbf16>
    tpu.vector_store %arg3[%c0_63, %c0_64, %c0_65], %67 {strides = array<i32>} : memref<1x64x8xbf16, #tpu.memory_space<vmem>>, vector<1x64x8xbf16>,
    %cst_66 = arith.constant dense<0.000000e+00> : vector<8xf32>
    %68 = vector.multi_reduction <add>, %63, %cst_66 [0] : vector<64x8xf32> to vector<8xf32>
    %69 = vector.shape_cast %68 : vector<8xf32> to vector<1x8xf32>
    %cst_67 = arith.constant 1.562500e-02 : f32
    %70 = vector.broadcast %cst_67 : f32 to vector<1x8xf32>
    %71 = arith.mulf %69, %70 : vector<1x8xf32>
    %72 = vector.broadcast %71 : vector<1x8xf32> to vector<64x8xf32>
    %73 = arith.subf %63, %72 : vector<64x8xf32>
    %74 = arith.mulf %73, %73 : vector<64x8xf32>
    %cst_68 = arith.constant dense<0.000000e+00> : vector<8xf32>
    %75 = vector.multi_reduction <add>, %74, %cst_68 [0] : vector<64x8xf32> to vector<8xf32>
    %76 = vector.shape_cast %75 : vector<8xf32> to vector<1x8xf32>
    %c0_69 = arith.constant 0 : index
    %c0_70 = arith.constant 0 : index
    %c0_71 = arith.constant 0 : index
    %77 = vector.load %arg4[%c0_69, %c0_70, %c0_71] : memref<1x2x8xf32, #tpu.memory_space<vmem>>, vector<1x1x8xf32>
    %78 = vector.shape_cast %77 : vector<1x1x8xf32> to vector<1x8xf32>
    %79 = vector.shape_cast %69 : vector<1x8xf32> to vector<1x1x8xf32>
    tpu.vector_store %arg4[%c0_69, %c0_70, %c0_71], %79 {strides = array<i32>} : memref<1x2x8xf32, #tpu.memory_space<vmem>>, vector<1x1x8xf32>,
    %c0_72 = arith.constant 0 : index
    %c1_73 = arith.constant 1 : index
    %c0_74 = arith.constant 0 : index
    %80 = vector.load %arg4[%c0_72, %c1_73, %c0_74] : memref<1x2x8xf32, #tpu.memory_space<vmem>>, vector<1x1x8xf32>
    %81 = vector.shape_cast %80 : vector<1x1x8xf32> to vector<1x8xf32>
    %82 = vector.shape_cast %76 : vector<1x8xf32> to vector<1x1x8xf32>
    tpu.vector_store %arg4[%c0_72, %c1_73, %c0_74], %82 {strides = array<i32>} : memref<1x2x8xf32, #tpu.memory_space<vmem>>, vector<1x1x8xf32>,
    return
  }
  func.func @transform_0(%arg0: i32) -> (i32, i32, i32, i32) {
    %c0_i32 = arith.constant 0 : i32
    %c0_i32_0 = arith.constant 0 : i32
    %c0_i32_1 = arith.constant 0 : i32
    %c0_i32_2 = arith.constant 0 : i32
    return %arg0, %c0_i32, %c0_i32_0, %c0_i32_1 : i32, i32, i32, i32
  }
  func.func @transform_1(%arg0: i32) -> (i32, i32, i32) {
    %c0_i32 = arith.constant 0 : i32
    %c0_i32_0 = arith.constant 0 : i32
    %c0_i32_1 = arith.constant 0 : i32
    %c0_i32_2 = arith.constant 0 : i32
    return %c0_i32, %c0_i32_0, %c0_i32_1 : i32, i32, i32
  }
  func.func @transform_2(%arg0: i32) -> (i32, i32, i32) {
    %c0_i32 = arith.constant 0 : i32
    %c0_i32_0 = arith.constant 0 : i32
    %c0_i32_1 = arith.constant 0 : i32
    return %arg0, %c0_i32, %c0_i32_0 : i32, i32, i32
  }
  func.func @transform_3(%arg0: i32) -> (i32, i32, i32) {
    %c0_i32 = arith.constant 0 : i32
    %c0_i32_0 = arith.constant 0 : i32
    %c0_i32_1 = arith.constant 0 : i32
    return %arg0, %c0_i32, %c0_i32_0 : i32, i32, i32
  }
}

module attributes {stable_mosaic.version = 11 : i64} {
  func.func @_bn_relu_kernel(%arg0: i32, %arg1: memref<8x128xbf16, #tpu.memory_space<vmem>>, %arg2: memref<1x128xf32, #tpu.memory_space<vmem>>, %arg3: memref<1x128xf32, #tpu.memory_space<vmem>>, %arg4: memref<8x128xbf16, #tpu.memory_space<vmem>>) attributes {dimension_semantics = [#tpu.dimension_semantics<parallel>], iteration_bounds = array<i64: 1>, scalar_prefetch = 0 : i64, scratch_operands = 0 : i64, tpu.core_type = #tpu.core_type<tc>, window_params = [{transform_indices = @transform_0, window_bounds = array<i64: 8, 128>}, {pipeline_mode = #tpu.pipeline_mode<synchronous>, transform_indices = @transform_1, window_bounds = array<i64: 1, 128>}, {pipeline_mode = #tpu.pipeline_mode<synchronous>, transform_indices = @transform_2, window_bounds = array<i64: 1, 128>}, {transform_indices = @transform_3, window_bounds = array<i64: 8, 128>}]} {
    %c0 = arith.constant 0 : index
    %c0_0 = arith.constant 0 : index
    %0 = vector.load %arg1[%c0, %c0_0] : memref<8x128xbf16, #tpu.memory_space<vmem>>, vector<8x128xbf16>
    %1 = arith.extf %0 : vector<8x128xbf16> to vector<8x128xf32>
    %c0_1 = arith.constant 0 : index
    %c0_2 = arith.constant 0 : index
    %2 = vector.load %arg2[%c0_1, %c0_2] : memref<1x128xf32, #tpu.memory_space<vmem>>, vector<1x128xf32>
    %3 = vector.broadcast %2 : vector<1x128xf32> to vector<8x128xf32>
    %4 = arith.mulf %1, %3 : vector<8x128xf32>
    %c0_3 = arith.constant 0 : index
    %c0_4 = arith.constant 0 : index
    %5 = vector.load %arg3[%c0_3, %c0_4] : memref<1x128xf32, #tpu.memory_space<vmem>>, vector<1x128xf32>
    %6 = vector.broadcast %5 : vector<1x128xf32> to vector<8x128xf32>
    %7 = arith.addf %4, %6 : vector<8x128xf32>
    %cst = arith.constant 0.000000e+00 : f32
    %8 = vector.broadcast %cst : f32 to vector<8x128xf32>
    %9 = arith.maximumf %7, %8 : vector<8x128xf32>
    %10 = arith.truncf %9 : vector<8x128xf32> to vector<8x128xbf16>
    %c0_5 = arith.constant 0 : index
    %c0_6 = arith.constant 0 : index
    %11 = vector.load %arg4[%c0_5, %c0_6] : memref<8x128xbf16, #tpu.memory_space<vmem>>, vector<8x128xbf16>
    tpu.vector_store %arg4[%c0_5, %c0_6], %10 {strides = array<i32>} : memref<8x128xbf16, #tpu.memory_space<vmem>>, vector<8x128xbf16>,
    return
  }
  func.func @transform_0(%arg0: i32) -> (i32, i32) {
    %c0_i32 = arith.constant 0 : i32
    %c0_i32_0 = arith.constant 0 : i32
    return %arg0, %c0_i32 : i32, i32
  }
  func.func @transform_1(%arg0: i32) -> (i32, i32) {
    %c0_i32 = arith.constant 0 : i32
    %c0_i32_0 = arith.constant 0 : i32
    %c0_i32_1 = arith.constant 0 : i32
    return %c0_i32, %c0_i32_0 : i32, i32
  }
  func.func @transform_2(%arg0: i32) -> (i32, i32) {
    %c0_i32 = arith.constant 0 : i32
    %c0_i32_0 = arith.constant 0 : i32
    %c0_i32_1 = arith.constant 0 : i32
    return %c0_i32, %c0_i32_0 : i32, i32
  }
  func.func @transform_3(%arg0: i32) -> (i32, i32) {
    %c0_i32 = arith.constant 0 : i32
    %c0_i32_0 = arith.constant 0 : i32
    return %arg0, %c0_i32 : i32, i32
  }
}

module attributes {stable_mosaic.version = 11 : i64} {
  func.func @_bn_add_relu_kernel(%arg0: i32, %arg1: memref<8x128xbf16, #tpu.memory_space<vmem>>, %arg2: memref<1x128xf32, #tpu.memory_space<vmem>>, %arg3: memref<1x128xf32, #tpu.memory_space<vmem>>, %arg4: memref<8x128xbf16, #tpu.memory_space<vmem>>, %arg5: memref<1x128xf32, #tpu.memory_space<vmem>>, %arg6: memref<1x128xf32, #tpu.memory_space<vmem>>, %arg7: memref<8x128xf32, #tpu.memory_space<vmem>>) attributes {dimension_semantics = [#tpu.dimension_semantics<parallel>], iteration_bounds = array<i64: 1>, scalar_prefetch = 0 : i64, scratch_operands = 0 : i64, tpu.core_type = #tpu.core_type<tc>, window_params = [{transform_indices = @transform_0, window_bounds = array<i64: 8, 128>}, {pipeline_mode = #tpu.pipeline_mode<synchronous>, transform_indices = @transform_1, window_bounds = array<i64: 1, 128>}, {pipeline_mode = #tpu.pipeline_mode<synchronous>, transform_indices = @transform_2, window_bounds = array<i64: 1, 128>}, {transform_indices = @transform_3, window_bounds = array<i64: 8, 128>}, {pipeline_mode = #tpu.pipeline_mode<synchronous>, transform_indices = @transform_4, window_bounds = array<i64: 1, 128>}, {pipeline_mode = #tpu.pipeline_mode<synchronous>, transform_indices = @transform_5, window_bounds = array<i64: 1, 128>}, {transform_indices = @transform_6, window_bounds = array<i64: 8, 128>}]} {
    %c0 = arith.constant 0 : index
    %c0_0 = arith.constant 0 : index
    %0 = vector.load %arg1[%c0, %c0_0] : memref<8x128xbf16, #tpu.memory_space<vmem>>, vector<8x128xbf16>
    %1 = arith.extf %0 : vector<8x128xbf16> to vector<8x128xf32>
    %c0_1 = arith.constant 0 : index
    %c0_2 = arith.constant 0 : index
    %2 = vector.load %arg4[%c0_1, %c0_2] : memref<8x128xbf16, #tpu.memory_space<vmem>>, vector<8x128xbf16>
    %3 = arith.extf %2 : vector<8x128xbf16> to vector<8x128xf32>
    %c0_3 = arith.constant 0 : index
    %c0_4 = arith.constant 0 : index
    %4 = vector.load %arg2[%c0_3, %c0_4] : memref<1x128xf32, #tpu.memory_space<vmem>>, vector<1x128xf32>
    %5 = vector.broadcast %4 : vector<1x128xf32> to vector<8x128xf32>
    %6 = arith.mulf %1, %5 : vector<8x128xf32>
    %c0_5 = arith.constant 0 : index
    %c0_6 = arith.constant 0 : index
    %7 = vector.load %arg3[%c0_5, %c0_6] : memref<1x128xf32, #tpu.memory_space<vmem>>, vector<1x128xf32>
    %8 = vector.broadcast %7 : vector<1x128xf32> to vector<8x128xf32>
    %9 = arith.addf %6, %8 : vector<8x128xf32>
    %c0_7 = arith.constant 0 : index
    %c0_8 = arith.constant 0 : index
    %10 = vector.load %arg5[%c0_7, %c0_8] : memref<1x128xf32, #tpu.memory_space<vmem>>, vector<1x128xf32>
    %11 = vector.broadcast %10 : vector<1x128xf32> to vector<8x128xf32>
    %12 = arith.mulf %3, %11 : vector<8x128xf32>
    %13 = arith.addf %9, %12 : vector<8x128xf32>
    %c0_9 = arith.constant 0 : index
    %c0_10 = arith.constant 0 : index
    %14 = vector.load %arg6[%c0_9, %c0_10] : memref<1x128xf32, #tpu.memory_space<vmem>>, vector<1x128xf32>
    %15 = vector.broadcast %14 : vector<1x128xf32> to vector<8x128xf32>
    %16 = arith.addf %13, %15 : vector<8x128xf32>
    %cst = arith.constant 0.000000e+00 : f32
    %17 = vector.broadcast %cst : f32 to vector<8x128xf32>
    %18 = arith.maximumf %16, %17 : vector<8x128xf32>
    %c0_11 = arith.constant 0 : index
    %c0_12 = arith.constant 0 : index
    %19 = vector.load %arg7[%c0_11, %c0_12] : memref<8x128xf32, #tpu.memory_space<vmem>>, vector<8x128xf32>
    tpu.vector_store %arg7[%c0_11, %c0_12], %18 {strides = array<i32>} : memref<8x128xf32, #tpu.memory_space<vmem>>, vector<8x128xf32>,
    return
  }
  func.func @transform_0(%arg0: i32) -> (i32, i32) {
    %c0_i32 = arith.constant 0 : i32
    %c0_i32_0 = arith.constant 0 : i32
    return %arg0, %c0_i32 : i32, i32
  }
  func.func @transform_1(%arg0: i32) -> (i32, i32) {
    %c0_i32 = arith.constant 0 : i32
    %c0_i32_0 = arith.constant 0 : i32
    %c0_i32_1 = arith.constant 0 : i32
    return %c0_i32, %c0_i32_0 : i32, i32
  }
  func.func @transform_2(%arg0: i32) -> (i32, i32) {
    %c0_i32 = arith.constant 0 : i32
    %c0_i32_0 = arith.constant 0 : i32
    %c0_i32_1 = arith.constant 0 : i32
    return %c0_i32, %c0_i32_0 : i32, i32
  }
  func.func @transform_3(%arg0: i32) -> (i32, i32) {
    %c0_i32 = arith.constant 0 : i32
    %c0_i32_0 = arith.constant 0 : i32
    return %arg0, %c0_i32 : i32, i32
  }
  func.func @transform_4(%arg0: i32) -> (i32, i32) {
    %c0_i32 = arith.constant 0 : i32
    %c0_i32_0 = arith.constant 0 : i32
    %c0_i32_1 = arith.constant 0 : i32
    return %c0_i32, %c0_i32_0 : i32, i32
  }
  func.func @transform_5(%arg0: i32) -> (i32, i32) {
    %c0_i32 = arith.constant 0 : i32
    %c0_i32_0 = arith.constant 0 : i32
    %c0_i32_1 = arith.constant 0 : i32
    return %c0_i32, %c0_i32_0 : i32, i32
  }
  func.func @transform_6(%arg0: i32) -> (i32, i32) {
    %c0_i32 = arith.constant 0 : i32
    %c0_i32_0 = arith.constant 0 : i32
    return %arg0, %c0_i32 : i32, i32
  }
}

module attributes {stable_mosaic.version = 11 : i64} {
  func.func @_conv_stats_kernel(%arg0: i32, %arg1: memref<1x10x10x8xbf16, #tpu.memory_space<vmem>>, %arg2: memref<9x8x8xbf16, #tpu.memory_space<vmem>>, %arg3: memref<1x64x8xbf16, #tpu.memory_space<vmem>>, %arg4: memref<1x2x8xf32, #tpu.memory_space<vmem>>) attributes {dimension_semantics = [#tpu.dimension_semantics<parallel>], iteration_bounds = array<i64: 2>, scalar_prefetch = 0 : i64, scratch_operands = 0 : i64, tpu.core_type = #tpu.core_type<tc>, window_params = [{transform_indices = @transform_0, window_bounds = array<i64: 1, 10, 10, 8>}, {pipeline_mode = #tpu.pipeline_mode<synchronous>, transform_indices = @transform_1, window_bounds = array<i64: 9, 8, 8>}, {transform_indices = @transform_2, window_bounds = array<i64: 1, 64, 8>}, {transform_indices = @transform_3, window_bounds = array<i64: 1, 2, 8>}]} {
    %cst = arith.constant 0.000000e+00 : f32
    %0 = vector.broadcast %cst : f32 to vector<64x8xf32>
    %c0 = arith.constant 0 : index
    %c0_0 = arith.constant 0 : index
    %c0_1 = arith.constant 0 : index
    %c0_2 = arith.constant 0 : index
    %1 = vector.load %arg1[%c0, %c0_0, %c0_1, %c0_2] : memref<1x10x10x8xbf16, #tpu.memory_space<vmem>>, vector<1x8x8x8xbf16>
    %2 = vector.shape_cast %1 : vector<1x8x8x8xbf16> to vector<8x8x8xbf16>
    %3 = vector.shape_cast %2 : vector<8x8x8xbf16> to vector<64x8xbf16>
    %c0_3 = arith.constant 0 : index
    %c0_4 = arith.constant 0 : index
    %c0_5 = arith.constant 0 : index
    %4 = vector.load %arg2[%c0_3, %c0_4, %c0_5] : memref<9x8x8xbf16, #tpu.memory_space<vmem>>, vector<1x8x8xbf16>
    %5 = vector.shape_cast %4 : vector<1x8x8xbf16> to vector<8x8xbf16>
    %cst_6 = arith.constant dense<0.000000e+00> : vector<64x8xf32>
    %6 = tpu.matmul %3, %5, %cst_6 {dimension_numbers = #tpu.dot_dimension_numbers<[1], [0], [0], [1], [0, 0, 1, 1], [], []>} : vector<64x8xbf16>, vector<8x8xbf16>, vector<64x8xf32> -> vector<64x8xf32>
    %7 = arith.addf %0, %6 : vector<64x8xf32>
    %c0_7 = arith.constant 0 : index
    %c0_8 = arith.constant 0 : index
    %c1 = arith.constant 1 : index
    %c0_9 = arith.constant 0 : index
    %8 = vector.load %arg1[%c0_7, %c0_8, %c1, %c0_9] : memref<1x10x10x8xbf16, #tpu.memory_space<vmem>>, vector<1x8x8x8xbf16>
    %9 = vector.shape_cast %8 : vector<1x8x8x8xbf16> to vector<8x8x8xbf16>
    %10 = vector.shape_cast %9 : vector<8x8x8xbf16> to vector<64x8xbf16>
    %c1_10 = arith.constant 1 : index
    %c0_11 = arith.constant 0 : index
    %c0_12 = arith.constant 0 : index
    %11 = vector.load %arg2[%c1_10, %c0_11, %c0_12] : memref<9x8x8xbf16, #tpu.memory_space<vmem>>, vector<1x8x8xbf16>
    %12 = vector.shape_cast %11 : vector<1x8x8xbf16> to vector<8x8xbf16>
    %cst_13 = arith.constant dense<0.000000e+00> : vector<64x8xf32>
    %13 = tpu.matmul %10, %12, %cst_13 {dimension_numbers = #tpu.dot_dimension_numbers<[1], [0], [0], [1], [0, 0, 1, 1], [], []>} : vector<64x8xbf16>, vector<8x8xbf16>, vector<64x8xf32> -> vector<64x8xf32>
    %14 = arith.addf %7, %13 : vector<64x8xf32>
    %c0_14 = arith.constant 0 : index
    %c0_15 = arith.constant 0 : index
    %c2 = arith.constant 2 : index
    %c0_16 = arith.constant 0 : index
    %15 = vector.load %arg1[%c0_14, %c0_15, %c2, %c0_16] : memref<1x10x10x8xbf16, #tpu.memory_space<vmem>>, vector<1x8x8x8xbf16>
    %16 = vector.shape_cast %15 : vector<1x8x8x8xbf16> to vector<8x8x8xbf16>
    %17 = vector.shape_cast %16 : vector<8x8x8xbf16> to vector<64x8xbf16>
    %c2_17 = arith.constant 2 : index
    %c0_18 = arith.constant 0 : index
    %c0_19 = arith.constant 0 : index
    %18 = vector.load %arg2[%c2_17, %c0_18, %c0_19] : memref<9x8x8xbf16, #tpu.memory_space<vmem>>, vector<1x8x8xbf16>
    %19 = vector.shape_cast %18 : vector<1x8x8xbf16> to vector<8x8xbf16>
    %cst_20 = arith.constant dense<0.000000e+00> : vector<64x8xf32>
    %20 = tpu.matmul %17, %19, %cst_20 {dimension_numbers = #tpu.dot_dimension_numbers<[1], [0], [0], [1], [0, 0, 1, 1], [], []>} : vector<64x8xbf16>, vector<8x8xbf16>, vector<64x8xf32> -> vector<64x8xf32>
    %21 = arith.addf %14, %20 : vector<64x8xf32>
    %c0_21 = arith.constant 0 : index
    %c1_22 = arith.constant 1 : index
    %c0_23 = arith.constant 0 : index
    %c0_24 = arith.constant 0 : index
    %22 = vector.load %arg1[%c0_21, %c1_22, %c0_23, %c0_24] : memref<1x10x10x8xbf16, #tpu.memory_space<vmem>>, vector<1x8x8x8xbf16>
    %23 = vector.shape_cast %22 : vector<1x8x8x8xbf16> to vector<8x8x8xbf16>
    %24 = vector.shape_cast %23 : vector<8x8x8xbf16> to vector<64x8xbf16>
    %c3 = arith.constant 3 : index
    %c0_25 = arith.constant 0 : index
    %c0_26 = arith.constant 0 : index
    %25 = vector.load %arg2[%c3, %c0_25, %c0_26] : memref<9x8x8xbf16, #tpu.memory_space<vmem>>, vector<1x8x8xbf16>
    %26 = vector.shape_cast %25 : vector<1x8x8xbf16> to vector<8x8xbf16>
    %cst_27 = arith.constant dense<0.000000e+00> : vector<64x8xf32>
    %27 = tpu.matmul %24, %26, %cst_27 {dimension_numbers = #tpu.dot_dimension_numbers<[1], [0], [0], [1], [0, 0, 1, 1], [], []>} : vector<64x8xbf16>, vector<8x8xbf16>, vector<64x8xf32> -> vector<64x8xf32>
    %28 = arith.addf %21, %27 : vector<64x8xf32>
    %c0_28 = arith.constant 0 : index
    %c1_29 = arith.constant 1 : index
    %c1_30 = arith.constant 1 : index
    %c0_31 = arith.constant 0 : index
    %29 = vector.load %arg1[%c0_28, %c1_29, %c1_30, %c0_31] : memref<1x10x10x8xbf16, #tpu.memory_space<vmem>>, vector<1x8x8x8xbf16>
    %30 = vector.shape_cast %29 : vector<1x8x8x8xbf16> to vector<8x8x8xbf16>
    %31 = vector.shape_cast %30 : vector<8x8x8xbf16> to vector<64x8xbf16>
    %c4 = arith.constant 4 : index
    %c0_32 = arith.constant 0 : index
    %c0_33 = arith.constant 0 : index
    %32 = vector.load %arg2[%c4, %c0_32, %c0_33] : memref<9x8x8xbf16, #tpu.memory_space<vmem>>, vector<1x8x8xbf16>
    %33 = vector.shape_cast %32 : vector<1x8x8xbf16> to vector<8x8xbf16>
    %cst_34 = arith.constant dense<0.000000e+00> : vector<64x8xf32>
    %34 = tpu.matmul %31, %33, %cst_34 {dimension_numbers = #tpu.dot_dimension_numbers<[1], [0], [0], [1], [0, 0, 1, 1], [], []>} : vector<64x8xbf16>, vector<8x8xbf16>, vector<64x8xf32> -> vector<64x8xf32>
    %35 = arith.addf %28, %34 : vector<64x8xf32>
    %c0_35 = arith.constant 0 : index
    %c1_36 = arith.constant 1 : index
    %c2_37 = arith.constant 2 : index
    %c0_38 = arith.constant 0 : index
    %36 = vector.load %arg1[%c0_35, %c1_36, %c2_37, %c0_38] : memref<1x10x10x8xbf16, #tpu.memory_space<vmem>>, vector<1x8x8x8xbf16>
    %37 = vector.shape_cast %36 : vector<1x8x8x8xbf16> to vector<8x8x8xbf16>
    %38 = vector.shape_cast %37 : vector<8x8x8xbf16> to vector<64x8xbf16>
    %c5 = arith.constant 5 : index
    %c0_39 = arith.constant 0 : index
    %c0_40 = arith.constant 0 : index
    %39 = vector.load %arg2[%c5, %c0_39, %c0_40] : memref<9x8x8xbf16, #tpu.memory_space<vmem>>, vector<1x8x8xbf16>
    %40 = vector.shape_cast %39 : vector<1x8x8xbf16> to vector<8x8xbf16>
    %cst_41 = arith.constant dense<0.000000e+00> : vector<64x8xf32>
    %41 = tpu.matmul %38, %40, %cst_41 {dimension_numbers = #tpu.dot_dimension_numbers<[1], [0], [0], [1], [0, 0, 1, 1], [], []>} : vector<64x8xbf16>, vector<8x8xbf16>, vector<64x8xf32> -> vector<64x8xf32>
    %42 = arith.addf %35, %41 : vector<64x8xf32>
    %c0_42 = arith.constant 0 : index
    %c2_43 = arith.constant 2 : index
    %c0_44 = arith.constant 0 : index
    %c0_45 = arith.constant 0 : index
    %43 = vector.load %arg1[%c0_42, %c2_43, %c0_44, %c0_45] : memref<1x10x10x8xbf16, #tpu.memory_space<vmem>>, vector<1x8x8x8xbf16>
    %44 = vector.shape_cast %43 : vector<1x8x8x8xbf16> to vector<8x8x8xbf16>
    %45 = vector.shape_cast %44 : vector<8x8x8xbf16> to vector<64x8xbf16>
    %c6 = arith.constant 6 : index
    %c0_46 = arith.constant 0 : index
    %c0_47 = arith.constant 0 : index
    %46 = vector.load %arg2[%c6, %c0_46, %c0_47] : memref<9x8x8xbf16, #tpu.memory_space<vmem>>, vector<1x8x8xbf16>
    %47 = vector.shape_cast %46 : vector<1x8x8xbf16> to vector<8x8xbf16>
    %cst_48 = arith.constant dense<0.000000e+00> : vector<64x8xf32>
    %48 = tpu.matmul %45, %47, %cst_48 {dimension_numbers = #tpu.dot_dimension_numbers<[1], [0], [0], [1], [0, 0, 1, 1], [], []>} : vector<64x8xbf16>, vector<8x8xbf16>, vector<64x8xf32> -> vector<64x8xf32>
    %49 = arith.addf %42, %48 : vector<64x8xf32>
    %c0_49 = arith.constant 0 : index
    %c2_50 = arith.constant 2 : index
    %c1_51 = arith.constant 1 : index
    %c0_52 = arith.constant 0 : index
    %50 = vector.load %arg1[%c0_49, %c2_50, %c1_51, %c0_52] : memref<1x10x10x8xbf16, #tpu.memory_space<vmem>>, vector<1x8x8x8xbf16>
    %51 = vector.shape_cast %50 : vector<1x8x8x8xbf16> to vector<8x8x8xbf16>
    %52 = vector.shape_cast %51 : vector<8x8x8xbf16> to vector<64x8xbf16>
    %c7 = arith.constant 7 : index
    %c0_53 = arith.constant 0 : index
    %c0_54 = arith.constant 0 : index
    %53 = vector.load %arg2[%c7, %c0_53, %c0_54] : memref<9x8x8xbf16, #tpu.memory_space<vmem>>, vector<1x8x8xbf16>
    %54 = vector.shape_cast %53 : vector<1x8x8xbf16> to vector<8x8xbf16>
    %cst_55 = arith.constant dense<0.000000e+00> : vector<64x8xf32>
    %55 = tpu.matmul %52, %54, %cst_55 {dimension_numbers = #tpu.dot_dimension_numbers<[1], [0], [0], [1], [0, 0, 1, 1], [], []>} : vector<64x8xbf16>, vector<8x8xbf16>, vector<64x8xf32> -> vector<64x8xf32>
    %56 = arith.addf %49, %55 : vector<64x8xf32>
    %c0_56 = arith.constant 0 : index
    %c2_57 = arith.constant 2 : index
    %c2_58 = arith.constant 2 : index
    %c0_59 = arith.constant 0 : index
    %57 = vector.load %arg1[%c0_56, %c2_57, %c2_58, %c0_59] : memref<1x10x10x8xbf16, #tpu.memory_space<vmem>>, vector<1x8x8x8xbf16>
    %58 = vector.shape_cast %57 : vector<1x8x8x8xbf16> to vector<8x8x8xbf16>
    %59 = vector.shape_cast %58 : vector<8x8x8xbf16> to vector<64x8xbf16>
    %c8 = arith.constant 8 : index
    %c0_60 = arith.constant 0 : index
    %c0_61 = arith.constant 0 : index
    %60 = vector.load %arg2[%c8, %c0_60, %c0_61] : memref<9x8x8xbf16, #tpu.memory_space<vmem>>, vector<1x8x8xbf16>
    %61 = vector.shape_cast %60 : vector<1x8x8xbf16> to vector<8x8xbf16>
    %cst_62 = arith.constant dense<0.000000e+00> : vector<64x8xf32>
    %62 = tpu.matmul %59, %61, %cst_62 {dimension_numbers = #tpu.dot_dimension_numbers<[1], [0], [0], [1], [0, 0, 1, 1], [], []>} : vector<64x8xbf16>, vector<8x8xbf16>, vector<64x8xf32> -> vector<64x8xf32>
    %63 = arith.addf %56, %62 : vector<64x8xf32>
    %64 = arith.truncf %63 : vector<64x8xf32> to vector<64x8xbf16>
    %c0_63 = arith.constant 0 : index
    %c0_64 = arith.constant 0 : index
    %c0_65 = arith.constant 0 : index
    %65 = vector.load %arg3[%c0_63, %c0_64, %c0_65] : memref<1x64x8xbf16, #tpu.memory_space<vmem>>, vector<1x64x8xbf16>
    %66 = vector.shape_cast %65 : vector<1x64x8xbf16> to vector<64x8xbf16>
    %67 = vector.shape_cast %64 : vector<64x8xbf16> to vector<1x64x8xbf16>
    tpu.vector_store %arg3[%c0_63, %c0_64, %c0_65], %67 {strides = array<i32>} : memref<1x64x8xbf16, #tpu.memory_space<vmem>>, vector<1x64x8xbf16>,
    %cst_66 = arith.constant dense<0.000000e+00> : vector<8xf32>
    %68 = vector.multi_reduction <add>, %63, %cst_66 [0] : vector<64x8xf32> to vector<8xf32>
    %69 = vector.shape_cast %68 : vector<8xf32> to vector<1x8xf32>
    %cst_67 = arith.constant 1.562500e-02 : f32
    %70 = vector.broadcast %cst_67 : f32 to vector<1x8xf32>
    %71 = arith.mulf %69, %70 : vector<1x8xf32>
    %72 = vector.broadcast %71 : vector<1x8xf32> to vector<64x8xf32>
    %73 = arith.subf %63, %72 : vector<64x8xf32>
    %74 = arith.mulf %73, %73 : vector<64x8xf32>
    %cst_68 = arith.constant dense<0.000000e+00> : vector<8xf32>
    %75 = vector.multi_reduction <add>, %74, %cst_68 [0] : vector<64x8xf32> to vector<8xf32>
    %76 = vector.shape_cast %75 : vector<8xf32> to vector<1x8xf32>
    %c0_69 = arith.constant 0 : index
    %c0_70 = arith.constant 0 : index
    %c0_71 = arith.constant 0 : index
    %77 = vector.load %arg4[%c0_69, %c0_70, %c0_71] : memref<1x2x8xf32, #tpu.memory_space<vmem>>, vector<1x1x8xf32>
    %78 = vector.shape_cast %77 : vector<1x1x8xf32> to vector<1x8xf32>
    %79 = vector.shape_cast %69 : vector<1x8xf32> to vector<1x1x8xf32>
    tpu.vector_store %arg4[%c0_69, %c0_70, %c0_71], %79 {strides = array<i32>} : memref<1x2x8xf32, #tpu.memory_space<vmem>>, vector<1x1x8xf32>,
    %c0_72 = arith.constant 0 : index
    %c1_73 = arith.constant 1 : index
    %c0_74 = arith.constant 0 : index
    %80 = vector.load %arg4[%c0_72, %c1_73, %c0_74] : memref<1x2x8xf32, #tpu.memory_space<vmem>>, vector<1x1x8xf32>
    %81 = vector.shape_cast %80 : vector<1x1x8xf32> to vector<1x8xf32>
    %82 = vector.shape_cast %76 : vector<1x8xf32> to vector<1x1x8xf32>
    tpu.vector_store %arg4[%c0_72, %c1_73, %c0_74], %82 {strides = array<i32>} : memref<1x2x8xf32, #tpu.memory_space<vmem>>, vector<1x1x8xf32>,
    return
  }
  func.func @transform_0(%arg0: i32) -> (i32, i32, i32, i32) {
    %c0_i32 = arith.constant 0 : i32
    %c0_i32_0 = arith.constant 0 : i32
    %c0_i32_1 = arith.constant 0 : i32
    %c0_i32_2 = arith.constant 0 : i32
    return %arg0, %c0_i32, %c0_i32_0, %c0_i32_1 : i32, i32, i32, i32
  }
  func.func @transform_1(%arg0: i32) -> (i32, i32, i32) {
    %c0_i32 = arith.constant 0 : i32
    %c0_i32_0 = arith.constant 0 : i32
    %c0_i32_1 = arith.constant 0 : i32
    %c0_i32_2 = arith.constant 0 : i32
    return %c0_i32, %c0_i32_0, %c0_i32_1 : i32, i32, i32
  }
  func.func @transform_2(%arg0: i32) -> (i32, i32, i32) {
    %c0_i32 = arith.constant 0 : i32
    %c0_i32_0 = arith.constant 0 : i32
    %c0_i32_1 = arith.constant 0 : i32
    return %arg0, %c0_i32, %c0_i32_0 : i32, i32, i32
  }
  func.func @transform_3(%arg0: i32) -> (i32, i32, i32) {
    %c0_i32 = arith.constant 0 : i32
    %c0_i32_0 = arith.constant 0 : i32
    %c0_i32_1 = arith.constant 0 : i32
    return %arg0, %c0_i32, %c0_i32_0 : i32, i32, i32
  }
}

</mosaic_0001>

<llo_original>
// kernel: basic_block_forward.8
$region0: #{basic_block_forward.8}
  #allocation0 [shape = 'u32[]', space=smem, size = 0x4, offset = 0x4, fixed_abs, tag = 'smem constant byte address 0x4 - core index']
  #allocation1 [shape = 'u32[144,128]{1,0:T(1,128)}', space=vmem, size = 0x12000, scoped, tag = 'internal scratch']
  %s0 = inlined_call_operand.vmem [shape: bf16[2,8,8,4], index: 0, kind: input, shape index: {}]
  %s1 = inlined_call_operand.vmem [shape: bf16[1,4,8], index: 1, kind: input, shape index: {}]
  %s2 = inlined_call_operand.vmem [shape: bf16[2,64,8], index: 2, kind: output, shape index: {0}]
  %s3 = inlined_call_operand.vmem [shape: f32[2,2,8], index: 3, kind: output, shape index: {1}]
  %4 = xla_tuple %s2, %s3
  %s5 = sld [smem:[#allocation0]]
  $region49: #{basic_block_forward.8} parent=0
    _
  %s7 = ssub.s32 1, %s5
  %s8 = scalar_select 0, %s7, %s5
  loop: start=0, step=1, limit=4
  $region2: #{basic_block_forward.8} parent=0 // loop_pre_header
    _
  $region3: #{basic_block_forward.8} parent=0 // loop_header
    %s10 = sphi 0, %s14
    %p11 = scmp.ge.s32.totalorder %s10, 4
    %s20 = sphi 0, %s22
    %s23 = sphi 0, %s20
    %s24 = sphi 0, %s23
    %s40 = sphi 0, %s24
    %s44 = sphi 0, %s44
    %s46 = sphi 0, %s44
    %s47 = sphi 0, %s46
    %s61 = sphi 0, %s47
    %s67 = sphi 0, %s69
    %s70 = sphi 0, %s67
    %s71 = sphi 0, %s70
    %s87 = sphi 0, %s71
    %s93 = sphi 0, %s95
    %s96 = sphi 0, %s93
    %s97 = sphi 0, %s96
    %s113 = sphi 0, %s97
  $region4: #{basic_block_forward.8} parent=0 // loop_header_branch
    %13 = sbr.rel (%p11) target = $region8
  $region5: #{basic_block_forward.8} parent=0 // loop_body
    %s15 = ssub.s32 %s10, 1
    %s16 = ssub.s32 %s10, 2
    %s17 = sadd.s32 %s10, 1
    %s18 = ssub.s32 %s10, %s17
    %p19 = scmp.eq.s32.totalorder %s18, 0
    %s21 = sadd.s32 %s20, 1
    %s22 = scalar_select %p19, %s20, %s21
    %p25 = pneg %p19
    %p26 = scmp.eq.s32.totalorder %s10, 1
    %p27 = por %p25, %p26
    %p28 = scmp.ne.s32.totalorder %s20, %s23
    %p29 = scmp.eq.s32.totalorder %s10, 0
    %p30 = por %p28, %p29
    %p31 = scmp.ne.s32.totalorder %s20, %s23
    %p32 = scmp.eq.s32.totalorder %s15, 1
    %p33 = por %p31, %p32
    %p34 = scmp.ne.s32.totalorder %s23, %s24
    %p35 = scmp.eq.s32.totalorder %s15, 0
    %p36 = por %p34, %p35
    %p37 = scmp.ne.s32.totalorder %s23, %s24
    %p38 = scmp.eq.s32.totalorder %s16, 1
    %p39 = por %p37, %p38
    %p41 = scmp.ne.s32.totalorder %s24, %s40
    %p42 = scmp.eq.s32.totalorder %s16, 0
    %p43 = por %p41, %p42
    %s45 = sadd.s32 %s44, 1
    %p48 = scmp.eq.s32.totalorder %s10, 1
    %p49 = scmp.ne.s32.totalorder %s44, %s46
    %p50 = scmp.eq.s32.totalorder %s10, 0
    %p51 = por %p49, %p50
    %p52 = scmp.ne.s32.totalorder %s44, %s46
    %p53 = scmp.eq.s32.totalorder %s15, 1
    %p54 = por %p52, %p53
    %p55 = scmp.ne.s32.totalorder %s46, %s47
    %p56 = scmp.eq.s32.totalorder %s15, 0
    %p57 = por %p55, %p56
    %p58 = scmp.ne.s32.totalorder %s46, %s47
    %p59 = scmp.eq.s32.totalorder %s16, 1
    %p60 = por %p58, %p59
    %p62 = scmp.ne.s32.totalorder %s47, %s61
    %p63 = scmp.eq.s32.totalorder %s16, 0
    %p64 = por %p62, %p63
    %s65 = ssub.s32 %s10, %s17
    %p66 = scmp.eq.s32.totalorder %s65, 0
    %s68 = sadd.s32 %s67, 1
    %s69 = scalar_select %p66, %s67, %s68
    %p72 = pneg %p66
    %p73 = scmp.eq.s32.totalorder %s10, 1
    %p74 = por %p72, %p73
    %p75 = scmp.ne.s32.totalorder %s67, %s70
    %p76 = scmp.eq.s32.totalorder %s10, 0
    %p77 = por %p75, %p76
    %p78 = scmp.ne.s32.totalorder %s67, %s70
    %p79 = scmp.eq.s32.totalorder %s15, 1
    %p80 = por %p78, %p79
    %p81 = scmp.ne.s32.totalorder %s70, %s71
    %p82 = scmp.eq.s32.totalorder %s15, 0
    %p83 = por %p81, %p82
    %p84 = scmp.ne.s32.totalorder %s70, %s71
    %p85 = scmp.eq.s32.totalorder %s16, 1
    %p86 = por %p84, %p85
    %p88 = scmp.ne.s32.totalorder %s71, %s87
    %p89 = scmp.eq.s32.totalorder %s16, 0
    %p90 = por %p88, %p89
    %s91 = ssub.s32 %s10, %s17
    %p92 = scmp.eq.s32.totalorder %s91, 0
    %s94 = sadd.s32 %s93, 1
    %s95 = scalar_select %p92, %s93, %s94
    %p98 = pneg %p92
    %p99 = scmp.eq.s32.totalorder %s10, 1
    %p100 = por %p98, %p99
    %p101 = scmp.ne.s32.totalorder %s93, %s96
    %p102 = scmp.eq.s32.totalorder %s10, 0
    %p103 = por %p101, %p102
    %p104 = scmp.ne.s32.totalorder %s93, %s96
    %p105 = scmp.eq.s32.totalorder %s15, 1
    %p106 = por %p104, %p105
    %p107 = scmp.ne.s32.totalorder %s96, %s97
    %p108 = scmp.eq.s32.totalorder %s15, 0
    %p109 = por %p107, %p108
    %p110 = scmp.ne.s32.totalorder %s96, %s97
    %p111 = scmp.eq.s32.totalorder %s16, 1
    %p112 = por %p110, %p111
    %p114 = scmp.ne.s32.totalorder %s97, %s113
    %p115 = scmp.eq.s32.totalorder %s16, 0
    %p116 = por %p114, %p115
    %p117 = scmp.le.s32.totalorder 1, %s10
    %p118 = scmp.lt.s32.totalorder %s10, 3
    %p119 = pnand %p117, %p118
    %p120 = pneg %p119
    // Predicated region
    $region9: #{basic_block_forward.8} parent=5 // pred_check
      _
    $region10: #{basic_block_forward.8} parent=5 // pred_check_branch
      %122 = sbr.rel (%p119) target = $region12
    $region11: #{basic_block_forward.8} parent=5 // pred_region
      %s123 = ssub.s32 %s10, 1
      // Predicated region
      $region13: #{basic_block_forward.8} parent=11 // pred_check
        %p124 = pneg %p57
      $region14: #{basic_block_forward.8} parent=11 // pred_check_branch
        %126 = sbr.rel (%p124) target = $region16
      $region15: #{basic_block_forward.8} parent=11 // pred_region
        _
      $region16: #{basic_block_forward.8} parent=11 // pred_fallthru
        _
    $region12: #{basic_block_forward.8} parent=5 // pred_fallthru
      _
    %p127 = scmp.lt.s32.totalorder %s10, 2
    // Predicated region
    $region17: #{basic_block_forward.8} parent=5 // pred_check
      %p128 = pneg %p127
    $region18: #{basic_block_forward.8} parent=5 // pred_check_branch
      %130 = sbr.rel (%p128) target = $region20
    $region19: #{basic_block_forward.8} parent=5 // pred_region
      // Predicated region
      $region21: #{basic_block_forward.8} parent=19 // pred_check
        %p131 = pneg %p30
      $region22: #{basic_block_forward.8} parent=19 // pred_check_branch
        %133 = sbr.rel (%p131) target = $region24
      $region23: #{basic_block_forward.8} parent=19 // pred_region
        %p134 = scmp.lt.s32.totalorder %s10, 1
        %s135 = scalar_select %p134, %s10, 1
        %s136 = smul.addr %s135, 8
        %s137 = smul.addr %s136, 4
        %s138 = scalar_lea.vmem %s0, %s137
      $region24: #{basic_block_forward.8} parent=19 // pred_fallthru
        _
    $region20: #{basic_block_forward.8} parent=5 // pred_fallthru
      _
    %p139 = scmp.le.s32.totalorder 1, %s10
    %p140 = scmp.lt.s32.totalorder %s10, 3
    %p141 = pnand %p139, %p140
    %p142 = pneg %p141
    // Predicated region
    $region25: #{basic_block_forward.8} parent=5 // pred_check
      _
    $region26: #{basic_block_forward.8} parent=5 // pred_check_branch
      %144 = sbr.rel (%p141) target = $region28
    $region27: #{basic_block_forward.8} parent=5 // pred_region
      %s145 = ssub.s32 %s10, 1
      %p146 = scmp.lt.s32.totalorder %s15, 1
      %s147 = scalar_select %p146, %s15, 1
      %s148 = smul.addr %s147, 8
      %s149 = smul.addr %s148, 4
      %s150 = scalar_lea.vmem %s0, %s149
      %p151 = pneg %p36
      %p152 = pneg %p33
      %p153 = pneg %p57
      %p154 = pneg %p54
      %p155 = pneg %p83
      %p156 = pneg %p80
      %p157 = scmp.lt.s32.totalorder %s15, 1
      %s158 = scalar_select %p157, %s15, 1
      %s159 = smul.addr %s158, 8
      %s160 = smul.addr %s159, 4
      %s161 = scalar_lea.vmem %s2, %s160
      %p162 = pneg %p109
      %p163 = pneg %p106
      %p164 = scmp.lt.s32.totalorder %s15, 1
      %s165 = scalar_select %p164, %s15, 1
      %s166 = smul.addr %s165, 2
      %s167 = scalar_lea.vmem %s3, %s166
      %p168 = scmp.lt.s32.totalorder %s15, 1
      %s169 = scalar_select %p168, %s15, 1
      %s170 = smul.addr %s169, 8
      %s171 = smul.addr %s170, 4
      %s172 = scalar_lea.vmem %s0, %s171
      %p173 = scmp.lt.s32.totalorder %s15, 1
      %s174 = scalar_select %p173, %s15, 1
      %s175 = smul.addr %s174, 8
      %s176 = smul.addr %s175, 4
      %s177 = scalar_lea.vmem %s2, %s176
      %p178 = scmp.lt.s32.totalorder %s15, 1
      %s179 = scalar_select %p178, %s15, 1
      %s180 = smul.addr %s179, 2
      %s181 = scalar_lea.vmem %s3, %s180
      %v183 = vld [vmem:[%s172] sm:$0xf]
      %v184 = vld [vmem:[%s172 + $0x4] sm:$0xf]
      %v185 = vld [vmem:[%s172 + $0x8] sm:$0xf]
      %v186 = vld [vmem:[%s172 + $0xc] sm:$0xf]
      %v187 = vld [vmem:[%s172 + $0x10] sm:$0xf]
      %v188 = vld [vmem:[%s172 + $0x14] sm:$0xf]
      %v189 = vld [vmem:[%s172 + $0x18] sm:$0xf]
      %v190 = vld [vmem:[%s172 + $0x1c] sm:$0xf]
      %v191 = vld [vmem:[%s1] sm:$0x3]
      %v200 = vunpack.c.l.b16 %v183
      %v201 = vunpack.c.l.b16 %v184
      %v202 = vunpack.c.l.b16 %v185
      %v203 = vunpack.c.l.b16 %v186
      %v204 = vunpack.c.l.b16 %v187
      %v205 = vunpack.c.l.b16 %v188
      %v206 = vunpack.c.l.b16 %v189
      %v207 = vunpack.c.l.b16 %v190
      %v208 = vpack.c.b16 %v201, %v200
      %v209 = vpack.c.b16 %v203, %v202
      %v210 = vpack.c.b16 %v205, %v204
      %v211 = vpack.c.b16 %v207, %v206
      %vm212 = vcmask 31744
      %v214 = vsel %vm212, %v208, 0
      %v217 = vsel %vm212, %v209, 0
      %v220 = vsel %vm212, %v210, 0
      %v223 = vsel %vm212, %v211, 0
      %vm225 = vcmask 1041408
      %v227 = vsel %vm225, %v191, 0
      %229 = vmatprep.subr.bf16.mxu0 0
      %230 = vmatpush1.bf16.msra.mxu0 %v227
      %231 = vmatprep.subr.bf16.mxu0 0
      %232 = vmatpush1.bf16.msra.mxu0 0
      %233 = vmatprep.subr.bf16.mxu0 0
      %234 = vmatpush1.bf16.msra.mxu0 0
      %235 = vmatprep.subr.bf16.mxu0 0
      %236 = vmatpush1.bf16.msra.mxu0 0
      %237 = vmatprep.subr.bf16.mxu0 0
      %238 = vmatpush1.bf16.msra.mxu0 0
      %239 = vmatprep.subr.bf16.mxu0 0
      %240 = vmatpush1.bf16.msra.mxu0 0
      %241 = vmatprep.subr.bf16.mxu0 0
      %242 = vmatpush1.bf16.msra.mxu0 0
      %243 = vmatprep.subr.bf16.mxu0 0
      %244 = vmatpush1.bf16.msra.mxu0 0
      %245 = vmatprep.subr.bf16.mxu0 0
      %246 = vmatpush1.bf16.msra.mxu0 0
      %247 = vmatprep.subr.bf16.mxu0 0
      %248 = vmatpush1.bf16.msra.mxu0 0
      %249 = vmatprep.subr.bf16.mxu0 0
      %250 = vmatpush1.bf16.msra.mxu0 0
      %251 = vmatprep.subr.bf16.mxu0 0
      %252 = vmatpush1.bf16.msra.mxu0 0
      %253 = vmatprep.subr.bf16.mxu0 0
      %254 = vmatpush1.bf16.msra.mxu0 0
      %255 = vmatprep.subr.bf16.mxu0 0
      %256 = vmatpush1.bf16.msra.mxu0 0
      %257 = vmatprep.subr.bf16.mxu0 0
      %258 = vmatpush1.bf16.msra.mxu0 0
      %259 = vmatprep.subr.bf16.mxu0 0
      %260 = vmatpush1.bf16.msra.mxu0 0
      %261 = vmatprep.mubr.bf16.mxu0 0
      %262 = vmatmul.mubr.bf16.gmra.mrb[0].mxu0 %v214
      %v263 = vpop.f32.mrb[0].mxu0
      %v264 = vadd.f32 0.0, %v263
      %v265 = vpop.f32.mrb[0].mxu0
      %v266 = vpop.f32.mrb[0].mxu0
      %v267 = vadd.f32 0.0, %v266
      %v268 = vpop.f32.mrb[0].mxu0
      %269 = vmatprep.mubr.bf16.mxu0 0
      %270 = vmatmul.mubr.bf16.gmra.mrb[0].mxu0 %v217
      %v271 = vpop.f32.mrb[0].mxu0
      %v272 = vadd.f32 0.0, %v271
      %v273 = vpop.f32.mrb[0].mxu0
      %v274 = vpop.f32.mrb[0].mxu0
      %v275 = vadd.f32 0.0, %v274
      %v276 = vpop.f32.mrb[0].mxu0
      %277 = vmatprep.mubr.bf16.mxu0 0
      %278 = vmatmul.mubr.bf16.gmra.mrb[0].mxu0 %v220
      %v279 = vpop.f32.mrb[0].mxu0
      %v280 = vadd.f32 0.0, %v279
      %v281 = vpop.f32.mrb[0].mxu0
      %v282 = vpop.f32.mrb[0].mxu0
      %v283 = vadd.f32 0.0, %v282
      %v284 = vpop.f32.mrb[0].mxu0
      %285 = vmatprep.mubr.bf16.mxu0 0
      %286 = vmatmul.mubr.bf16.gmra.mrb[0].mxu0 %v223
      %v287 = vpop.f32.mrb[0].mxu0
      %v288 = vadd.f32 0.0, %v287
      %v289 = vpop.f32.mrb[0].mxu0
      %v290 = vpop.f32.mrb[0].mxu0
      %v291 = vadd.f32 0.0, %v290
      %v292 = vpop.f32.mrb[0].mxu0
      %293 = vdwg.mxu0
      %v294 = vpack.c.bf16 %v267, %v264
      %v295 = vpack.c.bf16 %v275, %v272
      %v296 = vpack.c.bf16 %v283, %v280
      %v297 = vpack.c.bf16 %v291, %v288
      %v302 = vunpack.c.l.b16 %v294
      %v303 = vunpack.c.h.b16 %v294
      %v304 = vunpack.c.l.b16 %v295
      %v305 = vunpack.c.h.b16 %v295
      %v306 = vunpack.c.l.b16 %v296
      %v307 = vunpack.c.h.b16 %v296
      %v308 = vunpack.c.l.b16 %v297
      %v309 = vunpack.c.h.b16 %v297
      %v310 = vpack.c.b16 %v302, %v302
      %v311 = vpack.c.b16 %v303, %v303
      %v312 = vpack.c.b16 %v304, %v304
      %v313 = vpack.c.b16 %v305, %v305
      %v314 = vpack.c.b16 %v306, %v306
      %v315 = vpack.c.b16 %v307, %v307
      %v316 = vpack.c.b16 %v308, %v308
      %v317 = vpack.c.b16 %v309, %v309
      %vm326 = vcmask 60416
      %327 = vst.msk [vmem:[%s177] sm:$0xf] %vm326, %v310
      %328 = vst.msk [vmem:[%s177 + $0x4] sm:$0xf] %vm326, %v311
      %329 = vst.msk [vmem:[%s177 + $0x8] sm:$0xf] %vm326, %v312
      %330 = vst.msk [vmem:[%s177 + $0xc] sm:$0xf] %vm326, %v313
      %331 = vst.msk [vmem:[%s177 + $0x10] sm:$0xf] %vm326, %v314
      %332 = vst.msk [vmem:[%s177 + $0x14] sm:$0xf] %vm326, %v315
      %333 = vst.msk [vmem:[%s177 + $0x18] sm:$0xf] %vm326, %v316
      %334 = vst.msk [vmem:[%s177 + $0x1c] sm:$0xf] %vm326, %v317
      %vm335 = vcmask 64512
      %v336 = vsel %vm335, %v264, 0.0
      %v337 = vsel %vm335, %v267, 0.0
      %v338 = vadd.f32 %v336, %v337
      %v339 = vsel %vm335, %v272, 0.0
      %v340 = vadd.f32 %v338, %v339
      %v341 = vsel %vm335, %v275, 0.0
      %v342 = vadd.f32 %v340, %v341
      %v343 = vsel %vm335, %v280, 0.0
      %v344 = vadd.f32 %v342, %v343
      %v345 = vsel %vm335, %v283, 0.0
      %v346 = vadd.f32 %v344, %v345
      %v347 = vsel %vm335, %v288, 0.0
      %v348 = vadd.f32 %v346, %v347
      %v349 = vsel %vm335, %v291, 0.0
      %v350 = vadd.f32 %v348, %v349
      %v351 = vrot.slane %v350, 4
      %v352 = vadd.f32 %v350, %v351
      %v353 = vrot.slane %v352, 2
      %v354 = vadd.f32 %v352, %v353
      %v355 = vrot.slane %v354, 1
      %v356 = vadd.f32 %v354, %v355
      %v357 = vmul.f32 %v356, 0.015625
      %v358 = vsub.f32 %v264, %v357
      %v359 = vsub.f32 %v267, %v357
      %v360 = vsub.f32 %v272, %v357
      %v361 = vsub.f32 %v275, %v357
      %v362 = vsub.f32 %v280, %v357
      %v363 = vsub.f32 %v283, %v357
      %v364 = vsub.f32 %v288, %v357
      %v365 = vsub.f32 %v291, %v357
      %v366 = vmul.f32 %v358, %v358
      %v367 = vmul.f32 %v359, %v359
      %v368 = vmul.f32 %v360, %v360
      %v369 = vmul.f32 %v361, %v361
      %v370 = vmul.f32 %v362, %v362
      %v371 = vmul.f32 %v363, %v363
      %v372 = vmul.f32 %v364, %v364
      %v373 = vmul.f32 %v365, %v365
      %v374 = vsel %vm335, %v366, 0.0
      %v375 = vsel %vm335, %v367, 0.0
      %v376 = vadd.f32 %v374, %v375
      %v377 = vsel %vm335, %v368, 0.0
      %v378 = vadd.f32 %v376, %v377
      %v379 = vsel %vm335, %v369, 0.0
      %v380 = vadd.f32 %v378, %v379
      %v381 = vsel %vm335, %v370, 0.0
      %v382 = vadd.f32 %v380, %v381
      %v383 = vsel %vm335, %v371, 0.0
      %v384 = vadd.f32 %v382, %v383
      %v385 = vsel %vm335, %v372, 0.0
      %v386 = vadd.f32 %v384, %v385
      %v387 = vsel %vm335, %v373, 0.0
      %v388 = vadd.f32 %v386, %v387
      %v389 = vrot.slane %v388, 4
      %v390 = vadd.f32 %v388, %v389
      %v391 = vrot.slane %v390, 2
      %v392 = vadd.f32 %v390, %v391
      %v393 = vrot.slane %v392, 1
      %v394 = vadd.f32 %v392, %v393
      %vm395 = vcmask 57344
      %396 = vst.msk [vmem:[%s181] sm:$0x1] %vm395, %v356
      %397 = vst.msk [vmem:[%s181 + $0x1] sm:$0x1] %vm395, %v394
      %p398 = scmp.lt.s32.totalorder %s15, 1
      %s399 = scalar_select %p398, %s15, 1
      %s400 = smul.addr %s399, 8
      %s401 = smul.addr %s400, 4
      %s402 = scalar_lea.vmem %s2, %s401
      %p403 = scmp.lt.s32.totalorder %s15, 1
      %s404 = scalar_select %p403, %s15, 1
      %s405 = smul.addr %s404, 2
      %s406 = scalar_lea.vmem %s3, %s405
      // Predicated region
      $region29: #{basic_block_forward.8} parent=27 // pred_check
        %p407 = pneg %p80
      $region30: #{basic_block_forward.8} parent=27 // pred_check_branch
        %409 = sbr.rel (%p407) target = $region32
      $region31: #{basic_block_forward.8} parent=27 // pred_region
        _
      $region32: #{basic_block_forward.8} parent=27 // pred_fallthru
        _
      // Predicated region
      $region33: #{basic_block_forward.8} parent=27 // pred_check
        %p410 = pneg %p106
      $region34: #{basic_block_forward.8} parent=27 // pred_check_branch
        %412 = sbr.rel (%p410) target = $region36
      $region35: #{basic_block_forward.8} parent=27 // pred_region
        _
      $region36: #{basic_block_forward.8} parent=27 // pred_fallthru
        _
    $region28: #{basic_block_forward.8} parent=5 // pred_fallthru
      _
    %p413 = scmp.le.s32.totalorder 2, %s10
    // Predicated region
    $region37: #{basic_block_forward.8} parent=5 // pred_check
      %p414 = pneg %p413
    $region38: #{basic_block_forward.8} parent=5 // pred_check_branch
      %416 = sbr.rel (%p414) target = $region40
    $region39: #{basic_block_forward.8} parent=5 // pred_region
      %s417 = ssub.s32 %s10, 2
      // Predicated region
      $region41: #{basic_block_forward.8} parent=39 // pred_check
        %p418 = pneg %p86
      $region42: #{basic_block_forward.8} parent=39 // pred_check_branch
        %420 = sbr.rel (%p418) target = $region44
      $region43: #{basic_block_forward.8} parent=39 // pred_region
        %p421 = scmp.lt.s32.totalorder %s16, 1
        %s422 = scalar_select %p421, %s16, 1
        %s423 = smul.addr %s422, 8
        %s424 = smul.addr %s423, 4
        %s425 = scalar_lea.vmem %s2, %s424
      $region44: #{basic_block_forward.8} parent=39 // pred_fallthru
        _
      // Predicated region
      $region45: #{basic_block_forward.8} parent=39 // pred_check
        %p426 = pneg %p112
      $region46: #{basic_block_forward.8} parent=39 // pred_check_branch
        %428 = sbr.rel (%p426) target = $region48
      $region47: #{basic_block_forward.8} parent=39 // pred_region
        %p429 = scmp.lt.s32.totalorder %s16, 1
        %s430 = scalar_select %p429, %s16, 1
        %s431 = smul.addr %s430, 2
        %s432 = scalar_lea.vmem %s3, %s431
      $region48: #{basic_block_forward.8} parent=39 // pred_fallthru
        _
    $region40: #{basic_block_forward.8} parent=5 // pred_fallthru
      _
  $region6: #{basic_block_forward.8} parent=0 // loop_footer
    %s14 = sadd.s32 1, %s10
  $region7: #{basic_block_forward.8} parent=0 // loop_footer_branch
    %9 = sbr.rel target = $region3
  $region8: #{basic_block_forward.8} parent=0 // loop_exit
    _

// kernel: basic_block_forward.6
$region0: #{basic_block_forward.6}
  #allocation0 [shape = 'u32[]', space=smem, size = 0x4, offset = 0x4, fixed_abs, tag = 'smem constant byte address 0x4 - core index']
  #allocation1 [shape = 'u32[144,128]{1,0:T(1,128)}', space=vmem, size = 0x12000, scoped, tag = 'internal scratch']
  %s0 = inlined_call_operand.vmem [shape: bf16[8,128], index: 0, kind: input, shape index: {}]
  %s1 = inlined_call_operand.vmem [shape: f32[1,128], index: 1, kind: input, shape index: {}]
  %s2 = inlined_call_operand.vmem [shape: f32[1,128], index: 2, kind: input, shape index: {}]
  %s3 = inlined_call_operand.vmem [shape: bf16[8,128], index: 3, kind: output, shape index: {}]
  %s4 = sld [smem:[#allocation0]]
  $region22: #{basic_block_forward.6} parent=0
    _
  %s6 = ssub.s32 1, %s4
  %s7 = scalar_select 0, %s6, %s4
  // Predicated region
  $region2: #{basic_block_forward.6} parent=0 // pred_check
    _
  $region3: #{basic_block_forward.6} parent=0 // pred_check_branch
    %9 = sbr.rel (0) target = $region5
  $region4: #{basic_block_forward.6} parent=0 // pred_region
    _
  $region5: #{basic_block_forward.6} parent=0 // pred_fallthru
    _
  // Predicated region
  $region6: #{basic_block_forward.6} parent=0 // pred_check
    _
  $region7: #{basic_block_forward.6} parent=0 // pred_check_branch
    %11 = sbr.rel (0) target = $region9
  $region8: #{basic_block_forward.6} parent=0 // pred_region
    _
  $region9: #{basic_block_forward.6} parent=0 // pred_fallthru
    _
  // Predicated region
  $region10: #{basic_block_forward.6} parent=0 // pred_check
    _
  $region11: #{basic_block_forward.6} parent=0 // pred_check_branch
    %13 = sbr.rel (0) target = $region13
  $region12: #{basic_block_forward.6} parent=0 // pred_region
    _
  $region13: #{basic_block_forward.6} parent=0 // pred_fallthru
    _
  %v14 = vld [vmem:[%s0] sm:$0xf]
  %v15 = vunpack.c.l.bf16 %v14
  %v16 = vld [vmem:[%s1] sm:$0x1]
  %v18 = vlaneseq
  %v19 = vshrl.u32 %v18, 7
  %v20 = vsub.s32 0, %v19
  %v21 = vrot.slane %v16, %v20
  %v23 = vmul.f32 %v15, %v21
  %v24 = vld [vmem:[%s2] sm:$0x1]
  %v26 = vlaneseq
  %v27 = vshrl.u32 %v26, 7
  %v28 = vsub.s32 0, %v27
  %v29 = vrot.slane %v24, %v28
  %v31 = vadd.f32 %v23, %v29
  %v32 = vmax.f32 %v31, 0.0
  %v33 = vpack.c.bf16 %v32, %v32
  %34 = vst [vmem:[%s3] sm:$0xf] %v33
  // Predicated region
  $region14: #{basic_block_forward.6} parent=0 // pred_check
    _
  $region15: #{basic_block_forward.6} parent=0 // pred_check_branch
    %36 = sbr.rel (0) target = $region17
  $region16: #{basic_block_forward.6} parent=0 // pred_region
    _
  $region17: #{basic_block_forward.6} parent=0 // pred_fallthru
    _
  // Predicated region
  $region18: #{basic_block_forward.6} parent=0 // pred_check
    _
  $region19: #{basic_block_forward.6} parent=0 // pred_check_branch
    %38 = sbr.rel (0) target = $region21
  $region20: #{basic_block_forward.6} parent=0 // pred_region
    _
  $region21: #{basic_block_forward.6} parent=0 // pred_fallthru
    _

// kernel: basic_block_forward.5
$region0: #{basic_block_forward.5}
  #allocation0 [shape = 'u32[]', space=smem, size = 0x4, offset = 0x4, fixed_abs, tag = 'smem constant byte address 0x4 - core index']
  #allocation1 [shape = 'u32[144,128]{1,0:T(1,128)}', space=vmem, size = 0x12000, scoped, tag = 'internal scratch']
  %s0 = inlined_call_operand.vmem [shape: bf16[8,9,9,4], index: 0, kind: input, shape index: {}]
  %s1 = inlined_call_operand.vmem [shape: bf16[9,4,8], index: 1, kind: input, shape index: {}]
  %s2 = inlined_call_operand.vmem [shape: bf16[2,64,8], index: 2, kind: output, shape index: {0}]
  %s3 = inlined_call_operand.vmem [shape: f32[2,2,8], index: 3, kind: output, shape index: {1}]
  %4 = xla_tuple %s2, %s3
  %s5 = sld [smem:[#allocation0]]
  $region49: #{basic_block_forward.5} parent=0
    _
  %s7 = ssub.s32 1, %s5
  %s8 = scalar_select 0, %s7, %s5
  loop: start=0, step=1, limit=4
  $region2: #{basic_block_forward.5} parent=0 // loop_pre_header
    _
  $region3: #{basic_block_forward.5} parent=0 // loop_header
    %s10 = sphi 0, %s14
    %p11 = scmp.ge.s32.totalorder %s10, 4
    %s20 = sphi 0, %s22
    %s23 = sphi 0, %s20
    %s24 = sphi 0, %s23
    %s40 = sphi 0, %s24
    %s44 = sphi 0, %s44
    %s46 = sphi 0, %s44
    %s47 = sphi 0, %s46
    %s61 = sphi 0, %s47
    %s67 = sphi 0, %s69
    %s70 = sphi 0, %s67
    %s71 = sphi 0, %s70
    %s87 = sphi 0, %s71
    %s93 = sphi 0, %s95
    %s96 = sphi 0, %s93
    %s97 = sphi 0, %s96
    %s113 = sphi 0, %s97
  $region4: #{basic_block_forward.5} parent=0 // loop_header_branch
    %13 = sbr.rel (%p11) target = $region8
  $region5: #{basic_block_forward.5} parent=0 // loop_body
    %s15 = ssub.s32 %s10, 1
    %s16 = ssub.s32 %s10, 2
    %s17 = sadd.s32 %s10, 1
    %s18 = ssub.s32 %s10, %s17
    %p19 = scmp.eq.s32.totalorder %s18, 0
    %s21 = sadd.s32 %s20, 1
    %s22 = scalar_select %p19, %s20, %s21
    %p25 = pneg %p19
    %p26 = scmp.eq.s32.totalorder %s10, 1
    %p27 = por %p25, %p26
    %p28 = scmp.ne.s32.totalorder %s20, %s23
    %p29 = scmp.eq.s32.totalorder %s10, 0
    %p30 = por %p28, %p29
    %p31 = scmp.ne.s32.totalorder %s20, %s23
    %p32 = scmp.eq.s32.totalorder %s15, 1
    %p33 = por %p31, %p32
    %p34 = scmp.ne.s32.totalorder %s23, %s24
    %p35 = scmp.eq.s32.totalorder %s15, 0
    %p36 = por %p34, %p35
    %p37 = scmp.ne.s32.totalorder %s23, %s24
    %p38 = scmp.eq.s32.totalorder %s16, 1
    %p39 = por %p37, %p38
    %p41 = scmp.ne.s32.totalorder %s24, %s40
    %p42 = scmp.eq.s32.totalorder %s16, 0
    %p43 = por %p41, %p42
    %s45 = sadd.s32 %s44, 1
    %p48 = scmp.eq.s32.totalorder %s10, 1
    %p49 = scmp.ne.s32.totalorder %s44, %s46
    %p50 = scmp.eq.s32.totalorder %s10, 0
    %p51 = por %p49, %p50
    %p52 = scmp.ne.s32.totalorder %s44, %s46
    %p53 = scmp.eq.s32.totalorder %s15, 1
    %p54 = por %p52, %p53
    %p55 = scmp.ne.s32.totalorder %s46, %s47
    %p56 = scmp.eq.s32.totalorder %s15, 0
    %p57 = por %p55, %p56
    %p58 = scmp.ne.s32.totalorder %s46, %s47
    %p59 = scmp.eq.s32.totalorder %s16, 1
    %p60 = por %p58, %p59
    %p62 = scmp.ne.s32.totalorder %s47, %s61
    %p63 = scmp.eq.s32.totalorder %s16, 0
    %p64 = por %p62, %p63
    %s65 = ssub.s32 %s10, %s17
    %p66 = scmp.eq.s32.totalorder %s65, 0
    %s68 = sadd.s32 %s67, 1
    %s69 = scalar_select %p66, %s67, %s68
    %p72 = pneg %p66
    %p73 = scmp.eq.s32.totalorder %s10, 1
    %p74 = por %p72, %p73
    %p75 = scmp.ne.s32.totalorder %s67, %s70
    %p76 = scmp.eq.s32.totalorder %s10, 0
    %p77 = por %p75, %p76
    %p78 = scmp.ne.s32.totalorder %s67, %s70
    %p79 = scmp.eq.s32.totalorder %s15, 1
    %p80 = por %p78, %p79
    %p81 = scmp.ne.s32.totalorder %s70, %s71
    %p82 = scmp.eq.s32.totalorder %s15, 0
    %p83 = por %p81, %p82
    %p84 = scmp.ne.s32.totalorder %s70, %s71
    %p85 = scmp.eq.s32.totalorder %s16, 1
    %p86 = por %p84, %p85
    %p88 = scmp.ne.s32.totalorder %s71, %s87
    %p89 = scmp.eq.s32.totalorder %s16, 0
    %p90 = por %p88, %p89
    %s91 = ssub.s32 %s10, %s17
    %p92 = scmp.eq.s32.totalorder %s91, 0
    %s94 = sadd.s32 %s93, 1
    %s95 = scalar_select %p92, %s93, %s94
    %p98 = pneg %p92
    %p99 = scmp.eq.s32.totalorder %s10, 1
    %p100 = por %p98, %p99
    %p101 = scmp.ne.s32.totalorder %s93, %s96
    %p102 = scmp.eq.s32.totalorder %s10, 0
    %p103 = por %p101, %p102
    %p104 = scmp.ne.s32.totalorder %s93, %s96
    %p105 = scmp.eq.s32.totalorder %s15, 1
    %p106 = por %p104, %p105
    %p107 = scmp.ne.s32.totalorder %s96, %s97
    %p108 = scmp.eq.s32.totalorder %s15, 0
    %p109 = por %p107, %p108
    %p110 = scmp.ne.s32.totalorder %s96, %s97
    %p111 = scmp.eq.s32.totalorder %s16, 1
    %p112 = por %p110, %p111
    %p114 = scmp.ne.s32.totalorder %s97, %s113
    %p115 = scmp.eq.s32.totalorder %s16, 0
    %p116 = por %p114, %p115
    %p117 = scmp.le.s32.totalorder 1, %s10
    %p118 = scmp.lt.s32.totalorder %s10, 3
    %p119 = pnand %p117, %p118
    %p120 = pneg %p119
    // Predicated region
    $region9: #{basic_block_forward.5} parent=5 // pred_check
      _
    $region10: #{basic_block_forward.5} parent=5 // pred_check_branch
      %122 = sbr.rel (%p119) target = $region12
    $region11: #{basic_block_forward.5} parent=5 // pred_region
      %s123 = ssub.s32 %s10, 1
      // Predicated region
      $region13: #{basic_block_forward.5} parent=11 // pred_check
        %p124 = pneg %p57
      $region14: #{basic_block_forward.5} parent=11 // pred_check_branch
        %126 = sbr.rel (%p124) target = $region16
      $region15: #{basic_block_forward.5} parent=11 // pred_region
        _
      $region16: #{basic_block_forward.5} parent=11 // pred_fallthru
        _
    $region12: #{basic_block_forward.5} parent=5 // pred_fallthru
      _
    %p127 = scmp.lt.s32.totalorder %s10, 2
    // Predicated region
    $region17: #{basic_block_forward.5} parent=5 // pred_check
      %p128 = pneg %p127
    $region18: #{basic_block_forward.5} parent=5 // pred_check_branch
      %130 = sbr.rel (%p128) target = $region20
    $region19: #{basic_block_forward.5} parent=5 // pred_region
      // Predicated region
      $region21: #{basic_block_forward.5} parent=19 // pred_check
        %p131 = pneg %p30
      $region22: #{basic_block_forward.5} parent=19 // pred_check_branch
        %133 = sbr.rel (%p131) target = $region24
      $region23: #{basic_block_forward.5} parent=19 // pred_region
        %s134 = smul.u32 4, %s10
        %p135 = scmp.lt.s32.totalorder %s134, 7
        %s136 = scalar_select %p135, %s134, 7
        %s137 = smul.addr %s136, 18
        %s138 = smul.addr %s137, 4
        %s139 = scalar_lea.vmem %s0, %s138
        %s140 = smul.u32 4, %s10
      $region24: #{basic_block_forward.5} parent=19 // pred_fallthru
        _
    $region20: #{basic_block_forward.5} parent=5 // pred_fallthru
      _
    %p141 = scmp.le.s32.totalorder 1, %s10
    %p142 = scmp.lt.s32.totalorder %s10, 3
    %p143 = pnand %p141, %p142
    %p144 = pneg %p143
    // Predicated region
    $region25: #{basic_block_forward.5} parent=5 // pred_check
      _
    $region26: #{basic_block_forward.5} parent=5 // pred_check_branch
      %146 = sbr.rel (%p143) target = $region28
    $region27: #{basic_block_forward.5} parent=5 // pred_region
      %s147 = ssub.s32 %s10, 1
      %s148 = smul.u32 4, %s15
      %p149 = scmp.lt.s32.totalorder %s148, 7
      %s150 = scalar_select %p149, %s148, 7
      %s151 = smul.addr %s150, 18
      %s152 = smul.addr %s151, 4
      %s153 = scalar_lea.vmem %s0, %s152
      %p154 = pneg %p36
      %p155 = pneg %p33
      %p156 = pneg %p57
      %p157 = pneg %p54
      %p158 = pneg %p83
      %p159 = pneg %p80
      %p160 = scmp.lt.s32.totalorder %s15, 1
      %s161 = scalar_select %p160, %s15, 1
      %s162 = smul.addr %s161, 8
      %s163 = smul.addr %s162, 4
      %s164 = scalar_lea.vmem %s2, %s163
      %p165 = pneg %p109
      %p166 = pneg %p106
      %p167 = scmp.lt.s32.totalorder %s15, 1
      %s168 = scalar_select %p167, %s15, 1
      %s169 = smul.addr %s168, 2
      %s170 = scalar_lea.vmem %s3, %s169
      %s171 = smul.u32 4, %s15
      %p172 = scmp.lt.s32.totalorder %s171, 7
      %s173 = scalar_select %p172, %s171, 7
      %s174 = smul.addr %s173, 18
      %s175 = smul.addr %s174, 4
      %s176 = scalar_lea.vmem %s0, %s175
      %s177 = smul.u32 4, %s15
      %p178 = scmp.lt.s32.totalorder %s15, 1
      %s179 = scalar_select %p178, %s15, 1
      %s180 = smul.addr %s179, 8
      %s181 = smul.addr %s180, 4
      %s182 = scalar_lea.vmem %s2, %s181
      %p183 = scmp.lt.s32.totalorder %s15, 1
      %s184 = scalar_select %p183, %s15, 1
      %s185 = smul.addr %s184, 2
      %s186 = scalar_lea.vmem %s3, %s185
      %v188 = vld [vmem:[%s176] sm:$0xf]
      %v189 = vld [vmem:[%s176 + $0x8] sm:$0xf]
      %v190 = vld [vmem:[%s176 + $0x10] sm:$0xf]
      %v191 = vld [vmem:[%s176 + $0x18] sm:$0xf]
      %v192 = vld [vmem:[%s176 + $0x20] sm:$0xf]
      %v193 = vld [vmem:[%s176 + $0x28] sm:$0xf]
      %v194 = vld [vmem:[%s176 + $0x30] sm:$0xf]
      %v195 = vld [vmem:[%s176 + $0x38] sm:$0xf]
      %v196 = vld [vmem:[%s1] sm:$0x3]
      %s197 = scalar_lea.vmem %s176, 72
      %v198 = vld [vmem:[%s197] sm:$0xf]
      %v199 = vld [vmem:[%s197 + $0x8] sm:$0xf]
      %v200 = vld [vmem:[%s197 + $0x10] sm:$0xf]
      %v201 = vld [vmem:[%s197 + $0x18] sm:$0xf]
      %v202 = vld [vmem:[%s197 + $0x20] sm:$0xf]
      %v203 = vld [vmem:[%s197 + $0x28] sm:$0xf]
      %v204 = vld [vmem:[%s197 + $0x30] sm:$0xf]
      %v205 = vld [vmem:[%s197 + $0x38] sm:$0xf]
      %s206 = scalar_lea.vmem %s1, 2
      %v207 = vld [vmem:[%s206] sm:$0x3]
      %v216 = vunpack.c.l.b16 %v198
      %v217 = vunpack.c.l.b16 %v199
      %v218 = vunpack.c.l.b16 %v200
      %v219 = vunpack.c.l.b16 %v201
      %v220 = vunpack.c.l.b16 %v202
      %v221 = vunpack.c.l.b16 %v203
      %v222 = vunpack.c.l.b16 %v204
      %v223 = vunpack.c.l.b16 %v205
      %v224 = vpack.c.b16 %v217, %v216
      %v225 = vpack.c.b16 %v219, %v218
      %v226 = vpack.c.b16 %v221, %v220
      %v227 = vpack.c.b16 %v223, %v222
      %vm228 = vcmask 31744
      %v230 = vsel %vm228, %v224, 0
      %v233 = vsel %vm228, %v225, 0
      %v236 = vsel %vm228, %v226, 0
      %v239 = vsel %vm228, %v227, 0
      %vm241 = vcmask 1041408
      %v243 = vsel %vm241, %v207, 0
      %245 = vmatprep.subr.bf16.mxu0 0
      %246 = vmatpush1.bf16.msra.mxu0 %v243
      %247 = vmatprep.subr.bf16.mxu0 0
      %248 = vmatpush1.bf16.msra.mxu0 0
      %249 = vmatprep.subr.bf16.mxu0 0
      %250 = vmatpush1.bf16.msra.mxu0 0
      %251 = vmatprep.subr.bf16.mxu0 0
      %252 = vmatpush1.bf16.msra.mxu0 0
      %253 = vmatprep.subr.bf16.mxu0 0
      %254 = vmatpush1.bf16.msra.mxu0 0
      %255 = vmatprep.subr.bf16.mxu0 0
      %256 = vmatpush1.bf16.msra.mxu0 0
      %257 = vmatprep.subr.bf16.mxu0 0
      %258 = vmatpush1.bf16.msra.mxu0 0
      %259 = vmatprep.subr.bf16.mxu0 0
      %260 = vmatpush1.bf16.msra.mxu0 0
      %261 = vmatprep.subr.bf16.mxu0 0
      %262 = vmatpush1.bf16.msra.mxu0 0
      %263 = vmatprep.subr.bf16.mxu0 0
      %264 = vmatpush1.bf16.msra.mxu0 0
      %265 = vmatprep.subr.bf16.mxu0 0
      %266 = vmatpush1.bf16.msra.mxu0 0
      %267 = vmatprep.subr.bf16.mxu0 0
      %268 = vmatpush1.bf16.msra.mxu0 0
      %269 = vmatprep.subr.bf16.mxu0 0
      %270 = vmatpush1.bf16.msra.mxu0 0
      %271 = vmatprep.subr.bf16.mxu0 0
      %272 = vmatpush1.bf16.msra.mxu0 0
      %273 = vmatprep.subr.bf16.mxu0 0
      %274 = vmatpush1.bf16.msra.mxu0 0
      %275 = vmatprep.subr.bf16.mxu0 0
      %276 = vmatpush1.bf16.msra.mxu0 0
      %277 = vmatprep.mubr.bf16.mxu0 0
      %278 = vmatmul.mubr.bf16.gmra.mrb[0].mxu0 %v230
      %v279 = vpop.f32.mrb[0].mxu0
      %v280 = vadd.f32 0.0, %v279
      %v281 = vpop.f32.mrb[0].mxu0
      %v282 = vpop.f32.mrb[0].mxu0
      %v283 = vadd.f32 0.0, %v282
      %v284 = vpop.f32.mrb[0].mxu0
      %285 = vmatprep.mubr.bf16.mxu0 0
      %286 = vmatmul.mubr.bf16.gmra.mrb[0].mxu0 %v233
      %v287 = vpop.f32.mrb[0].mxu0
      %v288 = vadd.f32 0.0, %v287
      %v289 = vpop.f32.mrb[0].mxu0
      %v290 = vpop.f32.mrb[0].mxu0
      %v291 = vadd.f32 0.0, %v290
      %v292 = vpop.f32.mrb[0].mxu0
      %293 = vmatprep.mubr.bf16.mxu0 0
      %294 = vmatmul.mubr.bf16.gmra.mrb[0].mxu0 %v236
      %v295 = vpop.f32.mrb[0].mxu0
      %v296 = vadd.f32 0.0, %v295
      %v297 = vpop.f32.mrb[0].mxu0
      %v298 = vpop.f32.mrb[0].mxu0
      %v299 = vadd.f32 0.0, %v298
      %v300 = vpop.f32.mrb[0].mxu0
      %301 = vmatprep.mubr.bf16.mxu0 0
      %302 = vmatmul.mubr.bf16.gmra.mrb[0].mxu0 %v239
      %v303 = vpop.f32.mrb[0].mxu0
      %v304 = vadd.f32 0.0, %v303
      %v305 = vpop.f32.mrb[0].mxu0
      %v306 = vpop.f32.mrb[0].mxu0
      %v307 = vadd.f32 0.0, %v306
      %v308 = vpop.f32.mrb[0].mxu0
      %309 = vdwg.mxu0
      %v318 = vunpack.c.l.b16 %v188
      %v319 = vunpack.c.l.b16 %v189
      %v320 = vunpack.c.l.b16 %v190
      %v321 = vunpack.c.l.b16 %v191
      %v322 = vunpack.c.l.b16 %v192
      %v323 = vunpack.c.l.b16 %v193
      %v324 = vunpack.c.l.b16 %v194
      %v325 = vunpack.c.l.b16 %v195
      %v326 = vpack.c.b16 %v319, %v318
      %v327 = vpack.c.b16 %v321, %v320
      %v328 = vpack.c.b16 %v323, %v322
      %v329 = vpack.c.b16 %v325, %v324
      %v331 = vsel %vm228, %v326, 0
      %v334 = vsel %vm228, %v327, 0
      %v337 = vsel %vm228, %v328, 0
      %v340 = vsel %vm228, %v329, 0
      %v343 = vsel %vm241, %v196, 0
      %345 = vmatprep.subr.bf16.mxu0 0
      %346 = vmatpush1.bf16.msra.mxu0 %v343
      %347 = vmatprep.subr.bf16.mxu0 0
      %348 = vmatpush1.bf16.msra.mxu0 0
      %349 = vmatprep.subr.bf16.mxu0 0
      %350 = vmatpush1.bf16.msra.mxu0 0
      %351 = vmatprep.subr.bf16.mxu0 0
      %352 = vmatpush1.bf16.msra.mxu0 0
      %353 = vmatprep.subr.bf16.mxu0 0
      %354 = vmatpush1.bf16.msra.mxu0 0
      %355 = vmatprep.subr.bf16.mxu0 0
      %356 = vmatpush1.bf16.msra.mxu0 0
      %357 = vmatprep.subr.bf16.mxu0 0
      %358 = vmatpush1.bf16.msra.mxu0 0
      %359 = vmatprep.subr.bf16.mxu0 0
      %360 = vmatpush1.bf16.msra.mxu0 0
      %361 = vmatprep.subr.bf16.mxu0 0
      %362 = vmatpush1.bf16.msra.mxu0 0
      %363 = vmatprep.subr.bf16.mxu0 0
      %364 = vmatpush1.bf16.msra.mxu0 0
      %365 = vmatprep.subr.bf16.mxu0 0
      %366 = vmatpush1.bf16.msra.mxu0 0
      %367 = vmatprep.subr.bf16.mxu0 0
      %368 = vmatpush1.bf16.msra.mxu0 0
      %369 = vmatprep.subr.bf16.mxu0 0
      %370 = vmatpush1.bf16.msra.mxu0 0
      %371 = vmatprep.subr.bf16.mxu0 0
      %372 = vmatpush1.bf16.msra.mxu0 0
      %373 = vmatprep.subr.bf16.mxu0 0
      %374 = vmatpush1.bf16.msra.mxu0 0
      %375 = vmatprep.subr.bf16.mxu0 0
      %376 = vmatpush1.bf16.msra.mxu0 0
      %377 = vmatprep.mubr.bf16.mxu0 0
      %378 = vmatmul.mubr.bf16.gmra.mrb[0].mxu0 %v331
      %v379 = vpop.f32.mrb[0].mxu0
      %v380 = vadd.f32 %v280, %v379
      %v381 = vpop.f32.mrb[0].mxu0
      %v382 = vpop.f32.mrb[0].mxu0
      %v383 = vadd.f32 %v283, %v382
      %v384 = vpop.f32.mrb[0].mxu0
      %385 = vmatprep.mubr.bf16.mxu0 0
      %386 = vmatmul.mubr.bf16.gmra.mrb[0].mxu0 %v334
      %v387 = vpop.f32.mrb[0].mxu0
      %v388 = vadd.f32 %v288, %v387
      %v389 = vpop.f32.mrb[0].mxu0
      %v390 = vpop.f32.mrb[0].mxu0
      %v391 = vadd.f32 %v291, %v390
      %v392 = vpop.f32.mrb[0].mxu0
      %393 = vmatprep.mubr.bf16.mxu0 0
      %394 = vmatmul.mubr.bf16.gmra.mrb[0].mxu0 %v337
      %v395 = vpop.f32.mrb[0].mxu0
      %v396 = vadd.f32 %v296, %v395
      %v397 = vpop.f32.mrb[0].mxu0
      %v398 = vpop.f32.mrb[0].mxu0
      %v399 = vadd.f32 %v299, %v398
      %v400 = vpop.f32.mrb[0].mxu0
      %401 = vmatprep.mubr.bf16.mxu0 0
      %402 = vmatmul.mubr.bf16.gmra.mrb[0].mxu0 %v340
      %v403 = vpop.f32.mrb[0].mxu0
      %v404 = vadd.f32 %v304, %v403
      %v405 = vpop.f32.mrb[0].mxu0
      %v406 = vpop.f32.mrb[0].mxu0
      %v407 = vadd.f32 %v307, %v406
      %v408 = vpop.f32.mrb[0].mxu0
      %409 = vdwg.mxu0
      %v410 = vld [vmem:[%s176] sm:$0xf]
      %v411 = vld [vmem:[%s176 + $0x4] sm:$0x1]
      %v412 = vld [vmem:[%s176 + $0x8] sm:$0xf]
      %v413 = vld [vmem:[%s176 + $0xc] sm:$0x1]
      %v414 = vld [vmem:[%s176 + $0x10] sm:$0xf]
      %v415 = vld [vmem:[%s176 + $0x14] sm:$0x1]
      %v416 = vld [vmem:[%s176 + $0x18] sm:$0xf]
      %v417 = vld [vmem:[%s176 + $0x1c] sm:$0x1]
      %v418 = vld [vmem:[%s176 + $0x20] sm:$0xf]
      %v419 = vld [vmem:[%s176 + $0x24] sm:$0x1]
      %v420 = vld [vmem:[%s176 + $0x28] sm:$0xf]
      %v421 = vld [vmem:[%s176 + $0x2c] sm:$0x1]
      %v422 = vld [vmem:[%s176 + $0x30] sm:$0xf]
      %v423 = vld [vmem:[%s176 + $0x34] sm:$0x1]
      %v424 = vld [vmem:[%s176 + $0x38] sm:$0xf]
      %v425 = vld [vmem:[%s176 + $0x3c] sm:$0x1]
      %vm426 = vsmask.f32 3328
      %vm427 = vsmask.f32 7440
      %vm428 = vmor %vm426, %vm427
      %v430 = vshrl.u32 %v410, 16
      %v432 = vrot.slane %v430, 4
      %v433 = vshll.u32 %v410, 16
      %v435 = vrot.slane %v433, 5
      %v436 = vor.u32 %v432, %v435
      %v437 = vrot.slane %v436, 4
      %v439 = vshll.u32 %v411, 16
      %v441 = vrot.slane %v439, 5
      %v442 = vsel %vm428, %v437, %v441
      %v444 = vshrl.u32 %v412, 16
      %v446 = vrot.slane %v444, 4
      %v447 = vshll.u32 %v412, 16
      %v449 = vrot.slane %v447, 5
      %v450 = vor.u32 %v446, %v449
      %v451 = vrot.slane %v450, 4
      %v453 = vshll.u32 %v413, 16
      %v455 = vrot.slane %v453, 5
      %v456 = vsel %vm428, %v451, %v455
      %v458 = vshrl.u32 %v414, 16
      %v460 = vrot.slane %v458, 4
      %v461 = vshll.u32 %v414, 16
      %v463 = vrot.slane %v461, 5
      %v464 = vor.u32 %v460, %v463
      %v465 = vrot.slane %v464, 4
      %v467 = vshll.u32 %v415, 16
      %v469 = vrot.slane %v467, 5
      %v470 = vsel %vm428, %v465, %v469
      %v472 = vshrl.u32 %v416, 16
      %v474 = vrot.slane %v472, 4
      %v475 = vshll.u32 %v416, 16
      %v477 = vrot.slane %v475, 5
      %v478 = vor.u32 %v474, %v477
      %v479 = vrot.slane %v478, 4
      %v481 = vshll.u32 %v417, 16
      %v483 = vrot.slane %v481, 5
      %v484 = vsel %vm428, %v479, %v483
      %v486 = vshrl.u32 %v418, 16
      %v488 = vrot.slane %v486, 4
      %v489 = vshll.u32 %v418, 16
      %v491 = vrot.slane %v489, 5
      %v492 = vor.u32 %v488, %v491
      %v493 = vrot.slane %v492, 4
      %v495 = vshll.u32 %v419, 16
      %v497 = vrot.slane %v495, 5
      %v498 = vsel %vm428, %v493, %v497
      %v500 = vshrl.u32 %v420, 16
      %v502 = vrot.slane %v500, 4
      %v503 = vshll.u32 %v420, 16
      %v505 = vrot.slane %v503, 5
      %v506 = vor.u32 %v502, %v505
      %v507 = vrot.slane %v506, 4
      %v509 = vshll.u32 %v421, 16
      %v511 = vrot.slane %v509, 5
      %v512 = vsel %vm428, %v507, %v511
      %v514 = vshrl.u32 %v422, 16
      %v516 = vrot.slane %v514, 4
      %v517 = vshll.u32 %v422, 16
      %v519 = vrot.slane %v517, 5
      %v520 = vor.u32 %v516, %v519
      %v521 = vrot.slane %v520, 4
      %v523 = vshll.u32 %v423, 16
      %v525 = vrot.slane %v523, 5
      %v526 = vsel %vm428, %v521, %v525
      %v528 = vshrl.u32 %v424, 16
      %v530 = vrot.slane %v528, 4
      %v531 = vshll.u32 %v424, 16
      %v533 = vrot.slane %v531, 5
      %v534 = vor.u32 %v530, %v533
      %v535 = vrot.slane %v534, 4
      %v537 = vshll.u32 %v425, 16
      %v539 = vrot.slane %v537, 5
      %v540 = vsel %vm428, %v535, %v539
      %s541 = scalar_lea.vmem %s1, 4
      %v542 = vld [vmem:[%s541] sm:$0x3]
      %v543 = vunpack.c.l.b16 %v442
      %v544 = vunpack.c.l.b16 %v456
      %v545 = vunpack.c.l.b16 %v470
      %v546 = vunpack.c.l.b16 %v484
      %v547 = vunpack.c.l.b16 %v498
      %v548 = vunpack.c.l.b16 %v512
      %v549 = vunpack.c.l.b16 %v526
      %v550 = vunpack.c.l.b16 %v540
      %v551 = vpack.c.b16 %v544, %v543
      %v552 = vpack.c.b16 %v546, %v545
      %v553 = vpack.c.b16 %v548, %v547
      %v554 = vpack.c.b16 %v550, %v549
      %v556 = vsel %vm228, %v551, 0
      %v559 = vsel %vm228, %v552, 0
      %v562 = vsel %vm228, %v553, 0
      %v565 = vsel %vm228, %v554, 0
      %v568 = vsel %vm241, %v542, 0
      %570 = vmatprep.subr.bf16.mxu0 0
      %571 = vmatpush1.bf16.msra.mxu0 %v568
      %572 = vmatprep.subr.bf16.mxu0 0
      %573 = vmatpush1.bf16.msra.mxu0 0
      %574 = vmatprep.subr.bf16.mxu0 0
      %575 = vmatpush1.bf16.msra.mxu0 0
      %576 = vmatprep.subr.bf16.mxu0 0
      %577 = vmatpush1.bf16.msra.mxu0 0
      %578 = vmatprep.subr.bf16.mxu0 0
      %579 = vmatpush1.bf16.msra.mxu0 0
      %580 = vmatprep.subr.bf16.mxu0 0
      %581 = vmatpush1.bf16.msra.mxu0 0
      %582 = vmatprep.subr.bf16.mxu0 0
      %583 = vmatpush1.bf16.msra.mxu0 0
      %584 = vmatprep.subr.bf16.mxu0 0
      %585 = vmatpush1.bf16.msra.mxu0 0
      %586 = vmatprep.subr.bf16.mxu0 0
      %587 = vmatpush1.bf16.msra.mxu0 0
      %588 = vmatprep.subr.bf16.mxu0 0
      %589 = vmatpush1.bf16.msra.mxu0 0
      %590 = vmatprep.subr.bf16.mxu0 0
      %591 = vmatpush1.bf16.msra.mxu0 0
      %592 = vmatprep.subr.bf16.mxu0 0
      %593 = vmatpush1.bf16.msra.mxu0 0
      %594 = vmatprep.subr.bf16.mxu0 0
      %595 = vmatpush1.bf16.msra.mxu0 0
      %596 = vmatprep.subr.bf16.mxu0 0
      %597 = vmatpush1.bf16.msra.mxu0 0
      %598 = vmatprep.subr.bf16.mxu0 0
      %599 = vmatpush1.bf16.msra.mxu0 0
      %600 = vmatprep.subr.bf16.mxu0 0
      %601 = vmatpush1.bf16.msra.mxu0 0
      %602 = vmatprep.mubr.bf16.mxu0 0
      %603 = vmatmul.mubr.bf16.gmra.mrb[0].mxu0 %v556
      %v604 = vpop.f32.mrb[0].mxu0
      %v605 = vadd.f32 0.0, %v604
      %v606 = vpop.f32.mrb[0].mxu0
      %v607 = vpop.f32.mrb[0].mxu0
      %v608 = vadd.f32 0.0, %v607
      %v609 = vpop.f32.mrb[0].mxu0
      %610 = vmatprep.mubr.bf16.mxu0 0
      %611 = vmatmul.mubr.bf16.gmra.mrb[0].mxu0 %v559
      %v612 = vpop.f32.mrb[0].mxu0
      %v613 = vadd.f32 0.0, %v612
      %v614 = vpop.f32.mrb[0].mxu0
      %v615 = vpop.f32.mrb[0].mxu0
      %v616 = vadd.f32 0.0, %v615
      %v617 = vpop.f32.mrb[0].mxu0
      %618 = vmatprep.mubr.bf16.mxu0 0
      %619 = vmatmul.mubr.bf16.gmra.mrb[0].mxu0 %v562
      %v620 = vpop.f32.mrb[0].mxu0
      %v621 = vadd.f32 0.0, %v620
      %v622 = vpop.f32.mrb[0].mxu0
      %v623 = vpop.f32.mrb[0].mxu0
      %v624 = vadd.f32 0.0, %v623
      %v625 = vpop.f32.mrb[0].mxu0
      %626 = vmatprep.mubr.bf16.mxu0 0
      %627 = vmatmul.mubr.bf16.gmra.mrb[0].mxu0 %v565
      %v628 = vpop.f32.mrb[0].mxu0
      %v629 = vadd.f32 0.0, %v628
      %v630 = vpop.f32.mrb[0].mxu0
      %v631 = vpop.f32.mrb[0].mxu0
      %v632 = vadd.f32 0.0, %v631
      %v633 = vpop.f32.mrb[0].mxu0
      %634 = vdwg.mxu0
      %v635 = vadd.f32 %v380, %v605
      %v636 = vadd.f32 %v383, %v608
      %v637 = vadd.f32 %v388, %v613
      %v638 = vadd.f32 %v391, %v616
      %v639 = vadd.f32 %v396, %v621
      %v640 = vadd.f32 %v399, %v624
      %v641 = vadd.f32 %v404, %v629
      %v642 = vadd.f32 %v407, %v632
      %s643 = scalar_lea.vmem %s176, 144
      %v644 = vld [vmem:[%s643] sm:$0xf]
      %v645 = vld [vmem:[%s643 + $0x8] sm:$0xf]
      %v646 = vld [vmem:[%s643 + $0x10] sm:$0xf]
      %v647 = vld [vmem:[%s643 + $0x18] sm:$0xf]
      %v648 = vld [vmem:[%s643 + $0x20] sm:$0xf]
      %v649 = vld [vmem:[%s643 + $0x28] sm:$0xf]
      %v650 = vld [vmem:[%s643 + $0x30] sm:$0xf]
      %v651 = vld [vmem:[%s643 + $0x38] sm:$0xf]
      %s652 = scalar_lea.vmem %s1, 6
      %v653 = vld [vmem:[%s652] sm:$0x3]
      %v662 = vunpack.c.l.b16 %v644
      %v663 = vunpack.c.l.b16 %v645
      %v664 = vunpack.c.l.b16 %v646
      %v665 = vunpack.c.l.b16 %v647
      %v666 = vunpack.c.l.b16 %v648
      %v667 = vunpack.c.l.b16 %v649
      %v668 = vunpack.c.l.b16 %v650
      %v669 = vunpack.c.l.b16 %v651
      %v670 = vpack.c.b16 %v663, %v662
      %v671 = vpack.c.b16 %v665, %v664
      %v672 = vpack.c.b16 %v667, %v666
      %v673 = vpack.c.b16 %v669, %v668
      %v675 = vsel %vm228, %v670, 0
      %v678 = vsel %vm228, %v671, 0
      %v681 = vsel %vm228, %v672, 0
      %v684 = vsel %vm228, %v673, 0
      %v687 = vsel %vm241, %v653, 0
      %689 = vmatprep.subr.bf16.mxu0 0
      %690 = vmatpush1.bf16.msra.mxu0 %v687
      %691 = vmatprep.subr.bf16.mxu0 0
      %692 = vmatpush1.bf16.msra.mxu0 0
      %693 = vmatprep.subr.bf16.mxu0 0
      %694 = vmatpush1.bf16.msra.mxu0 0
      %695 = vmatprep.subr.bf16.mxu0 0
      %696 = vmatpush1.bf16.msra.mxu0 0
      %697 = vmatprep.subr.bf16.mxu0 0
      %698 = vmatpush1.bf16.msra.mxu0 0
      %699 = vmatprep.subr.bf16.mxu0 0
      %700 = vmatpush1.bf16.msra.mxu0 0
      %701 = vmatprep.subr.bf16.mxu0 0
      %702 = vmatpush1.bf16.msra.mxu0 0
      %703 = vmatprep.subr.bf16.mxu0 0
      %704 = vmatpush1.bf16.msra.mxu0 0
      %705 = vmatprep.subr.bf16.mxu0 0
      %706 = vmatpush1.bf16.msra.mxu0 0
      %707 = vmatprep.subr.bf16.mxu0 0
      %708 = vmatpush1.bf16.msra.mxu0 0
      %709 = vmatprep.subr.bf16.mxu0 0
      %710 = vmatpush1.bf16.msra.mxu0 0
      %711 = vmatprep.subr.bf16.mxu0 0
      %712 = vmatpush1.bf16.msra.mxu0 0
      %713 = vmatprep.subr.bf16.mxu0 0
      %714 = vmatpush1.bf16.msra.mxu0 0
      %715 = vmatprep.subr.bf16.mxu0 0
      %716 = vmatpush1.bf16.msra.mxu0 0
      %717 = vmatprep.subr.bf16.mxu0 0
      %718 = vmatpush1.bf16.msra.mxu0 0
      %719 = vmatprep.subr.bf16.mxu0 0
      %720 = vmatpush1.bf16.msra.mxu0 0
      %721 = vmatprep.mubr.bf16.mxu0 0
      %722 = vmatmul.mubr.bf16.gmra.mrb[0].mxu0 %v675
      %v723 = vpop.f32.mrb[0].mxu0
      %v724 = vadd.f32 0.0, %v723
      %v725 = vpop.f32.mrb[0].mxu0
      %v726 = vpop.f32.mrb[0].mxu0
      %v727 = vadd.f32 0.0, %v726
      %v728 = vpop.f32.mrb[0].mxu0
      %729 = vmatprep.mubr.bf16.mxu0 0
      %730 = vmatmul.mubr.bf16.gmra.mrb[0].mxu0 %v678
      %v731 = vpop.f32.mrb[0].mxu0
      %v732 = vadd.f32 0.0, %v731
      %v733 = vpop.f32.mrb[0].mxu0
      %v734 = vpop.f32.mrb[0].mxu0
      %v735 = vadd.f32 0.0, %v734
      %v736 = vpop.f32.mrb[0].mxu0
      %737 = vmatprep.mubr.bf16.mxu0 0
      %738 = vmatmul.mubr.bf16.gmra.mrb[0].mxu0 %v681
      %v739 = vpop.f32.mrb[0].mxu0
      %v740 = vadd.f32 0.0, %v739
      %v741 = vpop.f32.mrb[0].mxu0
      %v742 = vpop.f32.mrb[0].mxu0
      %v743 = vadd.f32 0.0, %v742
      %v744 = vpop.f32.mrb[0].mxu0
      %745 = vmatprep.mubr.bf16.mxu0 0
      %746 = vmatmul.mubr.bf16.gmra.mrb[0].mxu0 %v684
      %v747 = vpop.f32.mrb[0].mxu0
      %v748 = vadd.f32 0.0, %v747
      %v749 = vpop.f32.mrb[0].mxu0
      %v750 = vpop.f32.mrb[0].mxu0
      %v751 = vadd.f32 0.0, %v750
      %v752 = vpop.f32.mrb[0].mxu0
      %753 = vdwg.mxu0
      %v754 = vadd.f32 %v635, %v724
      %v755 = vadd.f32 %v636, %v727
      %v756 = vadd.f32 %v637, %v732
      %v757 = vadd.f32 %v638, %v735
      %v758 = vadd.f32 %v639, %v740
      %v759 = vadd.f32 %v640, %v743
      %v760 = vadd.f32 %v641, %v748
      %v761 = vadd.f32 %v642, %v751
      %s762 = scalar_lea.vmem %s176, 216
      %v763 = vld [vmem:[%s762] sm:$0xf]
      %v764 = vld [vmem:[%s762 + $0x8] sm:$0xf]
      %v765 = vld [vmem:[%s762 + $0x10] sm:$0xf]
      %v766 = vld [vmem:[%s762 + $0x18] sm:$0xf]
      %v767 = vld [vmem:[%s762 + $0x20] sm:$0xf]
      %v768 = vld [vmem:[%s762 + $0x28] sm:$0xf]
      %v769 = vld [vmem:[%s762 + $0x30] sm:$0xf]
      %v770 = vld [vmem:[%s762 + $0x38] sm:$0xf]
      %s771 = scalar_lea.vmem %s1, 8
      %v772 = vld [vmem:[%s771] sm:$0x3]
      %v781 = vunpack.c.l.b16 %v763
      %v782 = vunpack.c.l.b16 %v764
      %v783 = vunpack.c.l.b16 %v765
      %v784 = vunpack.c.l.b16 %v766
      %v785 = vunpack.c.l.b16 %v767
      %v786 = vunpack.c.l.b16 %v768
      %v787 = vunpack.c.l.b16 %v769
      %v788 = vunpack.c.l.b16 %v770
      %v789 = vpack.c.b16 %v782, %v781
      %v790 = vpack.c.b16 %v784, %v783
      %v791 = vpack.c.b16 %v786, %v785
      %v792 = vpack.c.b16 %v788, %v787
      %v794 = vsel %vm228, %v789, 0
      %v797 = vsel %vm228, %v790, 0
      %v800 = vsel %vm228, %v791, 0
      %v803 = vsel %vm228, %v792, 0
      %v806 = vsel %vm241, %v772, 0
      %808 = vmatprep.subr.bf16.mxu0 0
      %809 = vmatpush1.bf16.msra.mxu0 %v806
      %810 = vmatprep.subr.bf16.mxu0 0
      %811 = vmatpush1.bf16.msra.mxu0 0
      %812 = vmatprep.subr.bf16.mxu0 0
      %813 = vmatpush1.bf16.msra.mxu0 0
      %814 = vmatprep.subr.bf16.mxu0 0
      %815 = vmatpush1.bf16.msra.mxu0 0
      %816 = vmatprep.subr.bf16.mxu0 0
      %817 = vmatpush1.bf16.msra.mxu0 0
      %818 = vmatprep.subr.bf16.mxu0 0
      %819 = vmatpush1.bf16.msra.mxu0 0
      %820 = vmatprep.subr.bf16.mxu0 0
      %821 = vmatpush1.bf16.msra.mxu0 0
      %822 = vmatprep.subr.bf16.mxu0 0
      %823 = vmatpush1.bf16.msra.mxu0 0
      %824 = vmatprep.subr.bf16.mxu0 0
      %825 = vmatpush1.bf16.msra.mxu0 0
      %826 = vmatprep.subr.bf16.mxu0 0
      %827 = vmatpush1.bf16.msra.mxu0 0
      %828 = vmatprep.subr.bf16.mxu0 0
      %829 = vmatpush1.bf16.msra.mxu0 0
      %830 = vmatprep.subr.bf16.mxu0 0
      %831 = vmatpush1.bf16.msra.mxu0 0
      %832 = vmatprep.subr.bf16.mxu0 0
      %833 = vmatpush1.bf16.msra.mxu0 0
      %834 = vmatprep.subr.bf16.mxu0 0
      %835 = vmatpush1.bf16.msra.mxu0 0
      %836 = vmatprep.subr.bf16.mxu0 0
      %837 = vmatpush1.bf16.msra.mxu0 0
      %838 = vmatprep.subr.bf16.mxu0 0
      %839 = vmatpush1.bf16.msra.mxu0 0
      %840 = vmatprep.mubr.bf16.mxu0 0
      %841 = vmatmul.mubr.bf16.gmra.mrb[0].mxu0 %v794
      %v842 = vpop.f32.mrb[0].mxu0
      %v843 = vadd.f32 0.0, %v842
      %v844 = vpop.f32.mrb[0].mxu0
      %v845 = vpop.f32.mrb[0].mxu0
      %v846 = vadd.f32 0.0, %v845
      %v847 = vpop.f32.mrb[0].mxu0
      %848 = vmatprep.mubr.bf16.mxu0 0
      %849 = vmatmul.mubr.bf16.gmra.mrb[0].mxu0 %v797
      %v850 = vpop.f32.mrb[0].mxu0
      %v851 = vadd.f32 0.0, %v850
      %v852 = vpop.f32.mrb[0].mxu0
      %v853 = vpop.f32.mrb[0].mxu0
      %v854 = vadd.f32 0.0, %v853
      %v855 = vpop.f32.mrb[0].mxu0
      %856 = vmatprep.mubr.bf16.mxu0 0
      %857 = vmatmul.mubr.bf16.gmra.mrb[0].mxu0 %v800
      %v858 = vpop.f32.mrb[0].mxu0
      %v859 = vadd.f32 0.0, %v858
      %v860 = vpop.f32.mrb[0].mxu0
      %v861 = vpop.f32.mrb[0].mxu0
      %v862 = vadd.f32 0.0, %v861
      %v863 = vpop.f32.mrb[0].mxu0
      %864 = vmatprep.mubr.bf16.mxu0 0
      %865 = vmatmul.mubr.bf16.gmra.mrb[0].mxu0 %v803
      %v866 = vpop.f32.mrb[0].mxu0
      %v867 = vadd.f32 0.0, %v866
      %v868 = vpop.f32.mrb[0].mxu0
      %v869 = vpop.f32.mrb[0].mxu0
      %v870 = vadd.f32 0.0, %v869
      %v871 = vpop.f32.mrb[0].mxu0
      %872 = vdwg.mxu0
      %v873 = vadd.f32 %v754, %v843
      %v874 = vadd.f32 %v755, %v846
      %v875 = vadd.f32 %v756, %v851
      %v876 = vadd.f32 %v757, %v854
      %v877 = vadd.f32 %v758, %v859
      %v878 = vadd.f32 %v759, %v862
      %v879 = vadd.f32 %v760, %v867
      %v880 = vadd.f32 %v761, %v870
      %v881 = vld [vmem:[%s643] sm:$0xf]
      %v882 = vld [vmem:[%s643 + $0x4] sm:$0x1]
      %v883 = vld [vmem:[%s643 + $0x8] sm:$0xf]
      %v884 = vld [vmem:[%s643 + $0xc] sm:$0x1]
      %v885 = vld [vmem:[%s643 + $0x10] sm:$0xf]
      %v886 = vld [vmem:[%s643 + $0x14] sm:$0x1]
      %v887 = vld [vmem:[%s643 + $0x18] sm:$0xf]
      %v888 = vld [vmem:[%s643 + $0x1c] sm:$0x1]
      %v889 = vld [vmem:[%s643 + $0x20] sm:$0xf]
      %v890 = vld [vmem:[%s643 + $0x24] sm:$0x1]
      %v891 = vld [vmem:[%s643 + $0x28] sm:$0xf]
      %v892 = vld [vmem:[%s643 + $0x2c] sm:$0x1]
      %v893 = vld [vmem:[%s643 + $0x30] sm:$0xf]
      %v894 = vld [vmem:[%s643 + $0x34] sm:$0x1]
      %v895 = vld [vmem:[%s643 + $0x38] sm:$0xf]
      %v896 = vld [vmem:[%s643 + $0x3c] sm:$0x1]
      %v898 = vshrl.u32 %v881, 16
      %v900 = vrot.slane %v898, 4
      %v901 = vshll.u32 %v881, 16
      %v903 = vrot.slane %v901, 5
      %v904 = vor.u32 %v900, %v903
      %v905 = vrot.slane %v904, 4
      %v907 = vshll.u32 %v882, 16
      %v909 = vrot.slane %v907, 5
      %v910 = vsel %vm428, %v905, %v909
      %v912 = vshrl.u32 %v883, 16
      %v914 = vrot.slane %v912, 4
      %v915 = vshll.u32 %v883, 16
      %v917 = vrot.slane %v915, 5
      %v918 = vor.u32 %v914, %v917
      %v919 = vrot.slane %v918, 4
      %v921 = vshll.u32 %v884, 16
      %v923 = vrot.slane %v921, 5
      %v924 = vsel %vm428, %v919, %v923
      %v926 = vshrl.u32 %v885, 16
      %v928 = vrot.slane %v926, 4
      %v929 = vshll.u32 %v885, 16
      %v931 = vrot.slane %v929, 5
      %v932 = vor.u32 %v928, %v931
      %v933 = vrot.slane %v932, 4
      %v935 = vshll.u32 %v886, 16
      %v937 = vrot.slane %v935, 5
      %v938 = vsel %vm428, %v933, %v937
      %v940 = vshrl.u32 %v887, 16
      %v942 = vrot.slane %v940, 4
      %v943 = vshll.u32 %v887, 16
      %v945 = vrot.slane %v943, 5
      %v946 = vor.u32 %v942, %v945
      %v947 = vrot.slane %v946, 4
      %v949 = vshll.u32 %v888, 16
      %v951 = vrot.slane %v949, 5
      %v952 = vsel %vm428, %v947, %v951
      %v954 = vshrl.u32 %v889, 16
      %v956 = vrot.slane %v954, 4
      %v957 = vshll.u32 %v889, 16
      %v959 = vrot.slane %v957, 5
      %v960 = vor.u32 %v956, %v959
      %v961 = vrot.slane %v960, 4
      %v963 = vshll.u32 %v890, 16
      %v965 = vrot.slane %v963, 5
      %v966 = vsel %vm428, %v961, %v965
      %v968 = vshrl.u32 %v891, 16
      %v970 = vrot.slane %v968, 4
      %v971 = vshll.u32 %v891, 16
      %v973 = vrot.slane %v971, 5
      %v974 = vor.u32 %v970, %v973
      %v975 = vrot.slane %v974, 4
      %v977 = vshll.u32 %v892, 16
      %v979 = vrot.slane %v977, 5
      %v980 = vsel %vm428, %v975, %v979
      %v982 = vshrl.u32 %v893, 16
      %v984 = vrot.slane %v982, 4
      %v985 = vshll.u32 %v893, 16
      %v987 = vrot.slane %v985, 5
      %v988 = vor.u32 %v984, %v987
      %v989 = vrot.slane %v988, 4
      %v991 = vshll.u32 %v894, 16
      %v993 = vrot.slane %v991, 5
      %v994 = vsel %vm428, %v989, %v993
      %v996 = vshrl.u32 %v895, 16
      %v998 = vrot.slane %v996, 4
      %v999 = vshll.u32 %v895, 16
      %v1001 = vrot.slane %v999, 5
      %v1002 = vor.u32 %v998, %v1001
      %v1003 = vrot.slane %v1002, 4
      %v1005 = vshll.u32 %v896, 16
      %v1007 = vrot.slane %v1005, 5
      %v1008 = vsel %vm428, %v1003, %v1007
      %s1009 = scalar_lea.vmem %s1, 10
      %v1010 = vld [vmem:[%s1009] sm:$0x3]
      %v1011 = vunpack.c.l.b16 %v910
      %v1012 = vunpack.c.l.b16 %v924
      %v1013 = vunpack.c.l.b16 %v938
      %v1014 = vunpack.c.l.b16 %v952
      %v1015 = vunpack.c.l.b16 %v966
      %v1016 = vunpack.c.l.b16 %v980
      %v1017 = vunpack.c.l.b16 %v994
      %v1018 = vunpack.c.l.b16 %v1008
      %v1019 = vpack.c.b16 %v1012, %v1011
      %v1020 = vpack.c.b16 %v1014, %v1013
      %v1021 = vpack.c.b16 %v1016, %v1015
      %v1022 = vpack.c.b16 %v1018, %v1017
      %v1024 = vsel %vm228, %v1019, 0
      %v1027 = vsel %vm228, %v1020, 0
      %v1030 = vsel %vm228, %v1021, 0
      %v1033 = vsel %vm228, %v1022, 0
      %v1036 = vsel %vm241, %v1010, 0
      %1038 = vmatprep.subr.bf16.mxu0 0
      %1039 = vmatpush1.bf16.msra.mxu0 %v1036
      %1040 = vmatprep.subr.bf16.mxu0 0
      %1041 = vmatpush1.bf16.msra.mxu0 0
      %1042 = vmatprep.subr.bf16.mxu0 0
      %1043 = vmatpush1.bf16.msra.mxu0 0
      %1044 = vmatprep.subr.bf16.mxu0 0
      %1045 = vmatpush1.bf16.msra.mxu0 0
      %1046 = vmatprep.subr.bf16.mxu0 0
      %1047 = vmatpush1.bf16.msra.mxu0 0
      %1048 = vmatprep.subr.bf16.mxu0 0
      %1049 = vmatpush1.bf16.msra.mxu0 0
      %1050 = vmatprep.subr.bf16.mxu0 0
      %1051 = vmatpush1.bf16.msra.mxu0 0
      %1052 = vmatprep.subr.bf16.mxu0 0
      %1053 = vmatpush1.bf16.msra.mxu0 0
      %1054 = vmatprep.subr.bf16.mxu0 0
      %1055 = vmatpush1.bf16.msra.mxu0 0
      %1056 = vmatprep.subr.bf16.mxu0 0
      %1057 = vmatpush1.bf16.msra.mxu0 0
      %1058 = vmatprep.subr.bf16.mxu0 0
      %1059 = vmatpush1.bf16.msra.mxu0 0
      %1060 = vmatprep.subr.bf16.mxu0 0
      %1061 = vmatpush1.bf16.msra.mxu0 0
      %1062 = vmatprep.subr.bf16.mxu0 0
      %1063 = vmatpush1.bf16.msra.mxu0 0
      %1064 = vmatprep.subr.bf16.mxu0 0
      %1065 = vmatpush1.bf16.msra.mxu0 0
      %1066 = vmatprep.subr.bf16.mxu0 0
      %1067 = vmatpush1.bf16.msra.mxu0 0
      %1068 = vmatprep.subr.bf16.mxu0 0
      %1069 = vmatpush1.bf16.msra.mxu0 0
      %1070 = vmatprep.mubr.bf16.mxu0 0
      %1071 = vmatmul.mubr.bf16.gmra.mrb[0].mxu0 %v1024
      %v1072 = vpop.f32.mrb[0].mxu0
      %v1073 = vadd.f32 0.0, %v1072
      %v1074 = vpop.f32.mrb[0].mxu0
      %v1075 = vpop.f32.mrb[0].mxu0
      %v1076 = vadd.f32 0.0, %v1075
      %v1077 = vpop.f32.mrb[0].mxu0
      %1078 = vmatprep.mubr.bf16.mxu0 0
      %1079 = vmatmul.mubr.bf16.gmra.mrb[0].mxu0 %v1027
      %v1080 = vpop.f32.mrb[0].mxu0
      %v1081 = vadd.f32 0.0, %v1080
      %v1082 = vpop.f32.mrb[0].mxu0
      %v1083 = vpop.f32.mrb[0].mxu0
      %v1084 = vadd.f32 0.0, %v1083
      %v1085 = vpop.f32.mrb[0].mxu0
      %1086 = vmatprep.mubr.bf16.mxu0 0
      %1087 = vmatmul.mubr.bf16.gmra.mrb[0].mxu0 %v1030
      %v1088 = vpop.f32.mrb[0].mxu0
      %v1089 = vadd.f32 0.0, %v1088
      %v1090 = vpop.f32.mrb[0].mxu0
      %v1091 = vpop.f32.mrb[0].mxu0
      %v1092 = vadd.f32 0.0, %v1091
      %v1093 = vpop.f32.mrb[0].mxu0
      %1094 = vmatprep.mubr.bf16.mxu0 0
      %1095 = vmatmul.mubr.bf16.gmra.mrb[0].mxu0 %v1033
      %v1096 = vpop.f32.mrb[0].mxu0
      %v1097 = vadd.f32 0.0, %v1096
      %v1098 = vpop.f32.mrb[0].mxu0
      %v1099 = vpop.f32.mrb[0].mxu0
      %v1100 = vadd.f32 0.0, %v1099
      %v1101 = vpop.f32.mrb[0].mxu0
      %1102 = vdwg.mxu0
      %v1103 = vadd.f32 %v873, %v1073
      %v1104 = vadd.f32 %v874, %v1076
      %v1105 = vadd.f32 %v875, %v1081
      %v1106 = vadd.f32 %v876, %v1084
      %v1107 = vadd.f32 %v877, %v1089
      %v1108 = vadd.f32 %v878, %v1092
      %v1109 = vadd.f32 %v879, %v1097
      %v1110 = vadd.f32 %v880, %v1100
      %s1111 = scalar_lea.vmem %s176, 8
      %v1112 = vld [vmem:[%s1111] sm:$0xf]
      %v1113 = vld [vmem:[%s1111 + $0x8] sm:$0xf]
      %v1114 = vld [vmem:[%s1111 + $0x10] sm:$0xf]
      %v1115 = vld [vmem:[%s1111 + $0x18] sm:$0xf]
      %v1116 = vld [vmem:[%s1111 + $0x20] sm:$0xf]
      %v1117 = vld [vmem:[%s1111 + $0x28] sm:$0xf]
      %v1118 = vld [vmem:[%s1111 + $0x30] sm:$0xf]
      %v1119 = vld [vmem:[%s1111 + $0x38] sm:$0xf]
      %s1120 = scalar_lea.vmem %s1, 12
      %v1121 = vld [vmem:[%s1120] sm:$0x3]
      %v1130 = vunpack.c.l.b16 %v1112
      %v1131 = vunpack.c.l.b16 %v1113
      %v1132 = vunpack.c.l.b16 %v1114
      %v1133 = vunpack.c.l.b16 %v1115
      %v1134 = vunpack.c.l.b16 %v1116
      %v1135 = vunpack.c.l.b16 %v1117
      %v1136 = vunpack.c.l.b16 %v1118
      %v1137 = vunpack.c.l.b16 %v1119
      %v1138 = vpack.c.b16 %v1131, %v1130
      %v1139 = vpack.c.b16 %v1133, %v1132
      %v1140 = vpack.c.b16 %v1135, %v1134
      %v1141 = vpack.c.b16 %v1137, %v1136
      %v1143 = vsel %vm228, %v1138, 0
      %v1146 = vsel %vm228, %v1139, 0
      %v1149 = vsel %vm228, %v1140, 0
      %v1152 = vsel %vm228, %v1141, 0
      %v1155 = vsel %vm241, %v1121, 0
      %1157 = vmatprep.subr.bf16.mxu0 0
      %1158 = vmatpush1.bf16.msra.mxu0 %v1155
      %1159 = vmatprep.subr.bf16.mxu0 0
      %1160 = vmatpush1.bf16.msra.mxu0 0
      %1161 = vmatprep.subr.bf16.mxu0 0
      %1162 = vmatpush1.bf16.msra.mxu0 0
      %1163 = vmatprep.subr.bf16.mxu0 0
      %1164 = vmatpush1.bf16.msra.mxu0 0
      %1165 = vmatprep.subr.bf16.mxu0 0
      %1166 = vmatpush1.bf16.msra.mxu0 0
      %1167 = vmatprep.subr.bf16.mxu0 0
      %1168 = vmatpush1.bf16.msra.mxu0 0
      %1169 = vmatprep.subr.bf16.mxu0 0
      %1170 = vmatpush1.bf16.msra.mxu0 0
      %1171 = vmatprep.subr.bf16.mxu0 0
      %1172 = vmatpush1.bf16.msra.mxu0 0
      %1173 = vmatprep.subr.bf16.mxu0 0
      %1174 = vmatpush1.bf16.msra.mxu0 0
      %1175 = vmatprep.subr.bf16.mxu0 0
      %1176 = vmatpush1.bf16.msra.mxu0 0
      %1177 = vmatprep.subr.bf16.mxu0 0
      %1178 = vmatpush1.bf16.msra.mxu0 0
      %1179 = vmatprep.subr.bf16.mxu0 0
      %1180 = vmatpush1.bf16.msra.mxu0 0
      %1181 = vmatprep.subr.bf16.mxu0 0
      %1182 = vmatpush1.bf16.msra.mxu0 0
      %1183 = vmatprep.subr.bf16.mxu0 0
      %1184 = vmatpush1.bf16.msra.mxu0 0
      %1185 = vmatprep.subr.bf16.mxu0 0
      %1186 = vmatpush1.bf16.msra.mxu0 0
      %1187 = vmatprep.subr.bf16.mxu0 0
      %1188 = vmatpush1.bf16.msra.mxu0 0
      %1189 = vmatprep.mubr.bf16.mxu0 0
      %1190 = vmatmul.mubr.bf16.gmra.mrb[0].mxu0 %v1143
      %v1191 = vpop.f32.mrb[0].mxu0
      %v1192 = vadd.f32 0.0, %v1191
      %v1193 = vpop.f32.mrb[0].mxu0
      %v1194 = vpop.f32.mrb[0].mxu0
      %v1195 = vadd.f32 0.0, %v1194
      %v1196 = vpop.f32.mrb[0].mxu0
      %1197 = vmatprep.mubr.bf16.mxu0 0
      %1198 = vmatmul.mubr.bf16.gmra.mrb[0].mxu0 %v1146
      %v1199 = vpop.f32.mrb[0].mxu0
      %v1200 = vadd.f32 0.0, %v1199
      %v1201 = vpop.f32.mrb[0].mxu0
      %v1202 = vpop.f32.mrb[0].mxu0
      %v1203 = vadd.f32 0.0, %v1202
      %v1204 = vpop.f32.mrb[0].mxu0
      %1205 = vmatprep.mubr.bf16.mxu0 0
      %1206 = vmatmul.mubr.bf16.gmra.mrb[0].mxu0 %v1149
      %v1207 = vpop.f32.mrb[0].mxu0
      %v1208 = vadd.f32 0.0, %v1207
      %v1209 = vpop.f32.mrb[0].mxu0
      %v1210 = vpop.f32.mrb[0].mxu0
      %v1211 = vadd.f32 0.0, %v1210
      %v1212 = vpop.f32.mrb[0].mxu0
      %1213 = vmatprep.mubr.bf16.mxu0 0
      %1214 = vmatmul.mubr.bf16.gmra.mrb[0].mxu0 %v1152
      %v1215 = vpop.f32.mrb[0].mxu0
      %v1216 = vadd.f32 0.0, %v1215
      %v1217 = vpop.f32.mrb[0].mxu0
      %v1218 = vpop.f32.mrb[0].mxu0
      %v1219 = vadd.f32 0.0, %v1218
      %v1220 = vpop.f32.mrb[0].mxu0
      %1221 = vdwg.mxu0
      %v1222 = vadd.f32 %v1103, %v1192
      %v1223 = vadd.f32 %v1104, %v1195
      %v1224 = vadd.f32 %v1105, %v1200
      %v1225 = vadd.f32 %v1106, %v1203
      %v1226 = vadd.f32 %v1107, %v1208
      %v1227 = vadd.f32 %v1108, %v1211
      %v1228 = vadd.f32 %v1109, %v1216
      %v1229 = vadd.f32 %v1110, %v1219
      %s1230 = scalar_lea.vmem %s176, 80
      %v1231 = vld [vmem:[%s1230] sm:$0xf]
      %v1232 = vld [vmem:[%s1230 + $0x8] sm:$0xf]
      %v1233 = vld [vmem:[%s1230 + $0x10] sm:$0xf]
      %v1234 = vld [vmem:[%s1230 + $0x18] sm:$0xf]
      %v1235 = vld [vmem:[%s1230 + $0x20] sm:$0xf]
      %v1236 = vld [vmem:[%s1230 + $0x28] sm:$0xf]
      %v1237 = vld [vmem:[%s1230 + $0x30] sm:$0xf]
      %v1238 = vld [vmem:[%s1230 + $0x38] sm:$0xf]
      %s1239 = scalar_lea.vmem %s1, 14
      %v1240 = vld [vmem:[%s1239] sm:$0x3]
      %v1249 = vunpack.c.l.b16 %v1231
      %v1250 = vunpack.c.l.b16 %v1232
      %v1251 = vunpack.c.l.b16 %v1233
      %v1252 = vunpack.c.l.b16 %v1234
      %v1253 = vunpack.c.l.b16 %v1235
      %v1254 = vunpack.c.l.b16 %v1236
      %v1255 = vunpack.c.l.b16 %v1237
      %v1256 = vunpack.c.l.b16 %v1238
      %v1257 = vpack.c.b16 %v1250, %v1249
      %v1258 = vpack.c.b16 %v1252, %v1251
      %v1259 = vpack.c.b16 %v1254, %v1253
      %v1260 = vpack.c.b16 %v1256, %v1255
      %v1262 = vsel %vm228, %v1257, 0
      %v1265 = vsel %vm228, %v1258, 0
      %v1268 = vsel %vm228, %v1259, 0
      %v1271 = vsel %vm228, %v1260, 0
      %v1274 = vsel %vm241, %v1240, 0
      %1276 = vmatprep.subr.bf16.mxu0 0
      %1277 = vmatpush1.bf16.msra.mxu0 %v1274
      %1278 = vmatprep.subr.bf16.mxu0 0
      %1279 = vmatpush1.bf16.msra.mxu0 0
      %1280 = vmatprep.subr.bf16.mxu0 0
      %1281 = vmatpush1.bf16.msra.mxu0 0
      %1282 = vmatprep.subr.bf16.mxu0 0
      %1283 = vmatpush1.bf16.msra.mxu0 0
      %1284 = vmatprep.subr.bf16.mxu0 0
      %1285 = vmatpush1.bf16.msra.mxu0 0
      %1286 = vmatprep.subr.bf16.mxu0 0
      %1287 = vmatpush1.bf16.msra.mxu0 0
      %1288 = vmatprep.subr.bf16.mxu0 0
      %1289 = vmatpush1.bf16.msra.mxu0 0
      %1290 = vmatprep.subr.bf16.mxu0 0
      %1291 = vmatpush1.bf16.msra.mxu0 0
      %1292 = vmatprep.subr.bf16.mxu0 0
      %1293 = vmatpush1.bf16.msra.mxu0 0
      %1294 = vmatprep.subr.bf16.mxu0 0
      %1295 = vmatpush1.bf16.msra.mxu0 0
      %1296 = vmatprep.subr.bf16.mxu0 0
      %1297 = vmatpush1.bf16.msra.mxu0 0
      %1298 = vmatprep.subr.bf16.mxu0 0
      %1299 = vmatpush1.bf16.msra.mxu0 0
      %1300 = vmatprep.subr.bf16.mxu0 0
      %1301 = vmatpush1.bf16.msra.mxu0 0
      %1302 = vmatprep.subr.bf16.mxu0 0
      %1303 = vmatpush1.bf16.msra.mxu0 0
      %1304 = vmatprep.subr.bf16.mxu0 0
      %1305 = vmatpush1.bf16.msra.mxu0 0
      %1306 = vmatprep.subr.bf16.mxu0 0
      %1307 = vmatpush1.bf16.msra.mxu0 0
      %1308 = vmatprep.mubr.bf16.mxu0 0
      %1309 = vmatmul.mubr.bf16.gmra.mrb[0].mxu0 %v1262
      %v1310 = vpop.f32.mrb[0].mxu0
      %v1311 = vadd.f32 0.0, %v1310
      %v1312 = vpop.f32.mrb[0].mxu0
      %v1313 = vpop.f32.mrb[0].mxu0
      %v1314 = vadd.f32 0.0, %v1313
      %v1315 = vpop.f32.mrb[0].mxu0
      %1316 = vmatprep.mubr.bf16.mxu0 0
      %1317 = vmatmul.mubr.bf16.gmra.mrb[0].mxu0 %v1265
      %v1318 = vpop.f32.mrb[0].mxu0
      %v1319 = vadd.f32 0.0, %v1318
      %v1320 = vpop.f32.mrb[0].mxu0
      %v1321 = vpop.f32.mrb[0].mxu0
      %v1322 = vadd.f32 0.0, %v1321
      %v1323 = vpop.f32.mrb[0].mxu0
      %1324 = vmatprep.mubr.bf16.mxu0 0
      %1325 = vmatmul.mubr.bf16.gmra.mrb[0].mxu0 %v1268
      %v1326 = vpop.f32.mrb[0].mxu0
      %v1327 = vadd.f32 0.0, %v1326
      %v1328 = vpop.f32.mrb[0].mxu0
      %v1329 = vpop.f32.mrb[0].mxu0
      %v1330 = vadd.f32 0.0, %v1329
      %v1331 = vpop.f32.mrb[0].mxu0
      %1332 = vmatprep.mubr.bf16.mxu0 0
      %1333 = vmatmul.mubr.bf16.gmra.mrb[0].mxu0 %v1271
      %v1334 = vpop.f32.mrb[0].mxu0
      %v1335 = vadd.f32 0.0, %v1334
      %v1336 = vpop.f32.mrb[0].mxu0
      %v1337 = vpop.f32.mrb[0].mxu0
      %v1338 = vadd.f32 0.0, %v1337
      %v1339 = vpop.f32.mrb[0].mxu0
      %1340 = vdwg.mxu0
      %v1341 = vadd.f32 %v1222, %v1311
      %v1342 = vadd.f32 %v1223, %v1314
      %v1343 = vadd.f32 %v1224, %v1319
      %v1344 = vadd.f32 %v1225, %v1322
      %v1345 = vadd.f32 %v1226, %v1327
      %v1346 = vadd.f32 %v1227, %v1330
      %v1347 = vadd.f32 %v1228, %v1335
      %v1348 = vadd.f32 %v1229, %v1338
      %v1349 = vld [vmem:[%s1111] sm:$0xf]
      %v1350 = vld [vmem:[%s1111 + $0x4] sm:$0x1]
      %v1351 = vld [vmem:[%s1111 + $0x8] sm:$0xf]
      %v1352 = vld [vmem:[%s1111 + $0xc] sm:$0x1]
      %v1353 = vld [vmem:[%s1111 + $0x10] sm:$0xf]
      %v1354 = vld [vmem:[%s1111 + $0x14] sm:$0x1]
      %v1355 = vld [vmem:[%s1111 + $0x18] sm:$0xf]
      %v1356 = vld [vmem:[%s1111 + $0x1c] sm:$0x1]
      %v1357 = vld [vmem:[%s1111 + $0x20] sm:$0xf]
      %v1358 = vld [vmem:[%s1111 + $0x24] sm:$0x1]
      %v1359 = vld [vmem:[%s1111 + $0x28] sm:$0xf]
      %v1360 = vld [vmem:[%s1111 + $0x2c] sm:$0x1]
      %v1361 = vld [vmem:[%s1111 + $0x30] sm:$0xf]
      %v1362 = vld [vmem:[%s1111 + $0x34] sm:$0x1]
      %v1363 = vld [vmem:[%s1111 + $0x38] sm:$0xf]
      %v1364 = vld [vmem:[%s1111 + $0x3c] sm:$0x1]
      %v1366 = vshrl.u32 %v1349, 16
      %v1368 = vrot.slane %v1366, 4
      %v1369 = vshll.u32 %v1349, 16
      %v1371 = vrot.slane %v1369, 5
      %v1372 = vor.u32 %v1368, %v1371
      %v1373 = vrot.slane %v1372, 4
      %v1375 = vshll.u32 %v1350, 16
      %v1377 = vrot.slane %v1375, 5
      %v1378 = vsel %vm428, %v1373, %v1377
      %v1380 = vshrl.u32 %v1351, 16
      %v1382 = vrot.slane %v1380, 4
      %v1383 = vshll.u32 %v1351, 16
      %v1385 = vrot.slane %v1383, 5
      %v1386 = vor.u32 %v1382, %v1385
      %v1387 = vrot.slane %v1386, 4
      %v1389 = vshll.u32 %v1352, 16
      %v1391 = vrot.slane %v1389, 5
      %v1392 = vsel %vm428, %v1387, %v1391
      %v1394 = vshrl.u32 %v1353, 16
      %v1396 = vrot.slane %v1394, 4
      %v1397 = vshll.u32 %v1353, 16
      %v1399 = vrot.slane %v1397, 5
      %v1400 = vor.u32 %v1396, %v1399
      %v1401 = vrot.slane %v1400, 4
      %v1403 = vshll.u32 %v1354, 16
      %v1405 = vrot.slane %v1403, 5
      %v1406 = vsel %vm428, %v1401, %v1405
      %v1408 = vshrl.u32 %v1355, 16
      %v1410 = vrot.slane %v1408, 4
      %v1411 = vshll.u32 %v1355, 16
      %v1413 = vrot.slane %v1411, 5
      %v1414 = vor.u32 %v1410, %v1413
      %v1415 = vrot.slane %v1414, 4
      %v1417 = vshll.u32 %v1356, 16
      %v1419 = vrot.slane %v1417, 5
      %v1420 = vsel %vm428, %v1415, %v1419
      %v1422 = vshrl.u32 %v1357, 16
      %v1424 = vrot.slane %v1422, 4
      %v1425 = vshll.u32 %v1357, 16
      %v1427 = vrot.slane %v1425, 5
      %v1428 = vor.u32 %v1424, %v1427
      %v1429 = vrot.slane %v1428, 4
      %v1431 = vshll.u32 %v1358, 16
      %v1433 = vrot.slane %v1431, 5
      %v1434 = vsel %vm428, %v1429, %v1433
      %v1436 = vshrl.u32 %v1359, 16
      %v1438 = vrot.slane %v1436, 4
      %v1439 = vshll.u32 %v1359, 16
      %v1441 = vrot.slane %v1439, 5
      %v1442 = vor.u32 %v1438, %v1441
      %v1443 = vrot.slane %v1442, 4
      %v1445 = vshll.u32 %v1360, 16
      %v1447 = vrot.slane %v1445, 5
      %v1448 = vsel %vm428, %v1443, %v1447
      %v1450 = vshrl.u32 %v1361, 16
      %v1452 = vrot.slane %v1450, 4
      %v1453 = vshll.u32 %v1361, 16
      %v1455 = vrot.slane %v1453, 5
      %v1456 = vor.u32 %v1452, %v1455
      %v1457 = vrot.slane %v1456, 4
      %v1459 = vshll.u32 %v1362, 16
      %v1461 = vrot.slane %v1459, 5
      %v1462 = vsel %vm428, %v1457, %v1461
      %v1464 = vshrl.u32 %v1363, 16
      %v1466 = vrot.slane %v1464, 4
      %v1467 = vshll.u32 %v1363, 16
      %v1469 = vrot.slane %v1467, 5
      %v1470 = vor.u32 %v1466, %v1469
      %v1471 = vrot.slane %v1470, 4
      %v1473 = vshll.u32 %v1364, 16
      %v1475 = vrot.slane %v1473, 5
      %v1476 = vsel %vm428, %v1471, %v1475
      %s1477 = scalar_lea.vmem %s1, 16
      %v1478 = vld [vmem:[%s1477] sm:$0x3]
      %v1479 = vunpack.c.l.b16 %v1378
      %v1480 = vunpack.c.l.b16 %v1392
      %v1481 = vunpack.c.l.b16 %v1406
      %v1482 = vunpack.c.l.b16 %v1420
      %v1483 = vunpack.c.l.b16 %v1434
      %v1484 = vunpack.c.l.b16 %v1448
      %v1485 = vunpack.c.l.b16 %v1462
      %v1486 = vunpack.c.l.b16 %v1476
      %v1487 = vpack.c.b16 %v1480, %v1479
      %v1488 = vpack.c.b16 %v1482, %v1481
      %v1489 = vpack.c.b16 %v1484, %v1483
      %v1490 = vpack.c.b16 %v1486, %v1485
      %v1492 = vsel %vm228, %v1487, 0
      %v1495 = vsel %vm228, %v1488, 0
      %v1498 = vsel %vm228, %v1489, 0
      %v1501 = vsel %vm228, %v1490, 0
      %v1504 = vsel %vm241, %v1478, 0
      %1506 = vmatprep.subr.bf16.mxu0 0
      %1507 = vmatpush1.bf16.msra.mxu0 %v1504
      %1508 = vmatprep.subr.bf16.mxu0 0
      %1509 = vmatpush1.bf16.msra.mxu0 0
      %1510 = vmatprep.subr.bf16.mxu0 0
      %1511 = vmatpush1.bf16.msra.mxu0 0
      %1512 = vmatprep.subr.bf16.mxu0 0
      %1513 = vmatpush1.bf16.msra.mxu0 0
      %1514 = vmatprep.subr.bf16.mxu0 0
      %1515 = vmatpush1.bf16.msra.mxu0 0
      %1516 = vmatprep.subr.bf16.mxu0 0
      %1517 = vmatpush1.bf16.msra.mxu0 0
      %1518 = vmatprep.subr.bf16.mxu0 0
      %1519 = vmatpush1.bf16.msra.mxu0 0
      %1520 = vmatprep.subr.bf16.mxu0 0
      %1521 = vmatpush1.bf16.msra.mxu0 0
      %1522 = vmatprep.subr.bf16.mxu0 0
      %1523 = vmatpush1.bf16.msra.mxu0 0
      %1524 = vmatprep.subr.bf16.mxu0 0
      %1525 = vmatpush1.bf16.msra.mxu0 0
      %1526 = vmatprep.subr.bf16.mxu0 0
      %1527 = vmatpush1.bf16.msra.mxu0 0
      %1528 = vmatprep.subr.bf16.mxu0 0
      %1529 = vmatpush1.bf16.msra.mxu0 0
      %1530 = vmatprep.subr.bf16.mxu0 0
      %1531 = vmatpush1.bf16.msra.mxu0 0
      %1532 = vmatprep.subr.bf16.mxu0 0
      %1533 = vmatpush1.bf16.msra.mxu0 0
      %1534 = vmatprep.subr.bf16.mxu0 0
      %1535 = vmatpush1.bf16.msra.mxu0 0
      %1536 = vmatprep.subr.bf16.mxu0 0
      %1537 = vmatpush1.bf16.msra.mxu0 0
      %1538 = vmatprep.mubr.bf16.mxu0 0
      %1539 = vmatmul.mubr.bf16.gmra.mrb[0].mxu0 %v1492
      %v1540 = vpop.f32.mrb[0].mxu0
      %v1541 = vadd.f32 0.0, %v1540
      %v1542 = vpop.f32.mrb[0].mxu0
      %v1543 = vpop.f32.mrb[0].mxu0
      %v1544 = vadd.f32 0.0, %v1543
      %v1545 = vpop.f32.mrb[0].mxu0
      %1546 = vmatprep.mubr.bf16.mxu0 0
      %1547 = vmatmul.mubr.bf16.gmra.mrb[0].mxu0 %v1495
      %v1548 = vpop.f32.mrb[0].mxu0
      %v1549 = vadd.f32 0.0, %v1548
      %v1550 = vpop.f32.mrb[0].mxu0
      %v1551 = vpop.f32.mrb[0].mxu0
      %v1552 = vadd.f32 0.0, %v1551
      %v1553 = vpop.f32.mrb[0].mxu0
      %1554 = vmatprep.mubr.bf16.mxu0 0
      %1555 = vmatmul.mubr.bf16.gmra.mrb[0].mxu0 %v1498
      %v1556 = vpop.f32.mrb[0].mxu0
      %v1557 = vadd.f32 0.0, %v1556
      %v1558 = vpop.f32.mrb[0].mxu0
      %v1559 = vpop.f32.mrb[0].mxu0
      %v1560 = vadd.f32 0.0, %v1559
      %v1561 = vpop.f32.mrb[0].mxu0
      %1562 = vmatprep.mubr.bf16.mxu0 0
      %1563 = vmatmul.mubr.bf16.gmra.mrb[0].mxu0 %v1501
      %v1564 = vpop.f32.mrb[0].mxu0
      %v1565 = vadd.f32 0.0, %v1564
      %v1566 = vpop.f32.mrb[0].mxu0
      %v1567 = vpop.f32.mrb[0].mxu0
      %v1568 = vadd.f32 0.0, %v1567
      %v1569 = vpop.f32.mrb[0].mxu0
      %1570 = vdwg.mxu0
      %v1571 = vadd.f32 %v1341, %v1541
      %v1572 = vadd.f32 %v1342, %v1544
      %v1573 = vadd.f32 %v1343, %v1549
      %v1574 = vadd.f32 %v1344, %v1552
      %v1575 = vadd.f32 %v1345, %v1557
      %v1576 = vadd.f32 %v1346, %v1560
      %v1577 = vadd.f32 %v1347, %v1565
      %v1578 = vadd.f32 %v1348, %v1568
      %v1579 = vpack.c.bf16 %v1572, %v1571
      %v1580 = vpack.c.bf16 %v1574, %v1573
      %v1581 = vpack.c.bf16 %v1576, %v1575
      %v1582 = vpack.c.bf16 %v1578, %v1577
      %v1587 = vunpack.c.l.b16 %v1579
      %v1588 = vunpack.c.h.b16 %v1579
      %v1589 = vunpack.c.l.b16 %v1580
      %v1590 = vunpack.c.h.b16 %v1580
      %v1591 = vunpack.c.l.b16 %v1581
      %v1592 = vunpack.c.h.b16 %v1581
      %v1593 = vunpack.c.l.b16 %v1582
      %v1594 = vunpack.c.h.b16 %v1582
      %v1595 = vpack.c.b16 %v1587, %v1587
      %v1596 = vpack.c.b16 %v1588, %v1588
      %v1597 = vpack.c.b16 %v1589, %v1589
      %v1598 = vpack.c.b16 %v1590, %v1590
      %v1599 = vpack.c.b16 %v1591, %v1591
      %v1600 = vpack.c.b16 %v1592, %v1592
      %v1601 = vpack.c.b16 %v1593, %v1593
      %v1602 = vpack.c.b16 %v1594, %v1594
      %vm1611 = vcmask 60416
      %1612 = vst.msk [vmem:[%s182] sm:$0xf] %vm1611, %v1595
      %1613 = vst.msk [vmem:[%s182 + $0x4] sm:$0xf] %vm1611, %v1596
      %1614 = vst.msk [vmem:[%s182 + $0x8] sm:$0xf] %vm1611, %v1597
      %1615 = vst.msk [vmem:[%s182 + $0xc] sm:$0xf] %vm1611, %v1598
      %1616 = vst.msk [vmem:[%s182 + $0x10] sm:$0xf] %vm1611, %v1599
      %1617 = vst.msk [vmem:[%s182 + $0x14] sm:$0xf] %vm1611, %v1600
      %1618 = vst.msk [vmem:[%s182 + $0x18] sm:$0xf] %vm1611, %v1601
      %1619 = vst.msk [vmem:[%s182 + $0x1c] sm:$0xf] %vm1611, %v1602
      %vm1620 = vcmask 64512
      %v1621 = vsel %vm1620, %v1571, 0.0
      %v1622 = vsel %vm1620, %v1572, 0.0
      %v1623 = vadd.f32 %v1621, %v1622
      %v1624 = vsel %vm1620, %v1573, 0.0
      %v1625 = vadd.f32 %v1623, %v1624
      %v1626 = vsel %vm1620, %v1574, 0.0
      %v1627 = vadd.f32 %v1625, %v1626
      %v1628 = vsel %vm1620, %v1575, 0.0
      %v1629 = vadd.f32 %v1627, %v1628
      %v1630 = vsel %vm1620, %v1576, 0.0
      %v1631 = vadd.f32 %v1629, %v1630
      %v1632 = vsel %vm1620, %v1577, 0.0
      %v1633 = vadd.f32 %v1631, %v1632
      %v1634 = vsel %vm1620, %v1578, 0.0
      %v1635 = vadd.f32 %v1633, %v1634
      %v1636 = vrot.slane %v1635, 4
      %v1637 = vadd.f32 %v1635, %v1636
      %v1638 = vrot.slane %v1637, 2
      %v1639 = vadd.f32 %v1637, %v1638
      %v1640 = vrot.slane %v1639, 1
      %v1641 = vadd.f32 %v1639, %v1640
      %v1642 = vmul.f32 %v1641, 0.015625
      %v1643 = vsub.f32 %v1571, %v1642
      %v1644 = vsub.f32 %v1572, %v1642
      %v1645 = vsub.f32 %v1573, %v1642
      %v1646 = vsub.f32 %v1574, %v1642
      %v1647 = vsub.f32 %v1575, %v1642
      %v1648 = vsub.f32 %v1576, %v1642
      %v1649 = vsub.f32 %v1577, %v1642
      %v1650 = vsub.f32 %v1578, %v1642
      %v1651 = vmul.f32 %v1643, %v1643
      %v1652 = vmul.f32 %v1644, %v1644
      %v1653 = vmul.f32 %v1645, %v1645
      %v1654 = vmul.f32 %v1646, %v1646
      %v1655 = vmul.f32 %v1647, %v1647
      %v1656 = vmul.f32 %v1648, %v1648
      %v1657 = vmul.f32 %v1649, %v1649
      %v1658 = vmul.f32 %v1650, %v1650
      %v1659 = vsel %vm1620, %v1651, 0.0
      %v1660 = vsel %vm1620, %v1652, 0.0
      %v1661 = vadd.f32 %v1659, %v1660
      %v1662 = vsel %vm1620, %v1653, 0.0
      %v1663 = vadd.f32 %v1661, %v1662
      %v1664 = vsel %vm1620, %v1654, 0.0
      %v1665 = vadd.f32 %v1663, %v1664
      %v1666 = vsel %vm1620, %v1655, 0.0
      %v1667 = vadd.f32 %v1665, %v1666
      %v1668 = vsel %vm1620, %v1656, 0.0
      %v1669 = vadd.f32 %v1667, %v1668
      %v1670 = vsel %vm1620, %v1657, 0.0
      %v1671 = vadd.f32 %v1669, %v1670
      %v1672 = vsel %vm1620, %v1658, 0.0
      %v1673 = vadd.f32 %v1671, %v1672
      %v1674 = vrot.slane %v1673, 4
      %v1675 = vadd.f32 %v1673, %v1674
      %v1676 = vrot.slane %v1675, 2
      %v1677 = vadd.f32 %v1675, %v1676
      %v1678 = vrot.slane %v1677, 1
      %v1679 = vadd.f32 %v1677, %v1678
      %vm1680 = vcmask 57344
      %1681 = vst.msk [vmem:[%s186] sm:$0x1] %vm1680, %v1641
      %1682 = vst.msk [vmem:[%s186 + $0x1] sm:$0x1] %vm1680, %v1679
      %p1683 = scmp.lt.s32.totalorder %s15, 1
      %s1684 = scalar_select %p1683, %s15, 1
      %s1685 = smul.addr %s1684, 8
      %s1686 = smul.addr %s1685, 4
      %s1687 = scalar_lea.vmem %s2, %s1686
      %p1688 = scmp.lt.s32.totalorder %s15, 1
      %s1689 = scalar_select %p1688, %s15, 1
      %s1690 = smul.addr %s1689, 2
      %s1691 = scalar_lea.vmem %s3, %s1690
      // Predicated region
      $region29: #{basic_block_forward.5} parent=27 // pred_check
        %p1692 = pneg %p80
      $region30: #{basic_block_forward.5} parent=27 // pred_check_branch
        %1694 = sbr.rel (%p1692) target = $region32
      $region31: #{basic_block_forward.5} parent=27 // pred_region
        _
      $region32: #{basic_block_forward.5} parent=27 // pred_fallthru
        _
      // Predicated region
      $region33: #{basic_block_forward.5} parent=27 // pred_check
        %p1695 = pneg %p106
      $region34: #{basic_block_forward.5} parent=27 // pred_check_branch
        %1697 = sbr.rel (%p1695) target = $region36
      $region35: #{basic_block_forward.5} parent=27 // pred_region
        _
      $region36: #{basic_block_forward.5} parent=27 // pred_fallthru
        _
    $region28: #{basic_block_forward.5} parent=5 // pred_fallthru
      _
    %p1698 = scmp.le.s32.totalorder 2, %s10
    // Predicated region
    $region37: #{basic_block_forward.5} parent=5 // pred_check
      %p1699 = pneg %p1698
    $region38: #{basic_block_forward.5} parent=5 // pred_check_branch
      %1701 = sbr.rel (%p1699) target = $region40
    $region39: #{basic_block_forward.5} parent=5 // pred_region
      %s1702 = ssub.s32 %s10, 2
      // Predicated region
      $region41: #{basic_block_forward.5} parent=39 // pred_check
        %p1703 = pneg %p86
      $region42: #{basic_block_forward.5} parent=39 // pred_check_branch
        %1705 = sbr.rel (%p1703) target = $region44
      $region43: #{basic_block_forward.5} parent=39 // pred_region
        %p1706 = scmp.lt.s32.totalorder %s16, 1
        %s1707 = scalar_select %p1706, %s16, 1
        %s1708 = smul.addr %s1707, 8
        %s1709 = smul.addr %s1708, 4
        %s1710 = scalar_lea.vmem %s2, %s1709
      $region44: #{basic_block_forward.5} parent=39 // pred_fallthru
        _
      // Predicated region
      $region45: #{basic_block_forward.5} parent=39 // pred_check
        %p1711 = pneg %p112
      $region46: #{basic_block_forward.5} parent=39 // pred_check_branch
        %1713 = sbr.rel (%p1711) target = $region48
      $region47: #{basic_block_forward.5} parent=39 // pred_region
        %p1714 = scmp.lt.s32.totalorder %s16, 1
        %s1715 = scalar_select %p1714, %s16, 1
        %s1716 = smul.addr %s1715, 2
        %s1717 = scalar_lea.vmem %s3, %s1716
      $region48: #{basic_block_forward.5} parent=39 // pred_fallthru
        _
    $region40: #{basic_block_forward.5} parent=5 // pred_fallthru
      _
  $region6: #{basic_block_forward.5} parent=0 // loop_footer
    %s14 = sadd.s32 1, %s10
  $region7: #{basic_block_forward.5} parent=0 // loop_footer_branch
    %9 = sbr.rel target = $region3
  $region8: #{basic_block_forward.5} parent=0 // loop_exit
    _

// kernel: basic_block_forward.9
$region0: #{basic_block_forward.9}
  #allocation0 [shape = 'u32[]', space=smem, size = 0x4, offset = 0x4, fixed_abs, tag = 'smem constant byte address 0x4 - core index']
  #allocation1 [shape = 'u32[144,128]{1,0:T(1,128)}', space=vmem, size = 0x12000, scoped, tag = 'internal scratch']
  %s0 = inlined_call_operand.vmem [shape: bf16[8,128], index: 0, kind: input, shape index: {}]
  %s1 = inlined_call_operand.vmem [shape: f32[1,128], index: 1, kind: input, shape index: {}]
  %s2 = inlined_call_operand.vmem [shape: f32[1,128], index: 2, kind: input, shape index: {}]
  %s3 = inlined_call_operand.vmem [shape: bf16[8,128], index: 3, kind: input, shape index: {}]
  %s4 = inlined_call_operand.vmem [shape: f32[1,128], index: 4, kind: input, shape index: {}]
  %s5 = inlined_call_operand.vmem [shape: f32[1,128], index: 5, kind: input, shape index: {}]
  %s6 = inlined_call_operand.vmem [shape: f32[8,128], index: 6, kind: output, shape index: {}]
  %s7 = sld [smem:[#allocation0]]
  $region34: #{basic_block_forward.9} parent=0
    _
  %s9 = ssub.s32 1, %s7
  %s10 = scalar_select 0, %s9, %s7
  // Predicated region
  $region2: #{basic_block_forward.9} parent=0 // pred_check
    _
  $region3: #{basic_block_forward.9} parent=0 // pred_check_branch
    %12 = sbr.rel (0) target = $region5
  $region4: #{basic_block_forward.9} parent=0 // pred_region
    _
  $region5: #{basic_block_forward.9} parent=0 // pred_fallthru
    _
  // Predicated region
  $region6: #{basic_block_forward.9} parent=0 // pred_check
    _
  $region7: #{basic_block_forward.9} parent=0 // pred_check_branch
    %14 = sbr.rel (0) target = $region9
  $region8: #{basic_block_forward.9} parent=0 // pred_region
    _
  $region9: #{basic_block_forward.9} parent=0 // pred_fallthru
    _
  // Predicated region
  $region10: #{basic_block_forward.9} parent=0 // pred_check
    _
  $region11: #{basic_block_forward.9} parent=0 // pred_check_branch
    %16 = sbr.rel (0) target = $region13
  $region12: #{basic_block_forward.9} parent=0 // pred_region
    _
  $region13: #{basic_block_forward.9} parent=0 // pred_fallthru
    _
  // Predicated region
  $region14: #{basic_block_forward.9} parent=0 // pred_check
    _
  $region15: #{basic_block_forward.9} parent=0 // pred_check_branch
    %18 = sbr.rel (0) target = $region17
  $region16: #{basic_block_forward.9} parent=0 // pred_region
    _
  $region17: #{basic_block_forward.9} parent=0 // pred_fallthru
    _
  // Predicated region
  $region18: #{basic_block_forward.9} parent=0 // pred_check
    _
  $region19: #{basic_block_forward.9} parent=0 // pred_check_branch
    %20 = sbr.rel (0) target = $region21
  $region20: #{basic_block_forward.9} parent=0 // pred_region
    _
  $region21: #{basic_block_forward.9} parent=0 // pred_fallthru
    _
  // Predicated region
  $region22: #{basic_block_forward.9} parent=0 // pred_check
    _
  $region23: #{basic_block_forward.9} parent=0 // pred_check_branch
    %22 = sbr.rel (0) target = $region25
  $region24: #{basic_block_forward.9} parent=0 // pred_region
    _
  $region25: #{basic_block_forward.9} parent=0 // pred_fallthru
    _
  %v23 = vld [vmem:[%s0] sm:$0xf]
  %v24 = vunpack.c.l.bf16 %v23
  %v25 = vld [vmem:[%s3] sm:$0xf]
  %v26 = vunpack.c.l.bf16 %v25
  %v27 = vld [vmem:[%s1] sm:$0x1]
  %v29 = vlaneseq
  %v30 = vshrl.u32 %v29, 7
  %v31 = vsub.s32 0, %v30
  %v32 = vrot.slane %v27, %v31
  %v34 = vmul.f32 %v24, %v32
  %v35 = vld [vmem:[%s2] sm:$0x1]
  %v37 = vlaneseq
  %v38 = vshrl.u32 %v37, 7
  %v39 = vsub.s32 0, %v38
  %v40 = vrot.slane %v35, %v39
  %v42 = vadd.f32 %v34, %v40
  %v43 = vld [vmem:[%s4] sm:$0x1]
  %v45 = vlaneseq
  %v46 = vshrl.u32 %v45, 7
  %v47 = vsub.s32 0, %v46
  %v48 = vrot.slane %v43, %v47
  %v50 = vmul.f32 %v26, %v48
  %v51 = vadd.f32 %v42, %v50
  %v52 = vld [vmem:[%s5] sm:$0x1]
  %v54 = vlaneseq
  %v55 = vshrl.u32 %v54, 7
  %v56 = vsub.s32 0, %v55
  %v57 = vrot.slane %v52, %v56
  %v59 = vadd.f32 %v51, %v57
  %v60 = vmax.f32 %v59, 0.0
  %61 = vst [vmem:[%s6] sm:$0xff] %v60
  // Predicated region
  $region26: #{basic_block_forward.9} parent=0 // pred_check
    _
  $region27: #{basic_block_forward.9} parent=0 // pred_check_branch
    %63 = sbr.rel (0) target = $region29
  $region28: #{basic_block_forward.9} parent=0 // pred_region
    _
  $region29: #{basic_block_forward.9} parent=0 // pred_fallthru
    _
  // Predicated region
  $region30: #{basic_block_forward.9} parent=0 // pred_check
    _
  $region31: #{basic_block_forward.9} parent=0 // pred_check_branch
    %65 = sbr.rel (0) target = $region33
  $region32: #{basic_block_forward.9} parent=0 // pred_region
    _
  $region33: #{basic_block_forward.9} parent=0 // pred_fallthru
    _

// kernel: basic_block_forward.7
$region0: #{basic_block_forward.7}
  #allocation0 [shape = 'u32[]', space=smem, size = 0x4, offset = 0x4, fixed_abs, tag = 'smem constant byte address 0x4 - core index']
  #allocation1 [shape = 'u32[144,128]{1,0:T(1,128)}', space=vmem, size = 0x12000, scoped, tag = 'internal scratch']
  %s0 = inlined_call_operand.vmem [shape: bf16[2,10,10,8], index: 0, kind: input, shape index: {}]
  %s1 = inlined_call_operand.vmem [shape: bf16[9,8,8], index: 1, kind: input, shape index: {}]
  %s2 = inlined_call_operand.vmem [shape: bf16[2,64,8], index: 2, kind: output, shape index: {0}]
  %s3 = inlined_call_operand.vmem [shape: f32[2,2,8], index: 3, kind: output, shape index: {1}]
  %4 = xla_tuple %s2, %s3
  %s5 = sld [smem:[#allocation0]]
  $region49: #{basic_block_forward.7} parent=0
    _
  %s7 = ssub.s32 1, %s5
  %s8 = scalar_select 0, %s7, %s5
  loop: start=0, step=1, limit=4
  $region2: #{basic_block_forward.7} parent=0 // loop_pre_header
    _
  $region3: #{basic_block_forward.7} parent=0 // loop_header
    %s10 = sphi 0, %s14
    %p11 = scmp.ge.s32.totalorder %s10, 4
    %s20 = sphi 0, %s22
    %s23 = sphi 0, %s20
    %s24 = sphi 0, %s23
    %s40 = sphi 0, %s24
    %s44 = sphi 0, %s44
    %s46 = sphi 0, %s44
    %s47 = sphi 0, %s46
    %s61 = sphi 0, %s47
    %s67 = sphi 0, %s69
    %s70 = sphi 0, %s67
    %s71 = sphi 0, %s70
    %s87 = sphi 0, %s71
    %s93 = sphi 0, %s95
    %s96 = sphi 0, %s93
    %s97 = sphi 0, %s96
    %s113 = sphi 0, %s97
  $region4: #{basic_block_forward.7} parent=0 // loop_header_branch
    %13 = sbr.rel (%p11) target = $region8
  $region5: #{basic_block_forward.7} parent=0 // loop_body
    %s15 = ssub.s32 %s10, 1
    %s16 = ssub.s32 %s10, 2
    %s17 = sadd.s32 %s10, 1
    %s18 = ssub.s32 %s10, %s17
    %p19 = scmp.eq.s32.totalorder %s18, 0
    %s21 = sadd.s32 %s20, 1
    %s22 = scalar_select %p19, %s20, %s21
    %p25 = pneg %p19
    %p26 = scmp.eq.s32.totalorder %s10, 1
    %p27 = por %p25, %p26
    %p28 = scmp.ne.s32.totalorder %s20, %s23
    %p29 = scmp.eq.s32.totalorder %s10, 0
    %p30 = por %p28, %p29
    %p31 = scmp.ne.s32.totalorder %s20, %s23
    %p32 = scmp.eq.s32.totalorder %s15, 1
    %p33 = por %p31, %p32
    %p34 = scmp.ne.s32.totalorder %s23, %s24
    %p35 = scmp.eq.s32.totalorder %s15, 0
    %p36 = por %p34, %p35
    %p37 = scmp.ne.s32.totalorder %s23, %s24
    %p38 = scmp.eq.s32.totalorder %s16, 1
    %p39 = por %p37, %p38
    %p41 = scmp.ne.s32.totalorder %s24, %s40
    %p42 = scmp.eq.s32.totalorder %s16, 0
    %p43 = por %p41, %p42
    %s45 = sadd.s32 %s44, 1
    %p48 = scmp.eq.s32.totalorder %s10, 1
    %p49 = scmp.ne.s32.totalorder %s44, %s46
    %p50 = scmp.eq.s32.totalorder %s10, 0
    %p51 = por %p49, %p50
    %p52 = scmp.ne.s32.totalorder %s44, %s46
    %p53 = scmp.eq.s32.totalorder %s15, 1
    %p54 = por %p52, %p53
    %p55 = scmp.ne.s32.totalorder %s46, %s47
    %p56 = scmp.eq.s32.totalorder %s15, 0
    %p57 = por %p55, %p56
    %p58 = scmp.ne.s32.totalorder %s46, %s47
    %p59 = scmp.eq.s32.totalorder %s16, 1
    %p60 = por %p58, %p59
    %p62 = scmp.ne.s32.totalorder %s47, %s61
    %p63 = scmp.eq.s32.totalorder %s16, 0
    %p64 = por %p62, %p63
    %s65 = ssub.s32 %s10, %s17
    %p66 = scmp.eq.s32.totalorder %s65, 0
    %s68 = sadd.s32 %s67, 1
    %s69 = scalar_select %p66, %s67, %s68
    %p72 = pneg %p66
    %p73 = scmp.eq.s32.totalorder %s10, 1
    %p74 = por %p72, %p73
    %p75 = scmp.ne.s32.totalorder %s67, %s70
    %p76 = scmp.eq.s32.totalorder %s10, 0
    %p77 = por %p75, %p76
    %p78 = scmp.ne.s32.totalorder %s67, %s70
    %p79 = scmp.eq.s32.totalorder %s15, 1
    %p80 = por %p78, %p79
    %p81 = scmp.ne.s32.totalorder %s70, %s71
    %p82 = scmp.eq.s32.totalorder %s15, 0
    %p83 = por %p81, %p82
    %p84 = scmp.ne.s32.totalorder %s70, %s71
    %p85 = scmp.eq.s32.totalorder %s16, 1
    %p86 = por %p84, %p85
    %p88 = scmp.ne.s32.totalorder %s71, %s87
    %p89 = scmp.eq.s32.totalorder %s16, 0
    %p90 = por %p88, %p89
    %s91 = ssub.s32 %s10, %s17
    %p92 = scmp.eq.s32.totalorder %s91, 0
    %s94 = sadd.s32 %s93, 1
    %s95 = scalar_select %p92, %s93, %s94
    %p98 = pneg %p92
    %p99 = scmp.eq.s32.totalorder %s10, 1
    %p100 = por %p98, %p99
    %p101 = scmp.ne.s32.totalorder %s93, %s96
    %p102 = scmp.eq.s32.totalorder %s10, 0
    %p103 = por %p101, %p102
    %p104 = scmp.ne.s32.totalorder %s93, %s96
    %p105 = scmp.eq.s32.totalorder %s15, 1
    %p106 = por %p104, %p105
    %p107 = scmp.ne.s32.totalorder %s96, %s97
    %p108 = scmp.eq.s32.totalorder %s15, 0
    %p109 = por %p107, %p108
    %p110 = scmp.ne.s32.totalorder %s96, %s97
    %p111 = scmp.eq.s32.totalorder %s16, 1
    %p112 = por %p110, %p111
    %p114 = scmp.ne.s32.totalorder %s97, %s113
    %p115 = scmp.eq.s32.totalorder %s16, 0
    %p116 = por %p114, %p115
    %p117 = scmp.le.s32.totalorder 1, %s10
    %p118 = scmp.lt.s32.totalorder %s10, 3
    %p119 = pnand %p117, %p118
    %p120 = pneg %p119
    // Predicated region
    $region9: #{basic_block_forward.7} parent=5 // pred_check
      _
    $region10: #{basic_block_forward.7} parent=5 // pred_check_branch
      %122 = sbr.rel (%p119) target = $region12
    $region11: #{basic_block_forward.7} parent=5 // pred_region
      %s123 = ssub.s32 %s10, 1
      // Predicated region
      $region13: #{basic_block_forward.7} parent=11 // pred_check
        %p124 = pneg %p57
      $region14: #{basic_block_forward.7} parent=11 // pred_check_branch
        %126 = sbr.rel (%p124) target = $region16
      $region15: #{basic_block_forward.7} parent=11 // pred_region
        _
      $region16: #{basic_block_forward.7} parent=11 // pred_fallthru
        _
    $region12: #{basic_block_forward.7} parent=5 // pred_fallthru
      _
    %p127 = scmp.lt.s32.totalorder %s10, 2
    // Predicated region
    $region17: #{basic_block_forward.7} parent=5 // pred_check
      %p128 = pneg %p127
    $region18: #{basic_block_forward.7} parent=5 // pred_check_branch
      %130 = sbr.rel (%p128) target = $region20
    $region19: #{basic_block_forward.7} parent=5 // pred_region
      // Predicated region
      $region21: #{basic_block_forward.7} parent=19 // pred_check
        %p131 = pneg %p30
      $region22: #{basic_block_forward.7} parent=19 // pred_check_branch
        %133 = sbr.rel (%p131) target = $region24
      $region23: #{basic_block_forward.7} parent=19 // pred_region
        %p134 = scmp.lt.s32.totalorder %s10, 1
        %s135 = scalar_select %p134, %s10, 1
        %s136 = smul.addr %s135, 20
        %s137 = smul.addr %s136, 4
        %s138 = scalar_lea.vmem %s0, %s137
      $region24: #{basic_block_forward.7} parent=19 // pred_fallthru
        _
    $region20: #{basic_block_forward.7} parent=5 // pred_fallthru
      _
    %p139 = scmp.le.s32.totalorder 1, %s10
    %p140 = scmp.lt.s32.totalorder %s10, 3
    %p141 = pnand %p139, %p140
    %p142 = pneg %p141
    // Predicated region
    $region25: #{basic_block_forward.7} parent=5 // pred_check
      _
    $region26: #{basic_block_forward.7} parent=5 // pred_check_branch
      %144 = sbr.rel (%p141) target = $region28
    $region27: #{basic_block_forward.7} parent=5 // pred_region
      %s145 = ssub.s32 %s10, 1
      %p146 = scmp.lt.s32.totalorder %s15, 1
      %s147 = scalar_select %p146, %s15, 1
      %s148 = smul.addr %s147, 20
      %s149 = smul.addr %s148, 4
      %s150 = scalar_lea.vmem %s0, %s149
      %p151 = pneg %p36
      %p152 = pneg %p33
      %p153 = pneg %p57
      %p154 = pneg %p54
      %p155 = pneg %p83
      %p156 = pneg %p80
      %p157 = scmp.lt.s32.totalorder %s15, 1
      %s158 = scalar_select %p157, %s15, 1
      %s159 = smul.addr %s158, 8
      %s160 = smul.addr %s159, 4
      %s161 = scalar_lea.vmem %s2, %s160
      %p162 = pneg %p109
      %p163 = pneg %p106
      %p164 = scmp.lt.s32.totalorder %s15, 1
      %s165 = scalar_select %p164, %s15, 1
      %s166 = smul.addr %s165, 2
      %s167 = scalar_lea.vmem %s3, %s166
      %p168 = scmp.lt.s32.totalorder %s15, 1
      %s169 = scalar_select %p168, %s15, 1
      %s170 = smul.addr %s169, 20
      %s171 = smul.addr %s170, 4
      %s172 = scalar_lea.vmem %s0, %s171
      %p173 = scmp.lt.s32.totalorder %s15, 1
      %s174 = scalar_select %p173, %s15, 1
      %s175 = smul.addr %s174, 8
      %s176 = smul.addr %s175, 4
      %s177 = scalar_lea.vmem %s2, %s176
      %p178 = scmp.lt.s32.totalorder %s15, 1
      %s179 = scalar_select %p178, %s15, 1
      %s180 = smul.addr %s179, 2
      %s181 = scalar_lea.vmem %s3, %s180
      %v183 = vld [vmem:[%s172] sm:$0xf]
      %v184 = vld [vmem:[%s172 + $0x8] sm:$0xf]
      %v185 = vld [vmem:[%s172 + $0x10] sm:$0xf]
      %v186 = vld [vmem:[%s172 + $0x18] sm:$0xf]
      %v187 = vld [vmem:[%s172 + $0x20] sm:$0xf]
      %v188 = vld [vmem:[%s172 + $0x28] sm:$0xf]
      %v189 = vld [vmem:[%s172 + $0x30] sm:$0xf]
      %v190 = vld [vmem:[%s172 + $0x38] sm:$0xf]
      %v191 = vld [vmem:[%s1] sm:$0xf]
      %v192 = vld [vmem:[%s172 + $0x4] sm:$0x1]
      %v193 = vld [vmem:[%s172 + $0xc] sm:$0x1]
      %v194 = vld [vmem:[%s172 + $0x14] sm:$0x1]
      %v195 = vld [vmem:[%s172 + $0x1c] sm:$0x1]
      %v196 = vld [vmem:[%s172 + $0x24] sm:$0x1]
      %v197 = vld [vmem:[%s172 + $0x2c] sm:$0x1]
      %v198 = vld [vmem:[%s172 + $0x34] sm:$0x1]
      %v199 = vld [vmem:[%s172 + $0x3c] sm:$0x1]
      %vm200 = vsmask.f32 3328
      %vm201 = vsmask.f32 7440
      %vm202 = vmor %vm200, %vm201
      %v204 = vshrl.u32 %v183, 16
      %v206 = vrot.slane %v204, 4
      %v207 = vshll.u32 %v183, 16
      %v209 = vrot.slane %v207, 5
      %v210 = vor.u32 %v206, %v209
      %v211 = vrot.slane %v210, 4
      %v213 = vshll.u32 %v192, 16
      %v215 = vrot.slane %v213, 5
      %v216 = vsel %vm202, %v211, %v215
      %v218 = vshrl.u32 %v184, 16
      %v220 = vrot.slane %v218, 4
      %v221 = vshll.u32 %v184, 16
      %v223 = vrot.slane %v221, 5
      %v224 = vor.u32 %v220, %v223
      %v225 = vrot.slane %v224, 4
      %v227 = vshll.u32 %v193, 16
      %v229 = vrot.slane %v227, 5
      %v230 = vsel %vm202, %v225, %v229
      %v232 = vshrl.u32 %v185, 16
      %v234 = vrot.slane %v232, 4
      %v235 = vshll.u32 %v185, 16
      %v237 = vrot.slane %v235, 5
      %v238 = vor.u32 %v234, %v237
      %v239 = vrot.slane %v238, 4
      %v241 = vshll.u32 %v194, 16
      %v243 = vrot.slane %v241, 5
      %v244 = vsel %vm202, %v239, %v243
      %v246 = vshrl.u32 %v186, 16
      %v248 = vrot.slane %v246, 4
      %v249 = vshll.u32 %v186, 16
      %v251 = vrot.slane %v249, 5
      %v252 = vor.u32 %v248, %v251
      %v253 = vrot.slane %v252, 4
      %v255 = vshll.u32 %v195, 16
      %v257 = vrot.slane %v255, 5
      %v258 = vsel %vm202, %v253, %v257
      %v260 = vshrl.u32 %v187, 16
      %v262 = vrot.slane %v260, 4
      %v263 = vshll.u32 %v187, 16
      %v265 = vrot.slane %v263, 5
      %v266 = vor.u32 %v262, %v265
      %v267 = vrot.slane %v266, 4
      %v269 = vshll.u32 %v196, 16
      %v271 = vrot.slane %v269, 5
      %v272 = vsel %vm202, %v267, %v271
      %v274 = vshrl.u32 %v188, 16
      %v276 = vrot.slane %v274, 4
      %v277 = vshll.u32 %v188, 16
      %v279 = vrot.slane %v277, 5
      %v280 = vor.u32 %v276, %v279
      %v281 = vrot.slane %v280, 4
      %v283 = vshll.u32 %v197, 16
      %v285 = vrot.slane %v283, 5
      %v286 = vsel %vm202, %v281, %v285
      %v288 = vshrl.u32 %v189, 16
      %v290 = vrot.slane %v288, 4
      %v291 = vshll.u32 %v189, 16
      %v293 = vrot.slane %v291, 5
      %v294 = vor.u32 %v290, %v293
      %v295 = vrot.slane %v294, 4
      %v297 = vshll.u32 %v198, 16
      %v299 = vrot.slane %v297, 5
      %v300 = vsel %vm202, %v295, %v299
      %v302 = vshrl.u32 %v190, 16
      %v304 = vrot.slane %v302, 4
      %v305 = vshll.u32 %v190, 16
      %v307 = vrot.slane %v305, 5
      %v308 = vor.u32 %v304, %v307
      %v309 = vrot.slane %v308, 4
      %v311 = vshll.u32 %v199, 16
      %v313 = vrot.slane %v311, 5
      %v314 = vsel %vm202, %v309, %v313
      %s315 = scalar_lea.vmem %s1, 4
      %v316 = vld [vmem:[%s315] sm:$0xf]
      %v317 = vunpack.c.l.b16 %v216
      %v318 = vunpack.c.l.b16 %v230
      %v319 = vunpack.c.l.b16 %v244
      %v320 = vunpack.c.l.b16 %v258
      %v321 = vunpack.c.l.b16 %v272
      %v322 = vunpack.c.l.b16 %v286
      %v323 = vunpack.c.l.b16 %v300
      %v324 = vunpack.c.l.b16 %v314
      %v325 = vpack.c.b16 %v318, %v317
      %v326 = vpack.c.b16 %v320, %v319
      %v327 = vpack.c.b16 %v322, %v321
      %v328 = vpack.c.b16 %v324, %v323
      %vm329 = vcmask 64512
      %v331 = vsel %vm329, %v325, 0
      %v334 = vsel %vm329, %v326, 0
      %v337 = vsel %vm329, %v327, 0
      %v340 = vsel %vm329, %v328, 0
      %vm342 = vcmask 1043456
      %v344 = vsel %vm342, %v316, 0
      %346 = vmatprep.subr.bf16.mxu0 0
      %347 = vmatpush1.bf16.msra.mxu0 %v344
      %348 = vmatprep.subr.bf16.mxu0 0
      %349 = vmatpush1.bf16.msra.mxu0 0
      %350 = vmatprep.subr.bf16.mxu0 0
      %351 = vmatpush1.bf16.msra.mxu0 0
      %352 = vmatprep.subr.bf16.mxu0 0
      %353 = vmatpush1.bf16.msra.mxu0 0
      %354 = vmatprep.subr.bf16.mxu0 0
      %355 = vmatpush1.bf16.msra.mxu0 0
      %356 = vmatprep.subr.bf16.mxu0 0
      %357 = vmatpush1.bf16.msra.mxu0 0
      %358 = vmatprep.subr.bf16.mxu0 0
      %359 = vmatpush1.bf16.msra.mxu0 0
      %360 = vmatprep.subr.bf16.mxu0 0
      %361 = vmatpush1.bf16.msra.mxu0 0
      %362 = vmatprep.subr.bf16.mxu0 0
      %363 = vmatpush1.bf16.msra.mxu0 0
      %364 = vmatprep.subr.bf16.mxu0 0
      %365 = vmatpush1.bf16.msra.mxu0 0
      %366 = vmatprep.subr.bf16.mxu0 0
      %367 = vmatpush1.bf16.msra.mxu0 0
      %368 = vmatprep.subr.bf16.mxu0 0
      %369 = vmatpush1.bf16.msra.mxu0 0
      %370 = vmatprep.subr.bf16.mxu0 0
      %371 = vmatpush1.bf16.msra.mxu0 0
      %372 = vmatprep.subr.bf16.mxu0 0
      %373 = vmatpush1.bf16.msra.mxu0 0
      %374 = vmatprep.subr.bf16.mxu0 0
      %375 = vmatpush1.bf16.msra.mxu0 0
      %376 = vmatprep.subr.bf16.mxu0 0
      %377 = vmatpush1.bf16.msra.mxu0 0
      %378 = vmatprep.mubr.bf16.mxu0 0
      %379 = vmatmul.mubr.bf16.gmra.mrb[0].mxu0 %v331
      %v380 = vpop.f32.mrb[0].mxu0
      %v381 = vadd.f32 0.0, %v380
      %v382 = vpop.f32.mrb[0].mxu0
      %v383 = vpop.f32.mrb[0].mxu0
      %v384 = vadd.f32 0.0, %v383
      %v385 = vpop.f32.mrb[0].mxu0
      %386 = vmatprep.mubr.bf16.mxu0 0
      %387 = vmatmul.mubr.bf16.gmra.mrb[0].mxu0 %v334
      %v388 = vpop.f32.mrb[0].mxu0
      %v389 = vadd.f32 0.0, %v388
      %v390 = vpop.f32.mrb[0].mxu0
      %v391 = vpop.f32.mrb[0].mxu0
      %v392 = vadd.f32 0.0, %v391
      %v393 = vpop.f32.mrb[0].mxu0
      %394 = vmatprep.mubr.bf16.mxu0 0
      %395 = vmatmul.mubr.bf16.gmra.mrb[0].mxu0 %v337
      %v396 = vpop.f32.mrb[0].mxu0
      %v397 = vadd.f32 0.0, %v396
      %v398 = vpop.f32.mrb[0].mxu0
      %v399 = vpop.f32.mrb[0].mxu0
      %v400 = vadd.f32 0.0, %v399
      %v401 = vpop.f32.mrb[0].mxu0
      %402 = vmatprep.mubr.bf16.mxu0 0
      %403 = vmatmul.mubr.bf16.gmra.mrb[0].mxu0 %v340
      %v404 = vpop.f32.mrb[0].mxu0
      %v405 = vadd.f32 0.0, %v404
      %v406 = vpop.f32.mrb[0].mxu0
      %v407 = vpop.f32.mrb[0].mxu0
      %v408 = vadd.f32 0.0, %v407
      %v409 = vpop.f32.mrb[0].mxu0
      %410 = vdwg.mxu0
      %v419 = vunpack.c.l.b16 %v183
      %v420 = vunpack.c.l.b16 %v184
      %v421 = vunpack.c.l.b16 %v185
      %v422 = vunpack.c.l.b16 %v186
      %v423 = vunpack.c.l.b16 %v187
      %v424 = vunpack.c.l.b16 %v188
      %v425 = vunpack.c.l.b16 %v189
      %v426 = vunpack.c.l.b16 %v190
      %v427 = vpack.c.b16 %v420, %v419
      %v428 = vpack.c.b16 %v422, %v421
      %v429 = vpack.c.b16 %v424, %v423
      %v430 = vpack.c.b16 %v426, %v425
      %v432 = vsel %vm329, %v427, 0
      %v435 = vsel %vm329, %v428, 0
      %v438 = vsel %vm329, %v429, 0
      %v441 = vsel %vm329, %v430, 0
      %v444 = vsel %vm342, %v191, 0
      %446 = vmatprep.subr.bf16.mxu0 0
      %447 = vmatpush1.bf16.msra.mxu0 %v444
      %448 = vmatprep.subr.bf16.mxu0 0
      %449 = vmatpush1.bf16.msra.mxu0 0
      %450 = vmatprep.subr.bf16.mxu0 0
      %451 = vmatpush1.bf16.msra.mxu0 0
      %452 = vmatprep.subr.bf16.mxu0 0
      %453 = vmatpush1.bf16.msra.mxu0 0
      %454 = vmatprep.subr.bf16.mxu0 0
      %455 = vmatpush1.bf16.msra.mxu0 0
      %456 = vmatprep.subr.bf16.mxu0 0
      %457 = vmatpush1.bf16.msra.mxu0 0
      %458 = vmatprep.subr.bf16.mxu0 0
      %459 = vmatpush1.bf16.msra.mxu0 0
      %460 = vmatprep.subr.bf16.mxu0 0
      %461 = vmatpush1.bf16.msra.mxu0 0
      %462 = vmatprep.subr.bf16.mxu0 0
      %463 = vmatpush1.bf16.msra.mxu0 0
      %464 = vmatprep.subr.bf16.mxu0 0
      %465 = vmatpush1.bf16.msra.mxu0 0
      %466 = vmatprep.subr.bf16.mxu0 0
      %467 = vmatpush1.bf16.msra.mxu0 0
      %468 = vmatprep.subr.bf16.mxu0 0
      %469 = vmatpush1.bf16.msra.mxu0 0
      %470 = vmatprep.subr.bf16.mxu0 0
      %471 = vmatpush1.bf16.msra.mxu0 0
      %472 = vmatprep.subr.bf16.mxu0 0
      %473 = vmatpush1.bf16.msra.mxu0 0
      %474 = vmatprep.subr.bf16.mxu0 0
      %475 = vmatpush1.bf16.msra.mxu0 0
      %476 = vmatprep.subr.bf16.mxu0 0
      %477 = vmatpush1.bf16.msra.mxu0 0
      %478 = vmatprep.mubr.bf16.mxu0 0
      %479 = vmatmul.mubr.bf16.gmra.mrb[0].mxu0 %v432
      %v480 = vpop.f32.mrb[0].mxu0
      %v481 = vadd.f32 %v381, %v480
      %v482 = vpop.f32.mrb[0].mxu0
      %v483 = vpop.f32.mrb[0].mxu0
      %v484 = vadd.f32 %v384, %v483
      %v485 = vpop.f32.mrb[0].mxu0
      %486 = vmatprep.mubr.bf16.mxu0 0
      %487 = vmatmul.mubr.bf16.gmra.mrb[0].mxu0 %v435
      %v488 = vpop.f32.mrb[0].mxu0
      %v489 = vadd.f32 %v389, %v488
      %v490 = vpop.f32.mrb[0].mxu0
      %v491 = vpop.f32.mrb[0].mxu0
      %v492 = vadd.f32 %v392, %v491
      %v493 = vpop.f32.mrb[0].mxu0
      %494 = vmatprep.mubr.bf16.mxu0 0
      %495 = vmatmul.mubr.bf16.gmra.mrb[0].mxu0 %v438
      %v496 = vpop.f32.mrb[0].mxu0
      %v497 = vadd.f32 %v397, %v496
      %v498 = vpop.f32.mrb[0].mxu0
      %v499 = vpop.f32.mrb[0].mxu0
      %v500 = vadd.f32 %v400, %v499
      %v501 = vpop.f32.mrb[0].mxu0
      %502 = vmatprep.mubr.bf16.mxu0 0
      %503 = vmatmul.mubr.bf16.gmra.mrb[0].mxu0 %v441
      %v504 = vpop.f32.mrb[0].mxu0
      %v505 = vadd.f32 %v405, %v504
      %v506 = vpop.f32.mrb[0].mxu0
      %v507 = vpop.f32.mrb[0].mxu0
      %v508 = vadd.f32 %v408, %v507
      %v509 = vpop.f32.mrb[0].mxu0
      %510 = vdwg.mxu0
      %v511 = vld [vmem:[%s172] sm:$0xe]
      %v512 = vld [vmem:[%s172 + $0x8] sm:$0xe]
      %v513 = vld [vmem:[%s172 + $0x10] sm:$0xe]
      %v514 = vld [vmem:[%s172 + $0x18] sm:$0xe]
      %v515 = vld [vmem:[%s172 + $0x20] sm:$0xe]
      %v516 = vld [vmem:[%s172 + $0x28] sm:$0xe]
      %v517 = vld [vmem:[%s172 + $0x30] sm:$0xe]
      %v518 = vld [vmem:[%s172 + $0x38] sm:$0xe]
      %vm535 = vcmask 1042432
      %vm536 = vcmask 1046532
      %vm537 = vmor %vm535, %vm536
      %v538 = vrot.slane %v511, 5
      %v539 = vrot.slane %v538, 4
      %v540 = vrot.slane %v192, 5
      %v541 = vsel %vm537, %v539, %v540
      %v542 = vrot.slane %v512, 5
      %v543 = vrot.slane %v542, 4
      %v544 = vrot.slane %v193, 5
      %v545 = vsel %vm537, %v543, %v544
      %v546 = vrot.slane %v513, 5
      %v547 = vrot.slane %v546, 4
      %v548 = vrot.slane %v194, 5
      %v549 = vsel %vm537, %v547, %v548
      %v550 = vrot.slane %v514, 5
      %v551 = vrot.slane %v550, 4
      %v552 = vrot.slane %v195, 5
      %v553 = vsel %vm537, %v551, %v552
      %v554 = vrot.slane %v515, 5
      %v555 = vrot.slane %v554, 4
      %v556 = vrot.slane %v196, 5
      %v557 = vsel %vm537, %v555, %v556
      %v558 = vrot.slane %v516, 5
      %v559 = vrot.slane %v558, 4
      %v560 = vrot.slane %v197, 5
      %v561 = vsel %vm537, %v559, %v560
      %v562 = vrot.slane %v517, 5
      %v563 = vrot.slane %v562, 4
      %v564 = vrot.slane %v198, 5
      %v565 = vsel %vm537, %v563, %v564
      %v566 = vrot.slane %v518, 5
      %v567 = vrot.slane %v566, 4
      %v568 = vrot.slane %v199, 5
      %v569 = vsel %vm537, %v567, %v568
      %s570 = scalar_lea.vmem %s1, 8
      %v571 = vld [vmem:[%s570] sm:$0xf]
      %v572 = vunpack.c.l.b16 %v541
      %v573 = vunpack.c.l.b16 %v545
      %v574 = vunpack.c.l.b16 %v549
      %v575 = vunpack.c.l.b16 %v553
      %v576 = vunpack.c.l.b16 %v557
      %v577 = vunpack.c.l.b16 %v561
      %v578 = vunpack.c.l.b16 %v565
      %v579 = vunpack.c.l.b16 %v569
      %v580 = vpack.c.b16 %v573, %v572
      %v581 = vpack.c.b16 %v575, %v574
      %v582 = vpack.c.b16 %v577, %v576
      %v583 = vpack.c.b16 %v579, %v578
      %v585 = vsel %vm329, %v580, 0
      %v588 = vsel %vm329, %v581, 0
      %v591 = vsel %vm329, %v582, 0
      %v594 = vsel %vm329, %v583, 0
      %v597 = vsel %vm342, %v571, 0
      %599 = vmatprep.subr.bf16.mxu0 0
      %600 = vmatpush1.bf16.msra.mxu0 %v597
      %601 = vmatprep.subr.bf16.mxu0 0
      %602 = vmatpush1.bf16.msra.mxu0 0
      %603 = vmatprep.subr.bf16.mxu0 0
      %604 = vmatpush1.bf16.msra.mxu0 0
      %605 = vmatprep.subr.bf16.mxu0 0
      %606 = vmatpush1.bf16.msra.mxu0 0
      %607 = vmatprep.subr.bf16.mxu0 0
      %608 = vmatpush1.bf16.msra.mxu0 0
      %609 = vmatprep.subr.bf16.mxu0 0
      %610 = vmatpush1.bf16.msra.mxu0 0
      %611 = vmatprep.subr.bf16.mxu0 0
      %612 = vmatpush1.bf16.msra.mxu0 0
      %613 = vmatprep.subr.bf16.mxu0 0
      %614 = vmatpush1.bf16.msra.mxu0 0
      %615 = vmatprep.subr.bf16.mxu0 0
      %616 = vmatpush1.bf16.msra.mxu0 0
      %617 = vmatprep.subr.bf16.mxu0 0
      %618 = vmatpush1.bf16.msra.mxu0 0
      %619 = vmatprep.subr.bf16.mxu0 0
      %620 = vmatpush1.bf16.msra.mxu0 0
      %621 = vmatprep.subr.bf16.mxu0 0
      %622 = vmatpush1.bf16.msra.mxu0 0
      %623 = vmatprep.subr.bf16.mxu0 0
      %624 = vmatpush1.bf16.msra.mxu0 0
      %625 = vmatprep.subr.bf16.mxu0 0
      %626 = vmatpush1.bf16.msra.mxu0 0
      %627 = vmatprep.subr.bf16.mxu0 0
      %628 = vmatpush1.bf16.msra.mxu0 0
      %629 = vmatprep.subr.bf16.mxu0 0
      %630 = vmatpush1.bf16.msra.mxu0 0
      %631 = vmatprep.mubr.bf16.mxu0 0
      %632 = vmatmul.mubr.bf16.gmra.mrb[0].mxu0 %v585
      %v633 = vpop.f32.mrb[0].mxu0
      %v634 = vadd.f32 0.0, %v633
      %v635 = vpop.f32.mrb[0].mxu0
      %v636 = vpop.f32.mrb[0].mxu0
      %v637 = vadd.f32 0.0, %v636
      %v638 = vpop.f32.mrb[0].mxu0
      %639 = vmatprep.mubr.bf16.mxu0 0
      %640 = vmatmul.mubr.bf16.gmra.mrb[0].mxu0 %v588
      %v641 = vpop.f32.mrb[0].mxu0
      %v642 = vadd.f32 0.0, %v641
      %v643 = vpop.f32.mrb[0].mxu0
      %v644 = vpop.f32.mrb[0].mxu0
      %v645 = vadd.f32 0.0, %v644
      %v646 = vpop.f32.mrb[0].mxu0
      %647 = vmatprep.mubr.bf16.mxu0 0
      %648 = vmatmul.mubr.bf16.gmra.mrb[0].mxu0 %v591
      %v649 = vpop.f32.mrb[0].mxu0
      %v650 = vadd.f32 0.0, %v649
      %v651 = vpop.f32.mrb[0].mxu0
      %v652 = vpop.f32.mrb[0].mxu0
      %v653 = vadd.f32 0.0, %v652
      %v654 = vpop.f32.mrb[0].mxu0
      %655 = vmatprep.mubr.bf16.mxu0 0
      %656 = vmatmul.mubr.bf16.gmra.mrb[0].mxu0 %v594
      %v657 = vpop.f32.mrb[0].mxu0
      %v658 = vadd.f32 0.0, %v657
      %v659 = vpop.f32.mrb[0].mxu0
      %v660 = vpop.f32.mrb[0].mxu0
      %v661 = vadd.f32 0.0, %v660
      %v662 = vpop.f32.mrb[0].mxu0
      %663 = vdwg.mxu0
      %v664 = vadd.f32 %v481, %v634
      %v665 = vadd.f32 %v484, %v637
      %v666 = vadd.f32 %v489, %v642
      %v667 = vadd.f32 %v492, %v645
      %v668 = vadd.f32 %v497, %v650
      %v669 = vadd.f32 %v500, %v653
      %v670 = vadd.f32 %v505, %v658
      %v671 = vadd.f32 %v508, %v661
      %s672 = scalar_lea.vmem %s172, 8
      %v673 = vld [vmem:[%s672] sm:$0xf]
      %v674 = vld [vmem:[%s672 + $0x8] sm:$0xf]
      %v675 = vld [vmem:[%s672 + $0x10] sm:$0xf]
      %v676 = vld [vmem:[%s672 + $0x18] sm:$0xf]
      %v677 = vld [vmem:[%s672 + $0x20] sm:$0xf]
      %v678 = vld [vmem:[%s672 + $0x28] sm:$0xf]
      %v679 = vld [vmem:[%s672 + $0x30] sm:$0xf]
      %v680 = vld [vmem:[%s672 + $0x38] sm:$0xf]
      %s681 = scalar_lea.vmem %s1, 12
      %v682 = vld [vmem:[%s681] sm:$0xf]
      %v691 = vunpack.c.l.b16 %v673
      %v692 = vunpack.c.l.b16 %v674
      %v693 = vunpack.c.l.b16 %v675
      %v694 = vunpack.c.l.b16 %v676
      %v695 = vunpack.c.l.b16 %v677
      %v696 = vunpack.c.l.b16 %v678
      %v697 = vunpack.c.l.b16 %v679
      %v698 = vunpack.c.l.b16 %v680
      %v699 = vpack.c.b16 %v692, %v691
      %v700 = vpack.c.b16 %v694, %v693
      %v701 = vpack.c.b16 %v696, %v695
      %v702 = vpack.c.b16 %v698, %v697
      %v704 = vsel %vm329, %v699, 0
      %v707 = vsel %vm329, %v700, 0
      %v710 = vsel %vm329, %v701, 0
      %v713 = vsel %vm329, %v702, 0
      %v716 = vsel %vm342, %v682, 0
      %718 = vmatprep.subr.bf16.mxu0 0
      %719 = vmatpush1.bf16.msra.mxu0 %v716
      %720 = vmatprep.subr.bf16.mxu0 0
      %721 = vmatpush1.bf16.msra.mxu0 0
      %722 = vmatprep.subr.bf16.mxu0 0
      %723 = vmatpush1.bf16.msra.mxu0 0
      %724 = vmatprep.subr.bf16.mxu0 0
      %725 = vmatpush1.bf16.msra.mxu0 0
      %726 = vmatprep.subr.bf16.mxu0 0
      %727 = vmatpush1.bf16.msra.mxu0 0
      %728 = vmatprep.subr.bf16.mxu0 0
      %729 = vmatpush1.bf16.msra.mxu0 0
      %730 = vmatprep.subr.bf16.mxu0 0
      %731 = vmatpush1.bf16.msra.mxu0 0
      %732 = vmatprep.subr.bf16.mxu0 0
      %733 = vmatpush1.bf16.msra.mxu0 0
      %734 = vmatprep.subr.bf16.mxu0 0
      %735 = vmatpush1.bf16.msra.mxu0 0
      %736 = vmatprep.subr.bf16.mxu0 0
      %737 = vmatpush1.bf16.msra.mxu0 0
      %738 = vmatprep.subr.bf16.mxu0 0
      %739 = vmatpush1.bf16.msra.mxu0 0
      %740 = vmatprep.subr.bf16.mxu0 0
      %741 = vmatpush1.bf16.msra.mxu0 0
      %742 = vmatprep.subr.bf16.mxu0 0
      %743 = vmatpush1.bf16.msra.mxu0 0
      %744 = vmatprep.subr.bf16.mxu0 0
      %745 = vmatpush1.bf16.msra.mxu0 0
      %746 = vmatprep.subr.bf16.mxu0 0
      %747 = vmatpush1.bf16.msra.mxu0 0
      %748 = vmatprep.subr.bf16.mxu0 0
      %749 = vmatpush1.bf16.msra.mxu0 0
      %750 = vmatprep.mubr.bf16.mxu0 0
      %751 = vmatmul.mubr.bf16.gmra.mrb[0].mxu0 %v704
      %v752 = vpop.f32.mrb[0].mxu0
      %v753 = vadd.f32 0.0, %v752
      %v754 = vpop.f32.mrb[0].mxu0
      %v755 = vpop.f32.mrb[0].mxu0
      %v756 = vadd.f32 0.0, %v755
      %v757 = vpop.f32.mrb[0].mxu0
      %758 = vmatprep.mubr.bf16.mxu0 0
      %759 = vmatmul.mubr.bf16.gmra.mrb[0].mxu0 %v707
      %v760 = vpop.f32.mrb[0].mxu0
      %v761 = vadd.f32 0.0, %v760
      %v762 = vpop.f32.mrb[0].mxu0
      %v763 = vpop.f32.mrb[0].mxu0
      %v764 = vadd.f32 0.0, %v763
      %v765 = vpop.f32.mrb[0].mxu0
      %766 = vmatprep.mubr.bf16.mxu0 0
      %767 = vmatmul.mubr.bf16.gmra.mrb[0].mxu0 %v710
      %v768 = vpop.f32.mrb[0].mxu0
      %v769 = vadd.f32 0.0, %v768
      %v770 = vpop.f32.mrb[0].mxu0
      %v771 = vpop.f32.mrb[0].mxu0
      %v772 = vadd.f32 0.0, %v771
      %v773 = vpop.f32.mrb[0].mxu0
      %774 = vmatprep.mubr.bf16.mxu0 0
      %775 = vmatmul.mubr.bf16.gmra.mrb[0].mxu0 %v713
      %v776 = vpop.f32.mrb[0].mxu0
      %v777 = vadd.f32 0.0, %v776
      %v778 = vpop.f32.mrb[0].mxu0
      %v779 = vpop.f32.mrb[0].mxu0
      %v780 = vadd.f32 0.0, %v779
      %v781 = vpop.f32.mrb[0].mxu0
      %782 = vdwg.mxu0
      %v783 = vadd.f32 %v664, %v753
      %v784 = vadd.f32 %v665, %v756
      %v785 = vadd.f32 %v666, %v761
      %v786 = vadd.f32 %v667, %v764
      %v787 = vadd.f32 %v668, %v769
      %v788 = vadd.f32 %v669, %v772
      %v789 = vadd.f32 %v670, %v777
      %v790 = vadd.f32 %v671, %v780
      %v791 = vld [vmem:[%s672] sm:$0xf]
      %v792 = vld [vmem:[%s672 + $0x4] sm:$0x1]
      %v793 = vld [vmem:[%s672 + $0x8] sm:$0xf]
      %v794 = vld [vmem:[%s672 + $0xc] sm:$0x1]
      %v795 = vld [vmem:[%s672 + $0x10] sm:$0xf]
      %v796 = vld [vmem:[%s672 + $0x14] sm:$0x1]
      %v797 = vld [vmem:[%s672 + $0x18] sm:$0xf]
      %v798 = vld [vmem:[%s672 + $0x1c] sm:$0x1]
      %v799 = vld [vmem:[%s672 + $0x20] sm:$0xf]
      %v800 = vld [vmem:[%s672 + $0x24] sm:$0x1]
      %v801 = vld [vmem:[%s672 + $0x28] sm:$0xf]
      %v802 = vld [vmem:[%s672 + $0x2c] sm:$0x1]
      %v803 = vld [vmem:[%s672 + $0x30] sm:$0xf]
      %v804 = vld [vmem:[%s672 + $0x34] sm:$0x1]
      %v805 = vld [vmem:[%s672 + $0x38] sm:$0xf]
      %v806 = vld [vmem:[%s672 + $0x3c] sm:$0x1]
      %v808 = vshrl.u32 %v791, 16
      %v810 = vrot.slane %v808, 4
      %v811 = vshll.u32 %v791, 16
      %v813 = vrot.slane %v811, 5
      %v814 = vor.u32 %v810, %v813
      %v815 = vrot.slane %v814, 4
      %v817 = vshll.u32 %v792, 16
      %v819 = vrot.slane %v817, 5
      %v820 = vsel %vm202, %v815, %v819
      %v822 = vshrl.u32 %v793, 16
      %v824 = vrot.slane %v822, 4
      %v825 = vshll.u32 %v793, 16
      %v827 = vrot.slane %v825, 5
      %v828 = vor.u32 %v824, %v827
      %v829 = vrot.slane %v828, 4
      %v831 = vshll.u32 %v794, 16
      %v833 = vrot.slane %v831, 5
      %v834 = vsel %vm202, %v829, %v833
      %v836 = vshrl.u32 %v795, 16
      %v838 = vrot.slane %v836, 4
      %v839 = vshll.u32 %v795, 16
      %v841 = vrot.slane %v839, 5
      %v842 = vor.u32 %v838, %v841
      %v843 = vrot.slane %v842, 4
      %v845 = vshll.u32 %v796, 16
      %v847 = vrot.slane %v845, 5
      %v848 = vsel %vm202, %v843, %v847
      %v850 = vshrl.u32 %v797, 16
      %v852 = vrot.slane %v850, 4
      %v853 = vshll.u32 %v797, 16
      %v855 = vrot.slane %v853, 5
      %v856 = vor.u32 %v852, %v855
      %v857 = vrot.slane %v856, 4
      %v859 = vshll.u32 %v798, 16
      %v861 = vrot.slane %v859, 5
      %v862 = vsel %vm202, %v857, %v861
      %v864 = vshrl.u32 %v799, 16
      %v866 = vrot.slane %v864, 4
      %v867 = vshll.u32 %v799, 16
      %v869 = vrot.slane %v867, 5
      %v870 = vor.u32 %v866, %v869
      %v871 = vrot.slane %v870, 4
      %v873 = vshll.u32 %v800, 16
      %v875 = vrot.slane %v873, 5
      %v876 = vsel %vm202, %v871, %v875
      %v878 = vshrl.u32 %v801, 16
      %v880 = vrot.slane %v878, 4
      %v881 = vshll.u32 %v801, 16
      %v883 = vrot.slane %v881, 5
      %v884 = vor.u32 %v880, %v883
      %v885 = vrot.slane %v884, 4
      %v887 = vshll.u32 %v802, 16
      %v889 = vrot.slane %v887, 5
      %v890 = vsel %vm202, %v885, %v889
      %v892 = vshrl.u32 %v803, 16
      %v894 = vrot.slane %v892, 4
      %v895 = vshll.u32 %v803, 16
      %v897 = vrot.slane %v895, 5
      %v898 = vor.u32 %v894, %v897
      %v899 = vrot.slane %v898, 4
      %v901 = vshll.u32 %v804, 16
      %v903 = vrot.slane %v901, 5
      %v904 = vsel %vm202, %v899, %v903
      %v906 = vshrl.u32 %v805, 16
      %v908 = vrot.slane %v906, 4
      %v909 = vshll.u32 %v805, 16
      %v911 = vrot.slane %v909, 5
      %v912 = vor.u32 %v908, %v911
      %v913 = vrot.slane %v912, 4
      %v915 = vshll.u32 %v806, 16
      %v917 = vrot.slane %v915, 5
      %v918 = vsel %vm202, %v913, %v917
      %s919 = scalar_lea.vmem %s1, 16
      %v920 = vld [vmem:[%s919] sm:$0xf]
      %v921 = vunpack.c.l.b16 %v820
      %v922 = vunpack.c.l.b16 %v834
      %v923 = vunpack.c.l.b16 %v848
      %v924 = vunpack.c.l.b16 %v862
      %v925 = vunpack.c.l.b16 %v876
      %v926 = vunpack.c.l.b16 %v890
      %v927 = vunpack.c.l.b16 %v904
      %v928 = vunpack.c.l.b16 %v918
      %v929 = vpack.c.b16 %v922, %v921
      %v930 = vpack.c.b16 %v924, %v923
      %v931 = vpack.c.b16 %v926, %v925
      %v932 = vpack.c.b16 %v928, %v927
      %v934 = vsel %vm329, %v929, 0
      %v937 = vsel %vm329, %v930, 0
      %v940 = vsel %vm329, %v931, 0
      %v943 = vsel %vm329, %v932, 0
      %v946 = vsel %vm342, %v920, 0
      %948 = vmatprep.subr.bf16.mxu0 0
      %949 = vmatpush1.bf16.msra.mxu0 %v946
      %950 = vmatprep.subr.bf16.mxu0 0
      %951 = vmatpush1.bf16.msra.mxu0 0
      %952 = vmatprep.subr.bf16.mxu0 0
      %953 = vmatpush1.bf16.msra.mxu0 0
      %954 = vmatprep.subr.bf16.mxu0 0
      %955 = vmatpush1.bf16.msra.mxu0 0
      %956 = vmatprep.subr.bf16.mxu0 0
      %957 = vmatpush1.bf16.msra.mxu0 0
      %958 = vmatprep.subr.bf16.mxu0 0
      %959 = vmatpush1.bf16.msra.mxu0 0
      %960 = vmatprep.subr.bf16.mxu0 0
      %961 = vmatpush1.bf16.msra.mxu0 0
      %962 = vmatprep.subr.bf16.mxu0 0
      %963 = vmatpush1.bf16.msra.mxu0 0
      %964 = vmatprep.subr.bf16.mxu0 0
      %965 = vmatpush1.bf16.msra.mxu0 0
      %966 = vmatprep.subr.bf16.mxu0 0
      %967 = vmatpush1.bf16.msra.mxu0 0
      %968 = vmatprep.subr.bf16.mxu0 0
      %969 = vmatpush1.bf16.msra.mxu0 0
      %970 = vmatprep.subr.bf16.mxu0 0
      %971 = vmatpush1.bf16.msra.mxu0 0
      %972 = vmatprep.subr.bf16.mxu0 0
      %973 = vmatpush1.bf16.msra.mxu0 0
      %974 = vmatprep.subr.bf16.mxu0 0
      %975 = vmatpush1.bf16.msra.mxu0 0
      %976 = vmatprep.subr.bf16.mxu0 0
      %977 = vmatpush1.bf16.msra.mxu0 0
      %978 = vmatprep.subr.bf16.mxu0 0
      %979 = vmatpush1.bf16.msra.mxu0 0
      %980 = vmatprep.mubr.bf16.mxu0 0
      %981 = vmatmul.mubr.bf16.gmra.mrb[0].mxu0 %v934
      %v982 = vpop.f32.mrb[0].mxu0
      %v983 = vadd.f32 0.0, %v982
      %v984 = vpop.f32.mrb[0].mxu0
      %v985 = vpop.f32.mrb[0].mxu0
      %v986 = vadd.f32 0.0, %v985
      %v987 = vpop.f32.mrb[0].mxu0
      %988 = vmatprep.mubr.bf16.mxu0 0
      %989 = vmatmul.mubr.bf16.gmra.mrb[0].mxu0 %v937
      %v990 = vpop.f32.mrb[0].mxu0
      %v991 = vadd.f32 0.0, %v990
      %v992 = vpop.f32.mrb[0].mxu0
      %v993 = vpop.f32.mrb[0].mxu0
      %v994 = vadd.f32 0.0, %v993
      %v995 = vpop.f32.mrb[0].mxu0
      %996 = vmatprep.mubr.bf16.mxu0 0
      %997 = vmatmul.mubr.bf16.gmra.mrb[0].mxu0 %v940
      %v998 = vpop.f32.mrb[0].mxu0
      %v999 = vadd.f32 0.0, %v998
      %v1000 = vpop.f32.mrb[0].mxu0
      %v1001 = vpop.f32.mrb[0].mxu0
      %v1002 = vadd.f32 0.0, %v1001
      %v1003 = vpop.f32.mrb[0].mxu0
      %1004 = vmatprep.mubr.bf16.mxu0 0
      %1005 = vmatmul.mubr.bf16.gmra.mrb[0].mxu0 %v943
      %v1006 = vpop.f32.mrb[0].mxu0
      %v1007 = vadd.f32 0.0, %v1006
      %v1008 = vpop.f32.mrb[0].mxu0
      %v1009 = vpop.f32.mrb[0].mxu0
      %v1010 = vadd.f32 0.0, %v1009
      %v1011 = vpop.f32.mrb[0].mxu0
      %1012 = vdwg.mxu0
      %v1013 = vadd.f32 %v783, %v983
      %v1014 = vadd.f32 %v784, %v986
      %v1015 = vadd.f32 %v785, %v991
      %v1016 = vadd.f32 %v786, %v994
      %v1017 = vadd.f32 %v787, %v999
      %v1018 = vadd.f32 %v788, %v1002
      %v1019 = vadd.f32 %v789, %v1007
      %v1020 = vadd.f32 %v790, %v1010
      %v1021 = vld [vmem:[%s672] sm:$0xe]
      %v1022 = vld [vmem:[%s672 + $0x8] sm:$0xe]
      %v1023 = vld [vmem:[%s672 + $0x10] sm:$0xe]
      %v1024 = vld [vmem:[%s672 + $0x18] sm:$0xe]
      %v1025 = vld [vmem:[%s672 + $0x20] sm:$0xe]
      %v1026 = vld [vmem:[%s672 + $0x28] sm:$0xe]
      %v1027 = vld [vmem:[%s672 + $0x30] sm:$0xe]
      %v1028 = vld [vmem:[%s672 + $0x38] sm:$0xe]
      %v1045 = vrot.slane %v1021, 5
      %v1046 = vrot.slane %v1045, 4
      %v1047 = vrot.slane %v792, 5
      %v1048 = vsel %vm537, %v1046, %v1047
      %v1049 = vrot.slane %v1022, 5
      %v1050 = vrot.slane %v1049, 4
      %v1051 = vrot.slane %v794, 5
      %v1052 = vsel %vm537, %v1050, %v1051
      %v1053 = vrot.slane %v1023, 5
      %v1054 = vrot.slane %v1053, 4
      %v1055 = vrot.slane %v796, 5
      %v1056 = vsel %vm537, %v1054, %v1055
      %v1057 = vrot.slane %v1024, 5
      %v1058 = vrot.slane %v1057, 4
      %v1059 = vrot.slane %v798, 5
      %v1060 = vsel %vm537, %v1058, %v1059
      %v1061 = vrot.slane %v1025, 5
      %v1062 = vrot.slane %v1061, 4
      %v1063 = vrot.slane %v800, 5
      %v1064 = vsel %vm537, %v1062, %v1063
      %v1065 = vrot.slane %v1026, 5
      %v1066 = vrot.slane %v1065, 4
      %v1067 = vrot.slane %v802, 5
      %v1068 = vsel %vm537, %v1066, %v1067
      %v1069 = vrot.slane %v1027, 5
      %v1070 = vrot.slane %v1069, 4
      %v1071 = vrot.slane %v804, 5
      %v1072 = vsel %vm537, %v1070, %v1071
      %v1073 = vrot.slane %v1028, 5
      %v1074 = vrot.slane %v1073, 4
      %v1075 = vrot.slane %v806, 5
      %v1076 = vsel %vm537, %v1074, %v1075
      %s1077 = scalar_lea.vmem %s1, 20
      %v1078 = vld [vmem:[%s1077] sm:$0xf]
      %v1079 = vunpack.c.l.b16 %v1048
      %v1080 = vunpack.c.l.b16 %v1052
      %v1081 = vunpack.c.l.b16 %v1056
      %v1082 = vunpack.c.l.b16 %v1060
      %v1083 = vunpack.c.l.b16 %v1064
      %v1084 = vunpack.c.l.b16 %v1068
      %v1085 = vunpack.c.l.b16 %v1072
      %v1086 = vunpack.c.l.b16 %v1076
      %v1087 = vpack.c.b16 %v1080, %v1079
      %v1088 = vpack.c.b16 %v1082, %v1081
      %v1089 = vpack.c.b16 %v1084, %v1083
      %v1090 = vpack.c.b16 %v1086, %v1085
      %v1092 = vsel %vm329, %v1087, 0
      %v1095 = vsel %vm329, %v1088, 0
      %v1098 = vsel %vm329, %v1089, 0
      %v1101 = vsel %vm329, %v1090, 0
      %v1104 = vsel %vm342, %v1078, 0
      %1106 = vmatprep.subr.bf16.mxu0 0
      %1107 = vmatpush1.bf16.msra.mxu0 %v1104
      %1108 = vmatprep.subr.bf16.mxu0 0
      %1109 = vmatpush1.bf16.msra.mxu0 0
      %1110 = vmatprep.subr.bf16.mxu0 0
      %1111 = vmatpush1.bf16.msra.mxu0 0
      %1112 = vmatprep.subr.bf16.mxu0 0
      %1113 = vmatpush1.bf16.msra.mxu0 0
      %1114 = vmatprep.subr.bf16.mxu0 0
      %1115 = vmatpush1.bf16.msra.mxu0 0
      %1116 = vmatprep.subr.bf16.mxu0 0
      %1117 = vmatpush1.bf16.msra.mxu0 0
      %1118 = vmatprep.subr.bf16.mxu0 0
      %1119 = vmatpush1.bf16.msra.mxu0 0
      %1120 = vmatprep.subr.bf16.mxu0 0
      %1121 = vmatpush1.bf16.msra.mxu0 0
      %1122 = vmatprep.subr.bf16.mxu0 0
      %1123 = vmatpush1.bf16.msra.mxu0 0
      %1124 = vmatprep.subr.bf16.mxu0 0
      %1125 = vmatpush1.bf16.msra.mxu0 0
      %1126 = vmatprep.subr.bf16.mxu0 0
      %1127 = vmatpush1.bf16.msra.mxu0 0
      %1128 = vmatprep.subr.bf16.mxu0 0
      %1129 = vmatpush1.bf16.msra.mxu0 0
      %1130 = vmatprep.subr.bf16.mxu0 0
      %1131 = vmatpush1.bf16.msra.mxu0 0
      %1132 = vmatprep.subr.bf16.mxu0 0
      %1133 = vmatpush1.bf16.msra.mxu0 0
      %1134 = vmatprep.subr.bf16.mxu0 0
      %1135 = vmatpush1.bf16.msra.mxu0 0
      %1136 = vmatprep.subr.bf16.mxu0 0
      %1137 = vmatpush1.bf16.msra.mxu0 0
      %1138 = vmatprep.mubr.bf16.mxu0 0
      %1139 = vmatmul.mubr.bf16.gmra.mrb[0].mxu0 %v1092
      %v1140 = vpop.f32.mrb[0].mxu0
      %v1141 = vadd.f32 0.0, %v1140
      %v1142 = vpop.f32.mrb[0].mxu0
      %v1143 = vpop.f32.mrb[0].mxu0
      %v1144 = vadd.f32 0.0, %v1143
      %v1145 = vpop.f32.mrb[0].mxu0
      %1146 = vmatprep.mubr.bf16.mxu0 0
      %1147 = vmatmul.mubr.bf16.gmra.mrb[0].mxu0 %v1095
      %v1148 = vpop.f32.mrb[0].mxu0
      %v1149 = vadd.f32 0.0, %v1148
      %v1150 = vpop.f32.mrb[0].mxu0
      %v1151 = vpop.f32.mrb[0].mxu0
      %v1152 = vadd.f32 0.0, %v1151
      %v1153 = vpop.f32.mrb[0].mxu0
      %1154 = vmatprep.mubr.bf16.mxu0 0
      %1155 = vmatmul.mubr.bf16.gmra.mrb[0].mxu0 %v1098
      %v1156 = vpop.f32.mrb[0].mxu0
      %v1157 = vadd.f32 0.0, %v1156
      %v1158 = vpop.f32.mrb[0].mxu0
      %v1159 = vpop.f32.mrb[0].mxu0
      %v1160 = vadd.f32 0.0, %v1159
      %v1161 = vpop.f32.mrb[0].mxu0
      %1162 = vmatprep.mubr.bf16.mxu0 0
      %1163 = vmatmul.mubr.bf16.gmra.mrb[0].mxu0 %v1101
      %v1164 = vpop.f32.mrb[0].mxu0
      %v1165 = vadd.f32 0.0, %v1164
      %v1166 = vpop.f32.mrb[0].mxu0
      %v1167 = vpop.f32.mrb[0].mxu0
      %v1168 = vadd.f32 0.0, %v1167
      %v1169 = vpop.f32.mrb[0].mxu0
      %1170 = vdwg.mxu0
      %v1171 = vadd.f32 %v1013, %v1141
      %v1172 = vadd.f32 %v1014, %v1144
      %v1173 = vadd.f32 %v1015, %v1149
      %v1174 = vadd.f32 %v1016, %v1152
      %v1175 = vadd.f32 %v1017, %v1157
      %v1176 = vadd.f32 %v1018, %v1160
      %v1177 = vadd.f32 %v1019, %v1165
      %v1178 = vadd.f32 %v1020, %v1168
      %s1179 = scalar_lea.vmem %s172, 16
      %v1180 = vld [vmem:[%s1179] sm:$0xf]
      %v1181 = vld [vmem:[%s1179 + $0x8] sm:$0xf]
      %v1182 = vld [vmem:[%s1179 + $0x10] sm:$0xf]
      %v1183 = vld [vmem:[%s1179 + $0x18] sm:$0xf]
      %v1184 = vld [vmem:[%s1179 + $0x20] sm:$0xf]
      %v1185 = vld [vmem:[%s1179 + $0x28] sm:$0xf]
      %v1186 = vld [vmem:[%s1179 + $0x30] sm:$0xf]
      %v1187 = vld [vmem:[%s1179 + $0x38] sm:$0xf]
      %s1188 = scalar_lea.vmem %s1, 24
      %v1189 = vld [vmem:[%s1188] sm:$0xf]
      %v1198 = vunpack.c.l.b16 %v1180
      %v1199 = vunpack.c.l.b16 %v1181
      %v1200 = vunpack.c.l.b16 %v1182
      %v1201 = vunpack.c.l.b16 %v1183
      %v1202 = vunpack.c.l.b16 %v1184
      %v1203 = vunpack.c.l.b16 %v1185
      %v1204 = vunpack.c.l.b16 %v1186
      %v1205 = vunpack.c.l.b16 %v1187
      %v1206 = vpack.c.b16 %v1199, %v1198
      %v1207 = vpack.c.b16 %v1201, %v1200
      %v1208 = vpack.c.b16 %v1203, %v1202
      %v1209 = vpack.c.b16 %v1205, %v1204
      %v1211 = vsel %vm329, %v1206, 0
      %v1214 = vsel %vm329, %v1207, 0
      %v1217 = vsel %vm329, %v1208, 0
      %v1220 = vsel %vm329, %v1209, 0
      %v1223 = vsel %vm342, %v1189, 0
      %1225 = vmatprep.subr.bf16.mxu0 0
      %1226 = vmatpush1.bf16.msra.mxu0 %v1223
      %1227 = vmatprep.subr.bf16.mxu0 0
      %1228 = vmatpush1.bf16.msra.mxu0 0
      %1229 = vmatprep.subr.bf16.mxu0 0
      %1230 = vmatpush1.bf16.msra.mxu0 0
      %1231 = vmatprep.subr.bf16.mxu0 0
      %1232 = vmatpush1.bf16.msra.mxu0 0
      %1233 = vmatprep.subr.bf16.mxu0 0
      %1234 = vmatpush1.bf16.msra.mxu0 0
      %1235 = vmatprep.subr.bf16.mxu0 0
      %1236 = vmatpush1.bf16.msra.mxu0 0
      %1237 = vmatprep.subr.bf16.mxu0 0
      %1238 = vmatpush1.bf16.msra.mxu0 0
      %1239 = vmatprep.subr.bf16.mxu0 0
      %1240 = vmatpush1.bf16.msra.mxu0 0
      %1241 = vmatprep.subr.bf16.mxu0 0
      %1242 = vmatpush1.bf16.msra.mxu0 0
      %1243 = vmatprep.subr.bf16.mxu0 0
      %1244 = vmatpush1.bf16.msra.mxu0 0
      %1245 = vmatprep.subr.bf16.mxu0 0
      %1246 = vmatpush1.bf16.msra.mxu0 0
      %1247 = vmatprep.subr.bf16.mxu0 0
      %1248 = vmatpush1.bf16.msra.mxu0 0
      %1249 = vmatprep.subr.bf16.mxu0 0
      %1250 = vmatpush1.bf16.msra.mxu0 0
      %1251 = vmatprep.subr.bf16.mxu0 0
      %1252 = vmatpush1.bf16.msra.mxu0 0
      %1253 = vmatprep.subr.bf16.mxu0 0
      %1254 = vmatpush1.bf16.msra.mxu0 0
      %1255 = vmatprep.subr.bf16.mxu0 0
      %1256 = vmatpush1.bf16.msra.mxu0 0
      %1257 = vmatprep.mubr.bf16.mxu0 0
      %1258 = vmatmul.mubr.bf16.gmra.mrb[0].mxu0 %v1211
      %v1259 = vpop.f32.mrb[0].mxu0
      %v1260 = vadd.f32 0.0, %v1259
      %v1261 = vpop.f32.mrb[0].mxu0
      %v1262 = vpop.f32.mrb[0].mxu0
      %v1263 = vadd.f32 0.0, %v1262
      %v1264 = vpop.f32.mrb[0].mxu0
      %1265 = vmatprep.mubr.bf16.mxu0 0
      %1266 = vmatmul.mubr.bf16.gmra.mrb[0].mxu0 %v1214
      %v1267 = vpop.f32.mrb[0].mxu0
      %v1268 = vadd.f32 0.0, %v1267
      %v1269 = vpop.f32.mrb[0].mxu0
      %v1270 = vpop.f32.mrb[0].mxu0
      %v1271 = vadd.f32 0.0, %v1270
      %v1272 = vpop.f32.mrb[0].mxu0
      %1273 = vmatprep.mubr.bf16.mxu0 0
      %1274 = vmatmul.mubr.bf16.gmra.mrb[0].mxu0 %v1217
      %v1275 = vpop.f32.mrb[0].mxu0
      %v1276 = vadd.f32 0.0, %v1275
      %v1277 = vpop.f32.mrb[0].mxu0
      %v1278 = vpop.f32.mrb[0].mxu0
      %v1279 = vadd.f32 0.0, %v1278
      %v1280 = vpop.f32.mrb[0].mxu0
      %1281 = vmatprep.mubr.bf16.mxu0 0
      %1282 = vmatmul.mubr.bf16.gmra.mrb[0].mxu0 %v1220
      %v1283 = vpop.f32.mrb[0].mxu0
      %v1284 = vadd.f32 0.0, %v1283
      %v1285 = vpop.f32.mrb[0].mxu0
      %v1286 = vpop.f32.mrb[0].mxu0
      %v1287 = vadd.f32 0.0, %v1286
      %v1288 = vpop.f32.mrb[0].mxu0
      %1289 = vdwg.mxu0
      %v1290 = vadd.f32 %v1171, %v1260
      %v1291 = vadd.f32 %v1172, %v1263
      %v1292 = vadd.f32 %v1173, %v1268
      %v1293 = vadd.f32 %v1174, %v1271
      %v1294 = vadd.f32 %v1175, %v1276
      %v1295 = vadd.f32 %v1176, %v1279
      %v1296 = vadd.f32 %v1177, %v1284
      %v1297 = vadd.f32 %v1178, %v1287
      %v1298 = vld [vmem:[%s1179] sm:$0xf]
      %v1299 = vld [vmem:[%s1179 + $0x4] sm:$0x1]
      %v1300 = vld [vmem:[%s1179 + $0x8] sm:$0xf]
      %v1301 = vld [vmem:[%s1179 + $0xc] sm:$0x1]
      %v1302 = vld [vmem:[%s1179 + $0x10] sm:$0xf]
      %v1303 = vld [vmem:[%s1179 + $0x14] sm:$0x1]
      %v1304 = vld [vmem:[%s1179 + $0x18] sm:$0xf]
      %v1305 = vld [vmem:[%s1179 + $0x1c] sm:$0x1]
      %v1306 = vld [vmem:[%s1179 + $0x20] sm:$0xf]
      %v1307 = vld [vmem:[%s1179 + $0x24] sm:$0x1]
      %v1308 = vld [vmem:[%s1179 + $0x28] sm:$0xf]
      %v1309 = vld [vmem:[%s1179 + $0x2c] sm:$0x1]
      %v1310 = vld [vmem:[%s1179 + $0x30] sm:$0xf]
      %v1311 = vld [vmem:[%s1179 + $0x34] sm:$0x1]
      %v1312 = vld [vmem:[%s1179 + $0x38] sm:$0xf]
      %v1313 = vld [vmem:[%s1179 + $0x3c] sm:$0x1]
      %v1315 = vshrl.u32 %v1298, 16
      %v1317 = vrot.slane %v1315, 4
      %v1318 = vshll.u32 %v1298, 16
      %v1320 = vrot.slane %v1318, 5
      %v1321 = vor.u32 %v1317, %v1320
      %v1322 = vrot.slane %v1321, 4
      %v1324 = vshll.u32 %v1299, 16
      %v1326 = vrot.slane %v1324, 5
      %v1327 = vsel %vm202, %v1322, %v1326
      %v1329 = vshrl.u32 %v1300, 16
      %v1331 = vrot.slane %v1329, 4
      %v1332 = vshll.u32 %v1300, 16
      %v1334 = vrot.slane %v1332, 5
      %v1335 = vor.u32 %v1331, %v1334
      %v1336 = vrot.slane %v1335, 4
      %v1338 = vshll.u32 %v1301, 16
      %v1340 = vrot.slane %v1338, 5
      %v1341 = vsel %vm202, %v1336, %v1340
      %v1343 = vshrl.u32 %v1302, 16
      %v1345 = vrot.slane %v1343, 4
      %v1346 = vshll.u32 %v1302, 16
      %v1348 = vrot.slane %v1346, 5
      %v1349 = vor.u32 %v1345, %v1348
      %v1350 = vrot.slane %v1349, 4
      %v1352 = vshll.u32 %v1303, 16
      %v1354 = vrot.slane %v1352, 5
      %v1355 = vsel %vm202, %v1350, %v1354
      %v1357 = vshrl.u32 %v1304, 16
      %v1359 = vrot.slane %v1357, 4
      %v1360 = vshll.u32 %v1304, 16
      %v1362 = vrot.slane %v1360, 5
      %v1363 = vor.u32 %v1359, %v1362
      %v1364 = vrot.slane %v1363, 4
      %v1366 = vshll.u32 %v1305, 16
      %v1368 = vrot.slane %v1366, 5
      %v1369 = vsel %vm202, %v1364, %v1368
      %v1371 = vshrl.u32 %v1306, 16
      %v1373 = vrot.slane %v1371, 4
      %v1374 = vshll.u32 %v1306, 16
      %v1376 = vrot.slane %v1374, 5
      %v1377 = vor.u32 %v1373, %v1376
      %v1378 = vrot.slane %v1377, 4
      %v1380 = vshll.u32 %v1307, 16
      %v1382 = vrot.slane %v1380, 5
      %v1383 = vsel %vm202, %v1378, %v1382
      %v1385 = vshrl.u32 %v1308, 16
      %v1387 = vrot.slane %v1385, 4
      %v1388 = vshll.u32 %v1308, 16
      %v1390 = vrot.slane %v1388, 5
      %v1391 = vor.u32 %v1387, %v1390
      %v1392 = vrot.slane %v1391, 4
      %v1394 = vshll.u32 %v1309, 16
      %v1396 = vrot.slane %v1394, 5
      %v1397 = vsel %vm202, %v1392, %v1396
      %v1399 = vshrl.u32 %v1310, 16
      %v1401 = vrot.slane %v1399, 4
      %v1402 = vshll.u32 %v1310, 16
      %v1404 = vrot.slane %v1402, 5
      %v1405 = vor.u32 %v1401, %v1404
      %v1406 = vrot.slane %v1405, 4
      %v1408 = vshll.u32 %v1311, 16
      %v1410 = vrot.slane %v1408, 5
      %v1411 = vsel %vm202, %v1406, %v1410
      %v1413 = vshrl.u32 %v1312, 16
      %v1415 = vrot.slane %v1413, 4
      %v1416 = vshll.u32 %v1312, 16
      %v1418 = vrot.slane %v1416, 5
      %v1419 = vor.u32 %v1415, %v1418
      %v1420 = vrot.slane %v1419, 4
      %v1422 = vshll.u32 %v1313, 16
      %v1424 = vrot.slane %v1422, 5
      %v1425 = vsel %vm202, %v1420, %v1424
      %s1426 = scalar_lea.vmem %s1, 28
      %v1427 = vld [vmem:[%s1426] sm:$0xf]
      %v1428 = vunpack.c.l.b16 %v1327
      %v1429 = vunpack.c.l.b16 %v1341
      %v1430 = vunpack.c.l.b16 %v1355
      %v1431 = vunpack.c.l.b16 %v1369
      %v1432 = vunpack.c.l.b16 %v1383
      %v1433 = vunpack.c.l.b16 %v1397
      %v1434 = vunpack.c.l.b16 %v1411
      %v1435 = vunpack.c.l.b16 %v1425
      %v1436 = vpack.c.b16 %v1429, %v1428
      %v1437 = vpack.c.b16 %v1431, %v1430
      %v1438 = vpack.c.b16 %v1433, %v1432
      %v1439 = vpack.c.b16 %v1435, %v1434
      %v1441 = vsel %vm329, %v1436, 0
      %v1444 = vsel %vm329, %v1437, 0
      %v1447 = vsel %vm329, %v1438, 0
      %v1450 = vsel %vm329, %v1439, 0
      %v1453 = vsel %vm342, %v1427, 0
      %1455 = vmatprep.subr.bf16.mxu0 0
      %1456 = vmatpush1.bf16.msra.mxu0 %v1453
      %1457 = vmatprep.subr.bf16.mxu0 0
      %1458 = vmatpush1.bf16.msra.mxu0 0
      %1459 = vmatprep.subr.bf16.mxu0 0
      %1460 = vmatpush1.bf16.msra.mxu0 0
      %1461 = vmatprep.subr.bf16.mxu0 0
      %1462 = vmatpush1.bf16.msra.mxu0 0
      %1463 = vmatprep.subr.bf16.mxu0 0
      %1464 = vmatpush1.bf16.msra.mxu0 0
      %1465 = vmatprep.subr.bf16.mxu0 0
      %1466 = vmatpush1.bf16.msra.mxu0 0
      %1467 = vmatprep.subr.bf16.mxu0 0
      %1468 = vmatpush1.bf16.msra.mxu0 0
      %1469 = vmatprep.subr.bf16.mxu0 0
      %1470 = vmatpush1.bf16.msra.mxu0 0
      %1471 = vmatprep.subr.bf16.mxu0 0
      %1472 = vmatpush1.bf16.msra.mxu0 0
      %1473 = vmatprep.subr.bf16.mxu0 0
      %1474 = vmatpush1.bf16.msra.mxu0 0
      %1475 = vmatprep.subr.bf16.mxu0 0
      %1476 = vmatpush1.bf16.msra.mxu0 0
      %1477 = vmatprep.subr.bf16.mxu0 0
      %1478 = vmatpush1.bf16.msra.mxu0 0
      %1479 = vmatprep.subr.bf16.mxu0 0
      %1480 = vmatpush1.bf16.msra.mxu0 0
      %1481 = vmatprep.subr.bf16.mxu0 0
      %1482 = vmatpush1.bf16.msra.mxu0 0
      %1483 = vmatprep.subr.bf16.mxu0 0
      %1484 = vmatpush1.bf16.msra.mxu0 0
      %1485 = vmatprep.subr.bf16.mxu0 0
      %1486 = vmatpush1.bf16.msra.mxu0 0
      %1487 = vmatprep.mubr.bf16.mxu0 0
      %1488 = vmatmul.mubr.bf16.gmra.mrb[0].mxu0 %v1441
      %v1489 = vpop.f32.mrb[0].mxu0
      %v1490 = vadd.f32 0.0, %v1489
      %v1491 = vpop.f32.mrb[0].mxu0
      %v1492 = vpop.f32.mrb[0].mxu0
      %v1493 = vadd.f32 0.0, %v1492
      %v1494 = vpop.f32.mrb[0].mxu0
      %1495 = vmatprep.mubr.bf16.mxu0 0
      %1496 = vmatmul.mubr.bf16.gmra.mrb[0].mxu0 %v1444
      %v1497 = vpop.f32.mrb[0].mxu0
      %v1498 = vadd.f32 0.0, %v1497
      %v1499 = vpop.f32.mrb[0].mxu0
      %v1500 = vpop.f32.mrb[0].mxu0
      %v1501 = vadd.f32 0.0, %v1500
      %v1502 = vpop.f32.mrb[0].mxu0
      %1503 = vmatprep.mubr.bf16.mxu0 0
      %1504 = vmatmul.mubr.bf16.gmra.mrb[0].mxu0 %v1447
      %v1505 = vpop.f32.mrb[0].mxu0
      %v1506 = vadd.f32 0.0, %v1505
      %v1507 = vpop.f32.mrb[0].mxu0
      %v1508 = vpop.f32.mrb[0].mxu0
      %v1509 = vadd.f32 0.0, %v1508
      %v1510 = vpop.f32.mrb[0].mxu0
      %1511 = vmatprep.mubr.bf16.mxu0 0
      %1512 = vmatmul.mubr.bf16.gmra.mrb[0].mxu0 %v1450
      %v1513 = vpop.f32.mrb[0].mxu0
      %v1514 = vadd.f32 0.0, %v1513
      %v1515 = vpop.f32.mrb[0].mxu0
      %v1516 = vpop.f32.mrb[0].mxu0
      %v1517 = vadd.f32 0.0, %v1516
      %v1518 = vpop.f32.mrb[0].mxu0
      %1519 = vdwg.mxu0
      %v1520 = vadd.f32 %v1290, %v1490
      %v1521 = vadd.f32 %v1291, %v1493
      %v1522 = vadd.f32 %v1292, %v1498
      %v1523 = vadd.f32 %v1293, %v1501
      %v1524 = vadd.f32 %v1294, %v1506
      %v1525 = vadd.f32 %v1295, %v1509
      %v1526 = vadd.f32 %v1296, %v1514
      %v1527 = vadd.f32 %v1297, %v1517
      %v1528 = vld [vmem:[%s1179] sm:$0xe]
      %v1529 = vld [vmem:[%s1179 + $0x8] sm:$0xe]
      %v1530 = vld [vmem:[%s1179 + $0x10] sm:$0xe]
      %v1531 = vld [vmem:[%s1179 + $0x18] sm:$0xe]
      %v1532 = vld [vmem:[%s1179 + $0x20] sm:$0xe]
      %v1533 = vld [vmem:[%s1179 + $0x28] sm:$0xe]
      %v1534 = vld [vmem:[%s1179 + $0x30] sm:$0xe]
      %v1535 = vld [vmem:[%s1179 + $0x38] sm:$0xe]
      %v1552 = vrot.slane %v1528, 5
      %v1553 = vrot.slane %v1552, 4
      %v1554 = vrot.slane %v1299, 5
      %v1555 = vsel %vm537, %v1553, %v1554
      %v1556 = vrot.slane %v1529, 5
      %v1557 = vrot.slane %v1556, 4
      %v1558 = vrot.slane %v1301, 5
      %v1559 = vsel %vm537, %v1557, %v1558
      %v1560 = vrot.slane %v1530, 5
      %v1561 = vrot.slane %v1560, 4
      %v1562 = vrot.slane %v1303, 5
      %v1563 = vsel %vm537, %v1561, %v1562
      %v1564 = vrot.slane %v1531, 5
      %v1565 = vrot.slane %v1564, 4
      %v1566 = vrot.slane %v1305, 5
      %v1567 = vsel %vm537, %v1565, %v1566
      %v1568 = vrot.slane %v1532, 5
      %v1569 = vrot.slane %v1568, 4
      %v1570 = vrot.slane %v1307, 5
      %v1571 = vsel %vm537, %v1569, %v1570
      %v1572 = vrot.slane %v1533, 5
      %v1573 = vrot.slane %v1572, 4
      %v1574 = vrot.slane %v1309, 5
      %v1575 = vsel %vm537, %v1573, %v1574
      %v1576 = vrot.slane %v1534, 5
      %v1577 = vrot.slane %v1576, 4
      %v1578 = vrot.slane %v1311, 5
      %v1579 = vsel %vm537, %v1577, %v1578
      %v1580 = vrot.slane %v1535, 5
      %v1581 = vrot.slane %v1580, 4
      %v1582 = vrot.slane %v1313, 5
      %v1583 = vsel %vm537, %v1581, %v1582
      %s1584 = scalar_lea.vmem %s1, 32
      %v1585 = vld [vmem:[%s1584] sm:$0xf]
      %v1586 = vunpack.c.l.b16 %v1555
      %v1587 = vunpack.c.l.b16 %v1559
      %v1588 = vunpack.c.l.b16 %v1563
      %v1589 = vunpack.c.l.b16 %v1567
      %v1590 = vunpack.c.l.b16 %v1571
      %v1591 = vunpack.c.l.b16 %v1575
      %v1592 = vunpack.c.l.b16 %v1579
      %v1593 = vunpack.c.l.b16 %v1583
      %v1594 = vpack.c.b16 %v1587, %v1586
      %v1595 = vpack.c.b16 %v1589, %v1588
      %v1596 = vpack.c.b16 %v1591, %v1590
      %v1597 = vpack.c.b16 %v1593, %v1592
      %v1599 = vsel %vm329, %v1594, 0
      %v1602 = vsel %vm329, %v1595, 0
      %v1605 = vsel %vm329, %v1596, 0
      %v1608 = vsel %vm329, %v1597, 0
      %v1611 = vsel %vm342, %v1585, 0
      %1613 = vmatprep.subr.bf16.mxu0 0
      %1614 = vmatpush1.bf16.msra.mxu0 %v1611
      %1615 = vmatprep.subr.bf16.mxu0 0
      %1616 = vmatpush1.bf16.msra.mxu0 0
      %1617 = vmatprep.subr.bf16.mxu0 0
      %1618 = vmatpush1.bf16.msra.mxu0 0
      %1619 = vmatprep.subr.bf16.mxu0 0
      %1620 = vmatpush1.bf16.msra.mxu0 0
      %1621 = vmatprep.subr.bf16.mxu0 0
      %1622 = vmatpush1.bf16.msra.mxu0 0
      %1623 = vmatprep.subr.bf16.mxu0 0
      %1624 = vmatpush1.bf16.msra.mxu0 0
      %1625 = vmatprep.subr.bf16.mxu0 0
      %1626 = vmatpush1.bf16.msra.mxu0 0
      %1627 = vmatprep.subr.bf16.mxu0 0
      %1628 = vmatpush1.bf16.msra.mxu0 0
      %1629 = vmatprep.subr.bf16.mxu0 0
      %1630 = vmatpush1.bf16.msra.mxu0 0
      %1631 = vmatprep.subr.bf16.mxu0 0
      %1632 = vmatpush1.bf16.msra.mxu0 0
      %1633 = vmatprep.subr.bf16.mxu0 0
      %1634 = vmatpush1.bf16.msra.mxu0 0
      %1635 = vmatprep.subr.bf16.mxu0 0
      %1636 = vmatpush1.bf16.msra.mxu0 0
      %1637 = vmatprep.subr.bf16.mxu0 0
      %1638 = vmatpush1.bf16.msra.mxu0 0
      %1639 = vmatprep.subr.bf16.mxu0 0
      %1640 = vmatpush1.bf16.msra.mxu0 0
      %1641 = vmatprep.subr.bf16.mxu0 0
      %1642 = vmatpush1.bf16.msra.mxu0 0
      %1643 = vmatprep.subr.bf16.mxu0 0
      %1644 = vmatpush1.bf16.msra.mxu0 0
      %1645 = vmatprep.mubr.bf16.mxu0 0
      %1646 = vmatmul.mubr.bf16.gmra.mrb[0].mxu0 %v1599
      %v1647 = vpop.f32.mrb[0].mxu0
      %v1648 = vadd.f32 0.0, %v1647
      %v1649 = vpop.f32.mrb[0].mxu0
      %v1650 = vpop.f32.mrb[0].mxu0
      %v1651 = vadd.f32 0.0, %v1650
      %v1652 = vpop.f32.mrb[0].mxu0
      %1653 = vmatprep.mubr.bf16.mxu0 0
      %1654 = vmatmul.mubr.bf16.gmra.mrb[0].mxu0 %v1602
      %v1655 = vpop.f32.mrb[0].mxu0
      %v1656 = vadd.f32 0.0, %v1655
      %v1657 = vpop.f32.mrb[0].mxu0
      %v1658 = vpop.f32.mrb[0].mxu0
      %v1659 = vadd.f32 0.0, %v1658
      %v1660 = vpop.f32.mrb[0].mxu0
      %1661 = vmatprep.mubr.bf16.mxu0 0
      %1662 = vmatmul.mubr.bf16.gmra.mrb[0].mxu0 %v1605
      %v1663 = vpop.f32.mrb[0].mxu0
      %v1664 = vadd.f32 0.0, %v1663
      %v1665 = vpop.f32.mrb[0].mxu0
      %v1666 = vpop.f32.mrb[0].mxu0
      %v1667 = vadd.f32 0.0, %v1666
      %v1668 = vpop.f32.mrb[0].mxu0
      %1669 = vmatprep.mubr.bf16.mxu0 0
      %1670 = vmatmul.mubr.bf16.gmra.mrb[0].mxu0 %v1608
      %v1671 = vpop.f32.mrb[0].mxu0
      %v1672 = vadd.f32 0.0, %v1671
      %v1673 = vpop.f32.mrb[0].mxu0
      %v1674 = vpop.f32.mrb[0].mxu0
      %v1675 = vadd.f32 0.0, %v1674
      %v1676 = vpop.f32.mrb[0].mxu0
      %1677 = vdwg.mxu0
      %v1678 = vadd.f32 %v1520, %v1648
      %v1679 = vadd.f32 %v1521, %v1651
      %v1680 = vadd.f32 %v1522, %v1656
      %v1681 = vadd.f32 %v1523, %v1659
      %v1682 = vadd.f32 %v1524, %v1664
      %v1683 = vadd.f32 %v1525, %v1667
      %v1684 = vadd.f32 %v1526, %v1672
      %v1685 = vadd.f32 %v1527, %v1675
      %v1686 = vpack.c.bf16 %v1679, %v1678
      %v1687 = vpack.c.bf16 %v1681, %v1680
      %v1688 = vpack.c.bf16 %v1683, %v1682
      %v1689 = vpack.c.bf16 %v1685, %v1684
      %v1694 = vunpack.c.l.b16 %v1686
      %v1695 = vunpack.c.h.b16 %v1686
      %v1696 = vunpack.c.l.b16 %v1687
      %v1697 = vunpack.c.h.b16 %v1687
      %v1698 = vunpack.c.l.b16 %v1688
      %v1699 = vunpack.c.h.b16 %v1688
      %v1700 = vunpack.c.l.b16 %v1689
      %v1701 = vunpack.c.h.b16 %v1689
      %v1702 = vpack.c.b16 %v1694, %v1694
      %v1703 = vpack.c.b16 %v1695, %v1695
      %v1704 = vpack.c.b16 %v1696, %v1696
      %v1705 = vpack.c.b16 %v1697, %v1697
      %v1706 = vpack.c.b16 %v1698, %v1698
      %v1707 = vpack.c.b16 %v1699, %v1699
      %v1708 = vpack.c.b16 %v1700, %v1700
      %v1709 = vpack.c.b16 %v1701, %v1701
      %vm1718 = vcmask 60416
      %1719 = vst.msk [vmem:[%s177] sm:$0xf] %vm1718, %v1702
      %1720 = vst.msk [vmem:[%s177 + $0x4] sm:$0xf] %vm1718, %v1703
      %1721 = vst.msk [vmem:[%s177 + $0x8] sm:$0xf] %vm1718, %v1704
      %1722 = vst.msk [vmem:[%s177 + $0xc] sm:$0xf] %vm1718, %v1705
      %1723 = vst.msk [vmem:[%s177 + $0x10] sm:$0xf] %vm1718, %v1706
      %1724 = vst.msk [vmem:[%s177 + $0x14] sm:$0xf] %vm1718, %v1707
      %1725 = vst.msk [vmem:[%s177 + $0x18] sm:$0xf] %vm1718, %v1708
      %1726 = vst.msk [vmem:[%s177 + $0x1c] sm:$0xf] %vm1718, %v1709
      %v1727 = vsel %vm329, %v1678, 0.0
      %v1728 = vsel %vm329, %v1679, 0.0
      %v1729 = vadd.f32 %v1727, %v1728
      %v1730 = vsel %vm329, %v1680, 0.0
      %v1731 = vadd.f32 %v1729, %v1730
      %v1732 = vsel %vm329, %v1681, 0.0
      %v1733 = vadd.f32 %v1731, %v1732
      %v1734 = vsel %vm329, %v1682, 0.0
      %v1735 = vadd.f32 %v1733, %v1734
      %v1736 = vsel %vm329, %v1683, 0.0
      %v1737 = vadd.f32 %v1735, %v1736
      %v1738 = vsel %vm329, %v1684, 0.0
      %v1739 = vadd.f32 %v1737, %v1738
      %v1740 = vsel %vm329, %v1685, 0.0
      %v1741 = vadd.f32 %v1739, %v1740
      %v1742 = vrot.slane %v1741, 4
      %v1743 = vadd.f32 %v1741, %v1742
      %v1744 = vrot.slane %v1743, 2
      %v1745 = vadd.f32 %v1743, %v1744
      %v1746 = vrot.slane %v1745, 1
      %v1747 = vadd.f32 %v1745, %v1746
      %v1748 = vmul.f32 %v1747, 0.015625
      %v1749 = vsub.f32 %v1678, %v1748
      %v1750 = vsub.f32 %v1679, %v1748
      %v1751 = vsub.f32 %v1680, %v1748
      %v1752 = vsub.f32 %v1681, %v1748
      %v1753 = vsub.f32 %v1682, %v1748
      %v1754 = vsub.f32 %v1683, %v1748
      %v1755 = vsub.f32 %v1684, %v1748
      %v1756 = vsub.f32 %v1685, %v1748
      %v1757 = vmul.f32 %v1749, %v1749
      %v1758 = vmul.f32 %v1750, %v1750
      %v1759 = vmul.f32 %v1751, %v1751
      %v1760 = vmul.f32 %v1752, %v1752
      %v1761 = vmul.f32 %v1753, %v1753
      %v1762 = vmul.f32 %v1754, %v1754
      %v1763 = vmul.f32 %v1755, %v1755
      %v1764 = vmul.f32 %v1756, %v1756
      %v1765 = vsel %vm329, %v1757, 0.0
      %v1766 = vsel %vm329, %v1758, 0.0
      %v1767 = vadd.f32 %v1765, %v1766
      %v1768 = vsel %vm329, %v1759, 0.0
      %v1769 = vadd.f32 %v1767, %v1768
      %v1770 = vsel %vm329, %v1760, 0.0
      %v1771 = vadd.f32 %v1769, %v1770
      %v1772 = vsel %vm329, %v1761, 0.0
      %v1773 = vadd.f32 %v1771, %v1772
      %v1774 = vsel %vm329, %v1762, 0.0
      %v1775 = vadd.f32 %v1773, %v1774
      %v1776 = vsel %vm329, %v1763, 0.0
      %v1777 = vadd.f32 %v1775, %v1776
      %v1778 = vsel %vm329, %v1764, 0.0
      %v1779 = vadd.f32 %v1777, %v1778
      %v1780 = vrot.slane %v1779, 4
      %v1781 = vadd.f32 %v1779, %v1780
      %v1782 = vrot.slane %v1781, 2
      %v1783 = vadd.f32 %v1781, %v1782
      %v1784 = vrot.slane %v1783, 1
      %v1785 = vadd.f32 %v1783, %v1784
      %vm1786 = vcmask 57344
      %1787 = vst.msk [vmem:[%s181] sm:$0x1] %vm1786, %v1747
      %1788 = vst.msk [vmem:[%s181 + $0x1] sm:$0x1] %vm1786, %v1785
      %p1789 = scmp.lt.s32.totalorder %s15, 1
      %s1790 = scalar_select %p1789, %s15, 1
      %s1791 = smul.addr %s1790, 8
      %s1792 = smul.addr %s1791, 4
      %s1793 = scalar_lea.vmem %s2, %s1792
      %p1794 = scmp.lt.s32.totalorder %s15, 1
      %s1795 = scalar_select %p1794, %s15, 1
      %s1796 = smul.addr %s1795, 2
      %s1797 = scalar_lea.vmem %s3, %s1796
      // Predicated region
      $region29: #{basic_block_forward.7} parent=27 // pred_check
        %p1798 = pneg %p80
      $region30: #{basic_block_forward.7} parent=27 // pred_check_branch
        %1800 = sbr.rel (%p1798) target = $region32
      $region31: #{basic_block_forward.7} parent=27 // pred_region
        _
      $region32: #{basic_block_forward.7} parent=27 // pred_fallthru
        _
      // Predicated region
      $region33: #{basic_block_forward.7} parent=27 // pred_check
        %p1801 = pneg %p106
      $region34: #{basic_block_forward.7} parent=27 // pred_check_branch
        %1803 = sbr.rel (%p1801) target = $region36
      $region35: #{basic_block_forward.7} parent=27 // pred_region
        _
      $region36: #{basic_block_forward.7} parent=27 // pred_fallthru
        _
    $region28: #{basic_block_forward.7} parent=5 // pred_fallthru
      _
    %p1804 = scmp.le.s32.totalorder 2, %s10
    // Predicated region
    $region37: #{basic_block_forward.7} parent=5 // pred_check
      %p1805 = pneg %p1804
    $region38: #{basic_block_forward.7} parent=5 // pred_check_branch
      %1807 = sbr.rel (%p1805) target = $region40
    $region39: #{basic_block_forward.7} parent=5 // pred_region
      %s1808 = ssub.s32 %s10, 2
      // Predicated region
      $region41: #{basic_block_forward.7} parent=39 // pred_check
        %p1809 = pneg %p86
      $region42: #{basic_block_forward.7} parent=39 // pred_check_branch
        %1811 = sbr.rel (%p1809) target = $region44
      $region43: #{basic_block_forward.7} parent=39 // pred_region
        %p1812 = scmp.lt.s32.totalorder %s16, 1
        %s1813 = scalar_select %p1812, %s16, 1
        %s1814 = smul.addr %s1813, 8
        %s1815 = smul.addr %s1814, 4
        %s1816 = scalar_lea.vmem %s2, %s1815
      $region44: #{basic_block_forward.7} parent=39 // pred_fallthru
        _
      // Predicated region
      $region45: #{basic_block_forward.7} parent=39 // pred_check
        %p1817 = pneg %p112
      $region46: #{basic_block_forward.7} parent=39 // pred_check_branch
        %1819 = sbr.rel (%p1817) target = $region48
      $region47: #{basic_block_forward.7} parent=39 // pred_region
        %p1820 = scmp.lt.s32.totalorder %s16, 1
        %s1821 = scalar_select %p1820, %s16, 1
        %s1822 = smul.addr %s1821, 2
        %s1823 = scalar_lea.vmem %s3, %s1822
      $region48: #{basic_block_forward.7} parent=39 // pred_fallthru
        _
    $region40: #{basic_block_forward.7} parent=5 // pred_fallthru
      _
  $region6: #{basic_block_forward.7} parent=0 // loop_footer
    %s14 = sadd.s32 1, %s10
  $region7: #{basic_block_forward.7} parent=0 // loop_footer_branch
    %9 = sbr.rel target = $region3
  $region8: #{basic_block_forward.7} parent=0 // loop_exit
    _

</llo_original>
